<compile_context>
chip_gen: v5e
topology: v5e:2x2
jax: 0.10.0
libtpu: 0.0.40
codegen_flags: <defaults>
</compile_context>

<pallas_src>
import functools

import jax
import jax.numpy as jnp
from jax import lax
from jax.experimental import pallas as pl
from jax.experimental.pallas import tpu as pltpu


# ---------------------------------------------------------------------------
# Fused Pallas kernel
# ---------------------------------------------------------------------------

def _fused_bilstm_kernel(*refs, num_layers, T, N, H):
    """Entire BiLSTM classifier forward pass in one kernel.

    refs (in order):
      inputs : ids (T*N, 1) int32, emb (V, E),
               per layer: w_ih (D_in, 8H)  [fwd 4H | bwd 4H, gate order i|f|o|g],
                          w_hh_f (H, 4H), w_hh_b (H, 4H), b (1, 8H),
               pooler_w (2H, 2H), pooler_b (1, 2H), out_w (2H, L), out_b (1, L)
      output : logits (T, L)
      scratch: gih (T*N, 8H), act_f (T*N, H), act_b (T*N, H)   [all VMEM]
    """
    n_in = 2 + 4 * num_layers + 4
    ids_ref, emb_ref = refs[0], refs[1]
    layer_refs = refs[2:2 + 4 * num_layers]
    pw_ref, pb_ref, ow_ref, ob_ref = refs[2 + 4 * num_layers:n_in]
    out_ref = refs[n_in]
    gih_scr, act_f_scr, act_b_scr = refs[n_in + 1:n_in + 4]

    TN = T * N
    V = emb_ref.shape[0]
    G = 4 * H

    # ---- embedding lookup as one-hot @ table (gather-free, runs on MXU) ----
    ids = ids_ref[...]                                        # (TN, 1) int32
    iota_v = lax.broadcasted_iota(jnp.int32, (TN, V), 1)
    onehot = (ids == iota_v).astype(jnp.float32)              # (TN, V)
    xin = jnp.dot(onehot, emb_ref[...],
                  preferred_element_type=jnp.float32)         # (TN, E)

    def cell(g, c):
        # gate order i|f|o|g: one contiguous sigmoid block, tanh on the rest.
        sg = jax.nn.sigmoid(g[:, 0:3 * H])
        i = sg[:, 0:H]
        f = sg[:, H:2 * H]
        o = sg[:, 2 * H:3 * H]
        gg = jnp.tanh(g[:, 3 * H:4 * H])
        c = f * c + i * gg
        h = o * jnp.tanh(c)
        return h, c

    for l in range(num_layers):
        w_ih_ref, w_hh_f_ref, w_hh_b_ref, b_ref = layer_refs[4 * l:4 * l + 4]
        b = b_ref[...]                                        # (1, 8H)

        # Input projection for BOTH directions hoisted off the recurrence as a
        # single (T*N, 8H) matmul.  For layers > 0 the bidirectional concat is
        # folded in by splitting w_ih into its fwd-rows / bwd-rows halves.
        if l == 0:
            gih_scr[...] = jnp.dot(
                xin, w_ih_ref[...], preferred_element_type=jnp.float32) + b
        else:
            gih_scr[...] = (
                jnp.dot(act_f_scr[...], w_ih_ref[pl.ds(0, H), :],
                        preferred_element_type=jnp.float32)
                + jnp.dot(act_b_scr[...], w_ih_ref[pl.ds(H, H), :],
                          preferred_element_type=jnp.float32)
                + b)

        w_hh_f = w_hh_f_ref[...]                              # hoist weight loads
        w_hh_b = w_hh_b_ref[...]
        h_f = jnp.zeros((N, H), jnp.float32)
        c_f = jnp.zeros((N, H), jnp.float32)
        h_b = jnp.zeros((N, H), jnp.float32)
        c_b = jnp.zeros((N, H), jnp.float32)

        # Interleaved fwd (time s) / bwd (time T-1-s) recurrence, fully
        # unrolled (T is a small compile-time constant).  The two chains are
        # independent so the scheduler overlaps one direction's MXU latency
        # with the other's gate math.
        for s in range(T):
            t_b = T - 1 - s
            g_f = gih_scr[pl.ds(s * N, N), pl.ds(0, G)] + jnp.dot(
                h_f, w_hh_f, preferred_element_type=jnp.float32)
            g_b = gih_scr[pl.ds(t_b * N, N), pl.ds(G, G)] + jnp.dot(
                h_b, w_hh_b, preferred_element_type=jnp.float32)
            h_f, c_f = cell(g_f, c_f)
            h_b, c_b = cell(g_b, c_b)
            # Per-direction buffers: stores are full-width at lane offset 0
            # (no masked lane-offset vst on the serial chain).
            act_f_scr[pl.ds(s * N, N), :] = h_f
            act_b_scr[pl.ds(t_b * N, N), :] = h_b

    # ---- head: Pooler(lstm_out[:, 0]) -> tanh -> Linear ---------------------
    # lstm_out[:, 0] == rows {t*N + 0}: one strided read per direction, and the
    # fwd|bwd concat is folded into the pooler matmul via a row-split of pw.
    pooled_f = act_f_scr[pl.ds(0, T, stride=N), :]            # (T, H)
    pooled_b = act_b_scr[pl.ds(0, T, stride=N), :]            # (T, H)
    pooled = jnp.tanh(
        jnp.dot(pooled_f, pw_ref[pl.ds(0, H), :],
                preferred_element_type=jnp.float32)
        + jnp.dot(pooled_b, pw_ref[pl.ds(H, H), :],
                  preferred_element_type=jnp.float32)
        + pb_ref[...])
    out_ref[...] = (jnp.dot(pooled, ow_ref[...],
                            preferred_element_type=jnp.float32) + ob_ref[...])


# ---------------------------------------------------------------------------
# Wrapper
# ---------------------------------------------------------------------------

_VMEM_SPEC = pl.BlockSpec(memory_space=pltpu.MemorySpace.VMEM)


def _perm_ifog(w, H):
    """Reorder 4H gate columns from PyTorch i|f|g|o to kernel i|f|o|g."""
    return jnp.concatenate(
        [w[..., 0:2 * H], w[..., 3 * H:4 * H], w[..., 2 * H:3 * H]], axis=-1)


def bilstm_forward(input_ids, params):
    """Forward pass of BiLSTMSequenceClassification (eval mode, labels=None)."""
    H = params["hidden_dim"]
    L = params["num_labels"]
    T, N = input_ids.shape                 # batch_first=False: T=axis0, N=axis1
    num_layers = len(params["lstm"])

    # Flatten ids time-major (row t*N + n) so all in-kernel math is 2-D.
    # (N should be a multiple of 8 for sublane-aligned row slices; correct
    #  either way, just slower if violated.)
    ids_flat = input_ids.reshape(T * N, 1).astype(jnp.int32)

    args = [ids_flat, params["embedding"]]
    for lp in params["lstm"]:
        # Pack fwd|bwd input projections into one (D_in, 8H) matrix (+ bias),
        # gate order permuted once here (param prep, not on the hot path).
        w_ih = jnp.concatenate([_perm_ifog(lp["w_ih_fwd"], H),
                                _perm_ifog(lp["w_ih_bwd"], H)], axis=1)
        b = jnp.concatenate([_perm_ifog(lp["b_fwd"], H),
                             _perm_ifog(lp["b_bwd"], H)], axis=1)
        args += [w_ih,
                 _perm_ifog(lp["w_hh_fwd"], H),
                 _perm_ifog(lp["w_hh_bwd"], H),
                 b]
    args += [params["pooler_w"], params["pooler_b"],
             params["out_w"], params["out_b"]]

    kernel = functools.partial(_fused_bilstm_kernel,
                               num_layers=num_layers, T=T, N=N, H=H)
    return pl.pallas_call(
        kernel,
        out_shape=jax.ShapeDtypeStruct((T, L), jnp.float32),
        in_specs=[_VMEM_SPEC] * len(args),
        out_specs=_VMEM_SPEC,
        scratch_shapes=[pltpu.VMEM((T * N, 8 * H), jnp.float32),  # hoisted gates
                        pltpu.VMEM((T * N, H), jnp.float32),      # fwd activations
                        pltpu.VMEM((T * N, H), jnp.float32)],     # bwd activations
        compiler_params=pltpu.CompilerParams(
            vmem_limit_bytes=32 * 1024 * 1024),
    )(*args)


# ---------------------------------------------------------------------------
# Pure-JAX reference (for correctness check) — PyTorch i|f|g|o gate order
# ---------------------------------------------------------------------------

def _lstm_direction_ref(x, w_ih_t, w_hh_t, b, H):
    T, N, _ = x.shape

    def step(carry, x_t):
        h, c = carry
        gates = x_t @ w_ih_t + h @ w_hh_t + b
        i = jax.nn.sigmoid(gates[:, 0 * H:1 * H])
        f = jax.nn.sigmoid(gates[:, 1 * H:2 * H])
        g = jnp.tanh(gates[:, 2 * H:3 * H])
        o = jax.nn.sigmoid(gates[:, 3 * H:4 * H])
        c = f * c + i * g
        h = o * jnp.tanh(c)
        return (h, c), h

    init = (jnp.zeros((N, H), jnp.float32), jnp.zeros((N, H), jnp.float32))
    _, hs = lax.scan(step, init, x)
    return hs


def bilstm_forward_ref(input_ids, params):
    H = params["hidden_dim"]
    x = jnp.take(params["embedding"], input_ids, axis=0).astype(jnp.float32)
    for lp in params["lstm"]:
        h_fwd = _lstm_direction_ref(x, lp["w_ih_fwd"], lp["w_hh_fwd"],
                                    lp["b_fwd"], H)
        h_bwd = _lstm_direction_ref(x[::-1], lp["w_ih_bwd"], lp["w_hh_bwd"],
                                    lp["b_bwd"], H)[::-1]
        x = jnp.concatenate([h_fwd, h_bwd], axis=-1)
    pooled = jnp.tanh(x[:, 0] @ params["pooler_w"] + params["pooler_b"])
    return pooled @ params["out_w"] + params["out_b"]


# ---------------------------------------------------------------------------
# Deterministic parameter initialization (shapes per the module's __init__)
# ---------------------------------------------------------------------------

def init_params(key, char_vocab_size, embedding_dim, hidden_dim,
                lstm_layers, num_labels):
    H, E = hidden_dim, embedding_dim
    vocab = char_vocab_size + 1             # nn.Embedding(len(char_vocab)+1, E)
    keys = iter(jax.random.split(key, 64))

    def unif(shape, scale=0.1):
        return jax.random.uniform(next(keys), shape, jnp.float32, -scale, scale)

    params = {
        "hidden_dim": H,
        "num_labels": num_labels,
        "embedding": jax.random.normal(next(keys), (vocab, E), jnp.float32),
        "lstm": [],
        # Pooler(hidden_dim * 2): Linear(2H, 2H) (pre-transposed), bias (1, 2H)
        "pooler_w": unif((2 * H, 2 * H)),
        "pooler_b": unif((1, 2 * H)),
        # output: Linear(2H, num_labels)
        "out_w": unif((2 * H, num_labels)),
        "out_b": unif((1, num_labels)),
    }
    for layer in range(lstm_layers):
        d_in = E if layer == 0 else 2 * H
        params["lstm"].append({
            # weight_ih_l{k}: (4H, d_in) in PyTorch -> stored transposed (d_in, 4H)
            # gate order i|f|g|o (PyTorch); kernel wrapper permutes to i|f|o|g.
            "w_ih_fwd": unif((d_in, 4 * H)),
            "w_hh_fwd": unif((H, 4 * H)),
            "b_fwd":    unif((1, 4 * H)),   # bias_ih + bias_hh combined
            "w_ih_bwd": unif((d_in, 4 * H)),
            "w_hh_bwd": unif((H, 4 * H)),
            "b_bwd":    unif((1, 4 * H)),
        })
    return params


# ---------------------------------------------------------------------------

if __name__ == "__main__":
    CHAR_VOCAB_SIZE = 20     # len(char_vocab)
    EMBEDDING_DIM = 32
    HIDDEN_DIM = 32
    LSTM_LAYERS = 2
    NUM_LABELS = 2
    B, S = 4, 16             # input_ids shape fed to the module (T=B, N=S here)

    root = jax.random.PRNGKey(0)
    k_param, k_ids = jax.random.split(root)
    params = init_params(k_param, CHAR_VOCAB_SIZE, EMBEDDING_DIM,
                         HIDDEN_DIM, LSTM_LAYERS, NUM_LABELS)
    input_ids = jax.random.randint(k_ids, (B, S), 0, CHAR_VOCAB_SIZE + 1,
                                   dtype=jnp.int32)

    logits = bilstm_forward(input_ids, params)
    logits = jax.block_until_ready(logits)

    ref = jax.block_until_ready(bilstm_forward_ref(input_ids, params))

    assert logits.shape == (B, NUM_LABELS), logits.shape
    assert logits.dtype == jnp.float32
    assert jnp.allclose(logits, ref, rtol=1e-3, atol=1e-3), (
        f"mismatch: max abs err {jnp.max(jnp.abs(logits - ref))}")

    print("KERNEL_OK")
</pallas_src>

<mosaic_0001>
module attributes {stable_mosaic.version = 11 : i64} {
  func.func @_fused_bilstm_kernel(%arg0: memref<64x1xi32, #tpu.memory_space<vmem>>, %arg1: memref<21x32xf32, #tpu.memory_space<vmem>>, %arg2: memref<32x256xf32, #tpu.memory_space<vmem>>, %arg3: memref<32x128xf32, #tpu.memory_space<vmem>>, %arg4: memref<32x128xf32, #tpu.memory_space<vmem>>, %arg5: memref<1x256xf32, #tpu.memory_space<vmem>>, %arg6: memref<64x256xf32, #tpu.memory_space<vmem>>, %arg7: memref<32x128xf32, #tpu.memory_space<vmem>>, %arg8: memref<32x128xf32, #tpu.memory_space<vmem>>, %arg9: memref<1x256xf32, #tpu.memory_space<vmem>>, %arg10: memref<64x64xf32, #tpu.memory_space<vmem>>, %arg11: memref<1x64xf32, #tpu.memory_space<vmem>>, %arg12: memref<64x2xf32, #tpu.memory_space<vmem>>, %arg13: memref<1x2xf32, #tpu.memory_space<vmem>>, %arg14: memref<4x2xf32, #tpu.memory_space<vmem>>, %arg15: memref<64x256xf32, #tpu.memory_space<vmem>>, %arg16: memref<64x32xf32, #tpu.memory_space<vmem>>, %arg17: memref<64x32xf32, #tpu.memory_space<vmem>>) attributes {dimension_semantics = [], scalar_prefetch = 0 : i64, scratch_operands = 3 : i64, tpu.core_type = #tpu.core_type<tc>} {
    %c0 = arith.constant 0 : index
    %c0_0 = arith.constant 0 : index
    %0 = vector.load %arg0[%c0, %c0_0] : memref<64x1xi32, #tpu.memory_space<vmem>>, vector<64x1xi32>
    %1 = tpu.iota {dimensions = array<i32: 1>} : vector<64x21xi32>
    %2 = vector.broadcast %0 : vector<64x1xi32> to vector<64x21xi32>
    %3 = arith.cmpi eq, %2, %1 : vector<64x21xi32>
    %4 = arith.extui %3 : vector<64x21xi1> to vector<64x21xi32>
    %5 = arith.sitofp %4 : vector<64x21xi32> to vector<64x21xf32>
    %c0_1 = arith.constant 0 : index
    %c0_2 = arith.constant 0 : index
    %6 = vector.load %arg1[%c0_1, %c0_2] : memref<21x32xf32, #tpu.memory_space<vmem>>, vector<21x32xf32>
    %cst = arith.constant dense<0.000000e+00> : vector<64x32xf32>
    %7 = tpu.matmul %5, %6, %cst {dimension_numbers = #tpu.dot_dimension_numbers<[1], [0], [0], [1], [0, 0, 1, 1], [], []>} : vector<64x21xf32>, vector<21x32xf32>, vector<64x32xf32> -> vector<64x32xf32>
    %c0_3 = arith.constant 0 : index
    %c0_4 = arith.constant 0 : index
    %8 = vector.load %arg5[%c0_3, %c0_4] : memref<1x256xf32, #tpu.memory_space<vmem>>, vector<1x256xf32>
    %c0_5 = arith.constant 0 : index
    %c0_6 = arith.constant 0 : index
    %9 = vector.load %arg2[%c0_5, %c0_6] : memref<32x256xf32, #tpu.memory_space<vmem>>, vector<32x256xf32>
    %cst_7 = arith.constant dense<0.000000e+00> : vector<64x256xf32>
    %10 = tpu.matmul %7, %9, %cst_7 {dimension_numbers = #tpu.dot_dimension_numbers<[1], [0], [0], [1], [0, 0, 1, 1], [], []>} : vector<64x32xf32>, vector<32x256xf32>, vector<64x256xf32> -> vector<64x256xf32>
    %11 = vector.broadcast %8 : vector<1x256xf32> to vector<64x256xf32>
    %12 = arith.addf %10, %11 : vector<64x256xf32>
    %c0_8 = arith.constant 0 : index
    %c0_9 = arith.constant 0 : index
    %13 = vector.load %arg15[%c0_8, %c0_9] : memref<64x256xf32, #tpu.memory_space<vmem>>, vector<64x256xf32>
    tpu.vector_store %arg15[%c0_8, %c0_9], %12 {strides = array<i32>} : memref<64x256xf32, #tpu.memory_space<vmem>>, vector<64x256xf32>,
    %c0_10 = arith.constant 0 : index
    %c0_11 = arith.constant 0 : index
    %14 = vector.load %arg3[%c0_10, %c0_11] : memref<32x128xf32, #tpu.memory_space<vmem>>, vector<32x128xf32>
    %c0_12 = arith.constant 0 : index
    %c0_13 = arith.constant 0 : index
    %15 = vector.load %arg4[%c0_12, %c0_13] : memref<32x128xf32, #tpu.memory_space<vmem>>, vector<32x128xf32>
    %cst_14 = arith.constant 0.000000e+00 : f32
    %16 = vector.broadcast %cst_14 : f32 to vector<16x32xf32>
    %cst_15 = arith.constant 0.000000e+00 : f32
    %17 = vector.broadcast %cst_15 : f32 to vector<16x32xf32>
    %cst_16 = arith.constant 0.000000e+00 : f32
    %18 = vector.broadcast %cst_16 : f32 to vector<16x32xf32>
    %cst_17 = arith.constant 0.000000e+00 : f32
    %19 = vector.broadcast %cst_17 : f32 to vector<16x32xf32>
    %c0_18 = arith.constant 0 : index
    %c0_19 = arith.constant 0 : index
    %20 = vector.load %arg15[%c0_18, %c0_19] : memref<64x256xf32, #tpu.memory_space<vmem>>, vector<16x128xf32>
    %cst_20 = arith.constant dense<0.000000e+00> : vector<16x128xf32>
    %21 = tpu.matmul %16, %14, %cst_20 {dimension_numbers = #tpu.dot_dimension_numbers<[1], [0], [0], [1], [0, 0, 1, 1], [], []>} : vector<16x32xf32>, vector<32x128xf32>, vector<16x128xf32> -> vector<16x128xf32>
    %22 = arith.addf %20, %21 : vector<16x128xf32>
    %c48 = arith.constant 48 : index
    %c128 = arith.constant 128 : index
    %23 = vector.load %arg15[%c48, %c128] : memref<64x256xf32, #tpu.memory_space<vmem>>, vector<16x128xf32>
    %cst_21 = arith.constant dense<0.000000e+00> : vector<16x128xf32>
    %24 = tpu.matmul %18, %15, %cst_21 {dimension_numbers = #tpu.dot_dimension_numbers<[1], [0], [0], [1], [0, 0, 1, 1], [], []>} : vector<16x32xf32>, vector<32x128xf32>, vector<16x128xf32> -> vector<16x128xf32>
    %25 = arith.addf %23, %24 : vector<16x128xf32>
    %26 = vector.extract_strided_slice %22 {offsets = [0, 0], sizes = [16, 96], strides = [1, 1]} : vector<16x128xf32> to vector<16x96xf32>
    %27 = arith.negf %26 : vector<16x96xf32>
    %28 = math.exp %27 : vector<16x96xf32>
    %cst_22 = arith.constant 1.000000e+00 : f32
    %29 = vector.broadcast %cst_22 : f32 to vector<16x96xf32>
    %30 = arith.addf %29, %28 : vector<16x96xf32>
    %31 = arith.divf %29, %30 : vector<16x96xf32>
    %32 = vector.extract_strided_slice %31 {offsets = [0, 0], sizes = [16, 32], strides = [1, 1]} : vector<16x96xf32> to vector<16x32xf32>
    %33 = vector.extract_strided_slice %31 {offsets = [0, 32], sizes = [16, 32], strides = [1, 1]} : vector<16x96xf32> to vector<16x32xf32>
    %34 = vector.extract_strided_slice %31 {offsets = [0, 64], sizes = [16, 32], strides = [1, 1]} : vector<16x96xf32> to vector<16x32xf32>
    %35 = vector.extract_strided_slice %22 {offsets = [0, 96], sizes = [16, 32], strides = [1, 1]} : vector<16x128xf32> to vector<16x32xf32>
    %36 = math.tanh %35 : vector<16x32xf32>
    %37 = arith.mulf %33, %17 : vector<16x32xf32>
    %38 = arith.mulf %32, %36 : vector<16x32xf32>
    %39 = arith.addf %37, %38 : vector<16x32xf32>
    %40 = math.tanh %39 : vector<16x32xf32>
    %41 = arith.mulf %34, %40 : vector<16x32xf32>
    %42 = vector.extract_strided_slice %25 {offsets = [0, 0], sizes = [16, 96], strides = [1, 1]} : vector<16x128xf32> to vector<16x96xf32>
    %43 = arith.negf %42 : vector<16x96xf32>
    %44 = math.exp %43 : vector<16x96xf32>
    %cst_23 = arith.constant 1.000000e+00 : f32
    %45 = vector.broadcast %cst_23 : f32 to vector<16x96xf32>
    %46 = arith.addf %45, %44 : vector<16x96xf32>
    %47 = arith.divf %45, %46 : vector<16x96xf32>
    %48 = vector.extract_strided_slice %47 {offsets = [0, 0], sizes = [16, 32], strides = [1, 1]} : vector<16x96xf32> to vector<16x32xf32>
    %49 = vector.extract_strided_slice %47 {offsets = [0, 32], sizes = [16, 32], strides = [1, 1]} : vector<16x96xf32> to vector<16x32xf32>
    %50 = vector.extract_strided_slice %47 {offsets = [0, 64], sizes = [16, 32], strides = [1, 1]} : vector<16x96xf32> to vector<16x32xf32>
    %51 = vector.extract_strided_slice %25 {offsets = [0, 96], sizes = [16, 32], strides = [1, 1]} : vector<16x128xf32> to vector<16x32xf32>
    %52 = math.tanh %51 : vector<16x32xf32>
    %53 = arith.mulf %49, %19 : vector<16x32xf32>
    %54 = arith.mulf %48, %52 : vector<16x32xf32>
    %55 = arith.addf %53, %54 : vector<16x32xf32>
    %56 = math.tanh %55 : vector<16x32xf32>
    %57 = arith.mulf %50, %56 : vector<16x32xf32>
    %c0_24 = arith.constant 0 : index
    %c0_25 = arith.constant 0 : index
    %58 = vector.load %arg16[%c0_24, %c0_25] : memref<64x32xf32, #tpu.memory_space<vmem>>, vector<16x32xf32>
    tpu.vector_store %arg16[%c0_24, %c0_25], %41 {strides = array<i32>} : memref<64x32xf32, #tpu.memory_space<vmem>>, vector<16x32xf32>,
    %c48_26 = arith.constant 48 : index
    %c0_27 = arith.constant 0 : index
    %59 = vector.load %arg17[%c48_26, %c0_27] : memref<64x32xf32, #tpu.memory_space<vmem>>, vector<16x32xf32>
    tpu.vector_store %arg17[%c48_26, %c0_27], %57 {strides = array<i32>} : memref<64x32xf32, #tpu.memory_space<vmem>>, vector<16x32xf32>,
    %c16 = arith.constant 16 : index
    %c0_28 = arith.constant 0 : index
    %60 = vector.load %arg15[%c16, %c0_28] : memref<64x256xf32, #tpu.memory_space<vmem>>, vector<16x128xf32>
    %cst_29 = arith.constant dense<0.000000e+00> : vector<16x128xf32>
    %61 = tpu.matmul %41, %14, %cst_29 {dimension_numbers = #tpu.dot_dimension_numbers<[1], [0], [0], [1], [0, 0, 1, 1], [], []>} : vector<16x32xf32>, vector<32x128xf32>, vector<16x128xf32> -> vector<16x128xf32>
    %62 = arith.addf %60, %61 : vector<16x128xf32>
    %c32 = arith.constant 32 : index
    %c128_30 = arith.constant 128 : index
    %63 = vector.load %arg15[%c32, %c128_30] : memref<64x256xf32, #tpu.memory_space<vmem>>, vector<16x128xf32>
    %cst_31 = arith.constant dense<0.000000e+00> : vector<16x128xf32>
    %64 = tpu.matmul %57, %15, %cst_31 {dimension_numbers = #tpu.dot_dimension_numbers<[1], [0], [0], [1], [0, 0, 1, 1], [], []>} : vector<16x32xf32>, vector<32x128xf32>, vector<16x128xf32> -> vector<16x128xf32>
    %65 = arith.addf %63, %64 : vector<16x128xf32>
    %66 = vector.extract_strided_slice %62 {offsets = [0, 0], sizes = [16, 96], strides = [1, 1]} : vector<16x128xf32> to vector<16x96xf32>
    %67 = arith.negf %66 : vector<16x96xf32>
    %68 = math.exp %67 : vector<16x96xf32>
    %cst_32 = arith.constant 1.000000e+00 : f32
    %69 = vector.broadcast %cst_32 : f32 to vector<16x96xf32>
    %70 = arith.addf %69, %68 : vector<16x96xf32>
    %71 = arith.divf %69, %70 : vector<16x96xf32>
    %72 = vector.extract_strided_slice %71 {offsets = [0, 0], sizes = [16, 32], strides = [1, 1]} : vector<16x96xf32> to vector<16x32xf32>
    %73 = vector.extract_strided_slice %71 {offsets = [0, 32], sizes = [16, 32], strides = [1, 1]} : vector<16x96xf32> to vector<16x32xf32>
    %74 = vector.extract_strided_slice %71 {offsets = [0, 64], sizes = [16, 32], strides = [1, 1]} : vector<16x96xf32> to vector<16x32xf32>
    %75 = vector.extract_strided_slice %62 {offsets = [0, 96], sizes = [16, 32], strides = [1, 1]} : vector<16x128xf32> to vector<16x32xf32>
    %76 = math.tanh %75 : vector<16x32xf32>
    %77 = arith.mulf %73, %39 : vector<16x32xf32>
    %78 = arith.mulf %72, %76 : vector<16x32xf32>
    %79 = arith.addf %77, %78 : vector<16x32xf32>
    %80 = math.tanh %79 : vector<16x32xf32>
    %81 = arith.mulf %74, %80 : vector<16x32xf32>
    %82 = vector.extract_strided_slice %65 {offsets = [0, 0], sizes = [16, 96], strides = [1, 1]} : vector<16x128xf32> to vector<16x96xf32>
    %83 = arith.negf %82 : vector<16x96xf32>
    %84 = math.exp %83 : vector<16x96xf32>
    %cst_33 = arith.constant 1.000000e+00 : f32
    %85 = vector.broadcast %cst_33 : f32 to vector<16x96xf32>
    %86 = arith.addf %85, %84 : vector<16x96xf32>
    %87 = arith.divf %85, %86 : vector<16x96xf32>
    %88 = vector.extract_strided_slice %87 {offsets = [0, 0], sizes = [16, 32], strides = [1, 1]} : vector<16x96xf32> to vector<16x32xf32>
    %89 = vector.extract_strided_slice %87 {offsets = [0, 32], sizes = [16, 32], strides = [1, 1]} : vector<16x96xf32> to vector<16x32xf32>
    %90 = vector.extract_strided_slice %87 {offsets = [0, 64], sizes = [16, 32], strides = [1, 1]} : vector<16x96xf32> to vector<16x32xf32>
    %91 = vector.extract_strided_slice %65 {offsets = [0, 96], sizes = [16, 32], strides = [1, 1]} : vector<16x128xf32> to vector<16x32xf32>
    %92 = math.tanh %91 : vector<16x32xf32>
    %93 = arith.mulf %89, %55 : vector<16x32xf32>
    %94 = arith.mulf %88, %92 : vector<16x32xf32>
    %95 = arith.addf %93, %94 : vector<16x32xf32>
    %96 = math.tanh %95 : vector<16x32xf32>
    %97 = arith.mulf %90, %96 : vector<16x32xf32>
    %c16_34 = arith.constant 16 : index
    %c0_35 = arith.constant 0 : index
    %98 = vector.load %arg16[%c16_34, %c0_35] : memref<64x32xf32, #tpu.memory_space<vmem>>, vector<16x32xf32>
    tpu.vector_store %arg16[%c16_34, %c0_35], %81 {strides = array<i32>} : memref<64x32xf32, #tpu.memory_space<vmem>>, vector<16x32xf32>,
    %c32_36 = arith.constant 32 : index
    %c0_37 = arith.constant 0 : index
    %99 = vector.load %arg17[%c32_36, %c0_37] : memref<64x32xf32, #tpu.memory_space<vmem>>, vector<16x32xf32>
    tpu.vector_store %arg17[%c32_36, %c0_37], %97 {strides = array<i32>} : memref<64x32xf32, #tpu.memory_space<vmem>>, vector<16x32xf32>,
    %c32_38 = arith.constant 32 : index
    %c0_39 = arith.constant 0 : index
    %100 = vector.load %arg15[%c32_38, %c0_39] : memref<64x256xf32, #tpu.memory_space<vmem>>, vector<16x128xf32>
    %cst_40 = arith.constant dense<0.000000e+00> : vector<16x128xf32>
    %101 = tpu.matmul %81, %14, %cst_40 {dimension_numbers = #tpu.dot_dimension_numbers<[1], [0], [0], [1], [0, 0, 1, 1], [], []>} : vector<16x32xf32>, vector<32x128xf32>, vector<16x128xf32> -> vector<16x128xf32>
    %102 = arith.addf %100, %101 : vector<16x128xf32>
    %c16_41 = arith.constant 16 : index
    %c128_42 = arith.constant 128 : index
    %103 = vector.load %arg15[%c16_41, %c128_42] : memref<64x256xf32, #tpu.memory_space<vmem>>, vector<16x128xf32>
    %cst_43 = arith.constant dense<0.000000e+00> : vector<16x128xf32>
    %104 = tpu.matmul %97, %15, %cst_43 {dimension_numbers = #tpu.dot_dimension_numbers<[1], [0], [0], [1], [0, 0, 1, 1], [], []>} : vector<16x32xf32>, vector<32x128xf32>, vector<16x128xf32> -> vector<16x128xf32>
    %105 = arith.addf %103, %104 : vector<16x128xf32>
    %106 = vector.extract_strided_slice %102 {offsets = [0, 0], sizes = [16, 96], strides = [1, 1]} : vector<16x128xf32> to vector<16x96xf32>
    %107 = arith.negf %106 : vector<16x96xf32>
    %108 = math.exp %107 : vector<16x96xf32>
    %cst_44 = arith.constant 1.000000e+00 : f32
    %109 = vector.broadcast %cst_44 : f32 to vector<16x96xf32>
    %110 = arith.addf %109, %108 : vector<16x96xf32>
    %111 = arith.divf %109, %110 : vector<16x96xf32>
    %112 = vector.extract_strided_slice %111 {offsets = [0, 0], sizes = [16, 32], strides = [1, 1]} : vector<16x96xf32> to vector<16x32xf32>
    %113 = vector.extract_strided_slice %111 {offsets = [0, 32], sizes = [16, 32], strides = [1, 1]} : vector<16x96xf32> to vector<16x32xf32>
    %114 = vector.extract_strided_slice %111 {offsets = [0, 64], sizes = [16, 32], strides = [1, 1]} : vector<16x96xf32> to vector<16x32xf32>
    %115 = vector.extract_strided_slice %102 {offsets = [0, 96], sizes = [16, 32], strides = [1, 1]} : vector<16x128xf32> to vector<16x32xf32>
    %116 = math.tanh %115 : vector<16x32xf32>
    %117 = arith.mulf %113, %79 : vector<16x32xf32>
    %118 = arith.mulf %112, %116 : vector<16x32xf32>
    %119 = arith.addf %117, %118 : vector<16x32xf32>
    %120 = math.tanh %119 : vector<16x32xf32>
    %121 = arith.mulf %114, %120 : vector<16x32xf32>
    %122 = vector.extract_strided_slice %105 {offsets = [0, 0], sizes = [16, 96], strides = [1, 1]} : vector<16x128xf32> to vector<16x96xf32>
    %123 = arith.negf %122 : vector<16x96xf32>
    %124 = math.exp %123 : vector<16x96xf32>
    %cst_45 = arith.constant 1.000000e+00 : f32
    %125 = vector.broadcast %cst_45 : f32 to vector<16x96xf32>
    %126 = arith.addf %125, %124 : vector<16x96xf32>
    %127 = arith.divf %125, %126 : vector<16x96xf32>
    %128 = vector.extract_strided_slice %127 {offsets = [0, 0], sizes = [16, 32], strides = [1, 1]} : vector<16x96xf32> to vector<16x32xf32>
    %129 = vector.extract_strided_slice %127 {offsets = [0, 32], sizes = [16, 32], strides = [1, 1]} : vector<16x96xf32> to vector<16x32xf32>
    %130 = vector.extract_strided_slice %127 {offsets = [0, 64], sizes = [16, 32], strides = [1, 1]} : vector<16x96xf32> to vector<16x32xf32>
    %131 = vector.extract_strided_slice %105 {offsets = [0, 96], sizes = [16, 32], strides = [1, 1]} : vector<16x128xf32> to vector<16x32xf32>
    %132 = math.tanh %131 : vector<16x32xf32>
    %133 = arith.mulf %129, %95 : vector<16x32xf32>
    %134 = arith.mulf %128, %132 : vector<16x32xf32>
    %135 = arith.addf %133, %134 : vector<16x32xf32>
    %136 = math.tanh %135 : vector<16x32xf32>
    %137 = arith.mulf %130, %136 : vector<16x32xf32>
    %c32_46 = arith.constant 32 : index
    %c0_47 = arith.constant 0 : index
    %138 = vector.load %arg16[%c32_46, %c0_47] : memref<64x32xf32, #tpu.memory_space<vmem>>, vector<16x32xf32>
    tpu.vector_store %arg16[%c32_46, %c0_47], %121 {strides = array<i32>} : memref<64x32xf32, #tpu.memory_space<vmem>>, vector<16x32xf32>,
    %c16_48 = arith.constant 16 : index
    %c0_49 = arith.constant 0 : index
    %139 = vector.load %arg17[%c16_48, %c0_49] : memref<64x32xf32, #tpu.memory_space<vmem>>, vector<16x32xf32>
    tpu.vector_store %arg17[%c16_48, %c0_49], %137 {strides = array<i32>} : memref<64x32xf32, #tpu.memory_space<vmem>>, vector<16x32xf32>,
    %c48_50 = arith.constant 48 : index
    %c0_51 = arith.constant 0 : index
    %140 = vector.load %arg15[%c48_50, %c0_51] : memref<64x256xf32, #tpu.memory_space<vmem>>, vector<16x128xf32>
    %cst_52 = arith.constant dense<0.000000e+00> : vector<16x128xf32>
    %141 = tpu.matmul %121, %14, %cst_52 {dimension_numbers = #tpu.dot_dimension_numbers<[1], [0], [0], [1], [0, 0, 1, 1], [], []>} : vector<16x32xf32>, vector<32x128xf32>, vector<16x128xf32> -> vector<16x128xf32>
    %142 = arith.addf %140, %141 : vector<16x128xf32>
    %c0_53 = arith.constant 0 : index
    %c128_54 = arith.constant 128 : index
    %143 = vector.load %arg15[%c0_53, %c128_54] : memref<64x256xf32, #tpu.memory_space<vmem>>, vector<16x128xf32>
    %cst_55 = arith.constant dense<0.000000e+00> : vector<16x128xf32>
    %144 = tpu.matmul %137, %15, %cst_55 {dimension_numbers = #tpu.dot_dimension_numbers<[1], [0], [0], [1], [0, 0, 1, 1], [], []>} : vector<16x32xf32>, vector<32x128xf32>, vector<16x128xf32> -> vector<16x128xf32>
    %145 = arith.addf %143, %144 : vector<16x128xf32>
    %146 = vector.extract_strided_slice %142 {offsets = [0, 0], sizes = [16, 96], strides = [1, 1]} : vector<16x128xf32> to vector<16x96xf32>
    %147 = arith.negf %146 : vector<16x96xf32>
    %148 = math.exp %147 : vector<16x96xf32>
    %cst_56 = arith.constant 1.000000e+00 : f32
    %149 = vector.broadcast %cst_56 : f32 to vector<16x96xf32>
    %150 = arith.addf %149, %148 : vector<16x96xf32>
    %151 = arith.divf %149, %150 : vector<16x96xf32>
    %152 = vector.extract_strided_slice %151 {offsets = [0, 0], sizes = [16, 32], strides = [1, 1]} : vector<16x96xf32> to vector<16x32xf32>
    %153 = vector.extract_strided_slice %151 {offsets = [0, 32], sizes = [16, 32], strides = [1, 1]} : vector<16x96xf32> to vector<16x32xf32>
    %154 = vector.extract_strided_slice %151 {offsets = [0, 64], sizes = [16, 32], strides = [1, 1]} : vector<16x96xf32> to vector<16x32xf32>
    %155 = vector.extract_strided_slice %142 {offsets = [0, 96], sizes = [16, 32], strides = [1, 1]} : vector<16x128xf32> to vector<16x32xf32>
    %156 = math.tanh %155 : vector<16x32xf32>
    %157 = arith.mulf %153, %119 : vector<16x32xf32>
    %158 = arith.mulf %152, %156 : vector<16x32xf32>
    %159 = arith.addf %157, %158 : vector<16x32xf32>
    %160 = math.tanh %159 : vector<16x32xf32>
    %161 = arith.mulf %154, %160 : vector<16x32xf32>
    %162 = vector.extract_strided_slice %145 {offsets = [0, 0], sizes = [16, 96], strides = [1, 1]} : vector<16x128xf32> to vector<16x96xf32>
    %163 = arith.negf %162 : vector<16x96xf32>
    %164 = math.exp %163 : vector<16x96xf32>
    %cst_57 = arith.constant 1.000000e+00 : f32
    %165 = vector.broadcast %cst_57 : f32 to vector<16x96xf32>
    %166 = arith.addf %165, %164 : vector<16x96xf32>
    %167 = arith.divf %165, %166 : vector<16x96xf32>
    %168 = vector.extract_strided_slice %167 {offsets = [0, 0], sizes = [16, 32], strides = [1, 1]} : vector<16x96xf32> to vector<16x32xf32>
    %169 = vector.extract_strided_slice %167 {offsets = [0, 32], sizes = [16, 32], strides = [1, 1]} : vector<16x96xf32> to vector<16x32xf32>
    %170 = vector.extract_strided_slice %167 {offsets = [0, 64], sizes = [16, 32], strides = [1, 1]} : vector<16x96xf32> to vector<16x32xf32>
    %171 = vector.extract_strided_slice %145 {offsets = [0, 96], sizes = [16, 32], strides = [1, 1]} : vector<16x128xf32> to vector<16x32xf32>
    %172 = math.tanh %171 : vector<16x32xf32>
    %173 = arith.mulf %169, %135 : vector<16x32xf32>
    %174 = arith.mulf %168, %172 : vector<16x32xf32>
    %175 = arith.addf %173, %174 : vector<16x32xf32>
    %176 = math.tanh %175 : vector<16x32xf32>
    %177 = arith.mulf %170, %176 : vector<16x32xf32>
    %c48_58 = arith.constant 48 : index
    %c0_59 = arith.constant 0 : index
    %178 = vector.load %arg16[%c48_58, %c0_59] : memref<64x32xf32, #tpu.memory_space<vmem>>, vector<16x32xf32>
    tpu.vector_store %arg16[%c48_58, %c0_59], %161 {strides = array<i32>} : memref<64x32xf32, #tpu.memory_space<vmem>>, vector<16x32xf32>,
    %c0_60 = arith.constant 0 : index
    %c0_61 = arith.constant 0 : index
    %179 = vector.load %arg17[%c0_60, %c0_61] : memref<64x32xf32, #tpu.memory_space<vmem>>, vector<16x32xf32>
    tpu.vector_store %arg17[%c0_60, %c0_61], %177 {strides = array<i32>} : memref<64x32xf32, #tpu.memory_space<vmem>>, vector<16x32xf32>,
    %c0_62 = arith.constant 0 : index
    %c0_63 = arith.constant 0 : index
    %180 = vector.load %arg9[%c0_62, %c0_63] : memref<1x256xf32, #tpu.memory_space<vmem>>, vector<1x256xf32>
    %c0_64 = arith.constant 0 : index
    %c0_65 = arith.constant 0 : index
    %181 = vector.load %arg16[%c0_64, %c0_65] : memref<64x32xf32, #tpu.memory_space<vmem>>, vector<64x32xf32>
    %c0_66 = arith.constant 0 : index
    %c0_67 = arith.constant 0 : index
    %182 = vector.load %arg6[%c0_66, %c0_67] : memref<64x256xf32, #tpu.memory_space<vmem>>, vector<32x256xf32>
    %cst_68 = arith.constant dense<0.000000e+00> : vector<64x256xf32>
    %183 = tpu.matmul %181, %182, %cst_68 {dimension_numbers = #tpu.dot_dimension_numbers<[1], [0], [0], [1], [0, 0, 1, 1], [], []>} : vector<64x32xf32>, vector<32x256xf32>, vector<64x256xf32> -> vector<64x256xf32>
    %c0_69 = arith.constant 0 : index
    %c0_70 = arith.constant 0 : index
    %184 = vector.load %arg17[%c0_69, %c0_70] : memref<64x32xf32, #tpu.memory_space<vmem>>, vector<64x32xf32>
    %c32_71 = arith.constant 32 : index
    %c0_72 = arith.constant 0 : index
    %185 = vector.load %arg6[%c32_71, %c0_72] : memref<64x256xf32, #tpu.memory_space<vmem>>, vector<32x256xf32>
    %cst_73 = arith.constant dense<0.000000e+00> : vector<64x256xf32>
    %186 = tpu.matmul %184, %185, %cst_73 {dimension_numbers = #tpu.dot_dimension_numbers<[1], [0], [0], [1], [0, 0, 1, 1], [], []>} : vector<64x32xf32>, vector<32x256xf32>, vector<64x256xf32> -> vector<64x256xf32>
    %187 = arith.addf %183, %186 : vector<64x256xf32>
    %188 = vector.broadcast %180 : vector<1x256xf32> to vector<64x256xf32>
    %189 = arith.addf %187, %188 : vector<64x256xf32>
    %c0_74 = arith.constant 0 : index
    %c0_75 = arith.constant 0 : index
    %190 = vector.load %arg15[%c0_74, %c0_75] : memref<64x256xf32, #tpu.memory_space<vmem>>, vector<64x256xf32>
    tpu.vector_store %arg15[%c0_74, %c0_75], %189 {strides = array<i32>} : memref<64x256xf32, #tpu.memory_space<vmem>>, vector<64x256xf32>,
    %c0_76 = arith.constant 0 : index
    %c0_77 = arith.constant 0 : index
    %191 = vector.load %arg7[%c0_76, %c0_77] : memref<32x128xf32, #tpu.memory_space<vmem>>, vector<32x128xf32>
    %c0_78 = arith.constant 0 : index
    %c0_79 = arith.constant 0 : index
    %192 = vector.load %arg8[%c0_78, %c0_79] : memref<32x128xf32, #tpu.memory_space<vmem>>, vector<32x128xf32>
    %cst_80 = arith.constant 0.000000e+00 : f32
    %193 = vector.broadcast %cst_80 : f32 to vector<16x32xf32>
    %cst_81 = arith.constant 0.000000e+00 : f32
    %194 = vector.broadcast %cst_81 : f32 to vector<16x32xf32>
    %cst_82 = arith.constant 0.000000e+00 : f32
    %195 = vector.broadcast %cst_82 : f32 to vector<16x32xf32>
    %cst_83 = arith.constant 0.000000e+00 : f32
    %196 = vector.broadcast %cst_83 : f32 to vector<16x32xf32>
    %c0_84 = arith.constant 0 : index
    %c0_85 = arith.constant 0 : index
    %197 = vector.load %arg15[%c0_84, %c0_85] : memref<64x256xf32, #tpu.memory_space<vmem>>, vector<16x128xf32>
    %cst_86 = arith.constant dense<0.000000e+00> : vector<16x128xf32>
    %198 = tpu.matmul %193, %191, %cst_86 {dimension_numbers = #tpu.dot_dimension_numbers<[1], [0], [0], [1], [0, 0, 1, 1], [], []>} : vector<16x32xf32>, vector<32x128xf32>, vector<16x128xf32> -> vector<16x128xf32>
    %199 = arith.addf %197, %198 : vector<16x128xf32>
    %c48_87 = arith.constant 48 : index
    %c128_88 = arith.constant 128 : index
    %200 = vector.load %arg15[%c48_87, %c128_88] : memref<64x256xf32, #tpu.memory_space<vmem>>, vector<16x128xf32>
    %cst_89 = arith.constant dense<0.000000e+00> : vector<16x128xf32>
    %201 = tpu.matmul %195, %192, %cst_89 {dimension_numbers = #tpu.dot_dimension_numbers<[1], [0], [0], [1], [0, 0, 1, 1], [], []>} : vector<16x32xf32>, vector<32x128xf32>, vector<16x128xf32> -> vector<16x128xf32>
    %202 = arith.addf %200, %201 : vector<16x128xf32>
    %203 = vector.extract_strided_slice %199 {offsets = [0, 0], sizes = [16, 96], strides = [1, 1]} : vector<16x128xf32> to vector<16x96xf32>
    %204 = arith.negf %203 : vector<16x96xf32>
    %205 = math.exp %204 : vector<16x96xf32>
    %cst_90 = arith.constant 1.000000e+00 : f32
    %206 = vector.broadcast %cst_90 : f32 to vector<16x96xf32>
    %207 = arith.addf %206, %205 : vector<16x96xf32>
    %208 = arith.divf %206, %207 : vector<16x96xf32>
    %209 = vector.extract_strided_slice %208 {offsets = [0, 0], sizes = [16, 32], strides = [1, 1]} : vector<16x96xf32> to vector<16x32xf32>
    %210 = vector.extract_strided_slice %208 {offsets = [0, 32], sizes = [16, 32], strides = [1, 1]} : vector<16x96xf32> to vector<16x32xf32>
    %211 = vector.extract_strided_slice %208 {offsets = [0, 64], sizes = [16, 32], strides = [1, 1]} : vector<16x96xf32> to vector<16x32xf32>
    %212 = vector.extract_strided_slice %199 {offsets = [0, 96], sizes = [16, 32], strides = [1, 1]} : vector<16x128xf32> to vector<16x32xf32>
    %213 = math.tanh %212 : vector<16x32xf32>
    %214 = arith.mulf %210, %194 : vector<16x32xf32>
    %215 = arith.mulf %209, %213 : vector<16x32xf32>
    %216 = arith.addf %214, %215 : vector<16x32xf32>
    %217 = math.tanh %216 : vector<16x32xf32>
    %218 = arith.mulf %211, %217 : vector<16x32xf32>
    %219 = vector.extract_strided_slice %202 {offsets = [0, 0], sizes = [16, 96], strides = [1, 1]} : vector<16x128xf32> to vector<16x96xf32>
    %220 = arith.negf %219 : vector<16x96xf32>
    %221 = math.exp %220 : vector<16x96xf32>
    %cst_91 = arith.constant 1.000000e+00 : f32
    %222 = vector.broadcast %cst_91 : f32 to vector<16x96xf32>
    %223 = arith.addf %222, %221 : vector<16x96xf32>
    %224 = arith.divf %222, %223 : vector<16x96xf32>
    %225 = vector.extract_strided_slice %224 {offsets = [0, 0], sizes = [16, 32], strides = [1, 1]} : vector<16x96xf32> to vector<16x32xf32>
    %226 = vector.extract_strided_slice %224 {offsets = [0, 32], sizes = [16, 32], strides = [1, 1]} : vector<16x96xf32> to vector<16x32xf32>
    %227 = vector.extract_strided_slice %224 {offsets = [0, 64], sizes = [16, 32], strides = [1, 1]} : vector<16x96xf32> to vector<16x32xf32>
    %228 = vector.extract_strided_slice %202 {offsets = [0, 96], sizes = [16, 32], strides = [1, 1]} : vector<16x128xf32> to vector<16x32xf32>
    %229 = math.tanh %228 : vector<16x32xf32>
    %230 = arith.mulf %226, %196 : vector<16x32xf32>
    %231 = arith.mulf %225, %229 : vector<16x32xf32>
    %232 = arith.addf %230, %231 : vector<16x32xf32>
    %233 = math.tanh %232 : vector<16x32xf32>
    %234 = arith.mulf %227, %233 : vector<16x32xf32>
    %c0_92 = arith.constant 0 : index
    %c0_93 = arith.constant 0 : index
    %235 = vector.load %arg16[%c0_92, %c0_93] : memref<64x32xf32, #tpu.memory_space<vmem>>, vector<16x32xf32>
    tpu.vector_store %arg16[%c0_92, %c0_93], %218 {strides = array<i32>} : memref<64x32xf32, #tpu.memory_space<vmem>>, vector<16x32xf32>,
    %c48_94 = arith.constant 48 : index
    %c0_95 = arith.constant 0 : index
    %236 = vector.load %arg17[%c48_94, %c0_95] : memref<64x32xf32, #tpu.memory_space<vmem>>, vector<16x32xf32>
    tpu.vector_store %arg17[%c48_94, %c0_95], %234 {strides = array<i32>} : memref<64x32xf32, #tpu.memory_space<vmem>>, vector<16x32xf32>,
    %c16_96 = arith.constant 16 : index
    %c0_97 = arith.constant 0 : index
    %237 = vector.load %arg15[%c16_96, %c0_97] : memref<64x256xf32, #tpu.memory_space<vmem>>, vector<16x128xf32>
    %cst_98 = arith.constant dense<0.000000e+00> : vector<16x128xf32>
    %238 = tpu.matmul %218, %191, %cst_98 {dimension_numbers = #tpu.dot_dimension_numbers<[1], [0], [0], [1], [0, 0, 1, 1], [], []>} : vector<16x32xf32>, vector<32x128xf32>, vector<16x128xf32> -> vector<16x128xf32>
    %239 = arith.addf %237, %238 : vector<16x128xf32>
    %c32_99 = arith.constant 32 : index
    %c128_100 = arith.constant 128 : index
    %240 = vector.load %arg15[%c32_99, %c128_100] : memref<64x256xf32, #tpu.memory_space<vmem>>, vector<16x128xf32>
    %cst_101 = arith.constant dense<0.000000e+00> : vector<16x128xf32>
    %241 = tpu.matmul %234, %192, %cst_101 {dimension_numbers = #tpu.dot_dimension_numbers<[1], [0], [0], [1], [0, 0, 1, 1], [], []>} : vector<16x32xf32>, vector<32x128xf32>, vector<16x128xf32> -> vector<16x128xf32>
    %242 = arith.addf %240, %241 : vector<16x128xf32>
    %243 = vector.extract_strided_slice %239 {offsets = [0, 0], sizes = [16, 96], strides = [1, 1]} : vector<16x128xf32> to vector<16x96xf32>
    %244 = arith.negf %243 : vector<16x96xf32>
    %245 = math.exp %244 : vector<16x96xf32>
    %cst_102 = arith.constant 1.000000e+00 : f32
    %246 = vector.broadcast %cst_102 : f32 to vector<16x96xf32>
    %247 = arith.addf %246, %245 : vector<16x96xf32>
    %248 = arith.divf %246, %247 : vector<16x96xf32>
    %249 = vector.extract_strided_slice %248 {offsets = [0, 0], sizes = [16, 32], strides = [1, 1]} : vector<16x96xf32> to vector<16x32xf32>
    %250 = vector.extract_strided_slice %248 {offsets = [0, 32], sizes = [16, 32], strides = [1, 1]} : vector<16x96xf32> to vector<16x32xf32>
    %251 = vector.extract_strided_slice %248 {offsets = [0, 64], sizes = [16, 32], strides = [1, 1]} : vector<16x96xf32> to vector<16x32xf32>
    %252 = vector.extract_strided_slice %239 {offsets = [0, 96], sizes = [16, 32], strides = [1, 1]} : vector<16x128xf32> to vector<16x32xf32>
    %253 = math.tanh %252 : vector<16x32xf32>
    %254 = arith.mulf %250, %216 : vector<16x32xf32>
    %255 = arith.mulf %249, %253 : vector<16x32xf32>
    %256 = arith.addf %254, %255 : vector<16x32xf32>
    %257 = math.tanh %256 : vector<16x32xf32>
    %258 = arith.mulf %251, %257 : vector<16x32xf32>
    %259 = vector.extract_strided_slice %242 {offsets = [0, 0], sizes = [16, 96], strides = [1, 1]} : vector<16x128xf32> to vector<16x96xf32>
    %260 = arith.negf %259 : vector<16x96xf32>
    %261 = math.exp %260 : vector<16x96xf32>
    %cst_103 = arith.constant 1.000000e+00 : f32
    %262 = vector.broadcast %cst_103 : f32 to vector<16x96xf32>
    %263 = arith.addf %262, %261 : vector<16x96xf32>
    %264 = arith.divf %262, %263 : vector<16x96xf32>
    %265 = vector.extract_strided_slice %264 {offsets = [0, 0], sizes = [16, 32], strides = [1, 1]} : vector<16x96xf32> to vector<16x32xf32>
    %266 = vector.extract_strided_slice %264 {offsets = [0, 32], sizes = [16, 32], strides = [1, 1]} : vector<16x96xf32> to vector<16x32xf32>
    %267 = vector.extract_strided_slice %264 {offsets = [0, 64], sizes = [16, 32], strides = [1, 1]} : vector<16x96xf32> to vector<16x32xf32>
    %268 = vector.extract_strided_slice %242 {offsets = [0, 96], sizes = [16, 32], strides = [1, 1]} : vector<16x128xf32> to vector<16x32xf32>
    %269 = math.tanh %268 : vector<16x32xf32>
    %270 = arith.mulf %266, %232 : vector<16x32xf32>
    %271 = arith.mulf %265, %269 : vector<16x32xf32>
    %272 = arith.addf %270, %271 : vector<16x32xf32>
    %273 = math.tanh %272 : vector<16x32xf32>
    %274 = arith.mulf %267, %273 : vector<16x32xf32>
    %c16_104 = arith.constant 16 : index
    %c0_105 = arith.constant 0 : index
    %275 = vector.load %arg16[%c16_104, %c0_105] : memref<64x32xf32, #tpu.memory_space<vmem>>, vector<16x32xf32>
    tpu.vector_store %arg16[%c16_104, %c0_105], %258 {strides = array<i32>} : memref<64x32xf32, #tpu.memory_space<vmem>>, vector<16x32xf32>,
    %c32_106 = arith.constant 32 : index
    %c0_107 = arith.constant 0 : index
    %276 = vector.load %arg17[%c32_106, %c0_107] : memref<64x32xf32, #tpu.memory_space<vmem>>, vector<16x32xf32>
    tpu.vector_store %arg17[%c32_106, %c0_107], %274 {strides = array<i32>} : memref<64x32xf32, #tpu.memory_space<vmem>>, vector<16x32xf32>,
    %c32_108 = arith.constant 32 : index
    %c0_109 = arith.constant 0 : index
    %277 = vector.load %arg15[%c32_108, %c0_109] : memref<64x256xf32, #tpu.memory_space<vmem>>, vector<16x128xf32>
    %cst_110 = arith.constant dense<0.000000e+00> : vector<16x128xf32>
    %278 = tpu.matmul %258, %191, %cst_110 {dimension_numbers = #tpu.dot_dimension_numbers<[1], [0], [0], [1], [0, 0, 1, 1], [], []>} : vector<16x32xf32>, vector<32x128xf32>, vector<16x128xf32> -> vector<16x128xf32>
    %279 = arith.addf %277, %278 : vector<16x128xf32>
    %c16_111 = arith.constant 16 : index
    %c128_112 = arith.constant 128 : index
    %280 = vector.load %arg15[%c16_111, %c128_112] : memref<64x256xf32, #tpu.memory_space<vmem>>, vector<16x128xf32>
    %cst_113 = arith.constant dense<0.000000e+00> : vector<16x128xf32>
    %281 = tpu.matmul %274, %192, %cst_113 {dimension_numbers = #tpu.dot_dimension_numbers<[1], [0], [0], [1], [0, 0, 1, 1], [], []>} : vector<16x32xf32>, vector<32x128xf32>, vector<16x128xf32> -> vector<16x128xf32>
    %282 = arith.addf %280, %281 : vector<16x128xf32>
    %283 = vector.extract_strided_slice %279 {offsets = [0, 0], sizes = [16, 96], strides = [1, 1]} : vector<16x128xf32> to vector<16x96xf32>
    %284 = arith.negf %283 : vector<16x96xf32>
    %285 = math.exp %284 : vector<16x96xf32>
    %cst_114 = arith.constant 1.000000e+00 : f32
    %286 = vector.broadcast %cst_114 : f32 to vector<16x96xf32>
    %287 = arith.addf %286, %285 : vector<16x96xf32>
    %288 = arith.divf %286, %287 : vector<16x96xf32>
    %289 = vector.extract_strided_slice %288 {offsets = [0, 0], sizes = [16, 32], strides = [1, 1]} : vector<16x96xf32> to vector<16x32xf32>
    %290 = vector.extract_strided_slice %288 {offsets = [0, 32], sizes = [16, 32], strides = [1, 1]} : vector<16x96xf32> to vector<16x32xf32>
    %291 = vector.extract_strided_slice %288 {offsets = [0, 64], sizes = [16, 32], strides = [1, 1]} : vector<16x96xf32> to vector<16x32xf32>
    %292 = vector.extract_strided_slice %279 {offsets = [0, 96], sizes = [16, 32], strides = [1, 1]} : vector<16x128xf32> to vector<16x32xf32>
    %293 = math.tanh %292 : vector<16x32xf32>
    %294 = arith.mulf %290, %256 : vector<16x32xf32>
    %295 = arith.mulf %289, %293 : vector<16x32xf32>
    %296 = arith.addf %294, %295 : vector<16x32xf32>
    %297 = math.tanh %296 : vector<16x32xf32>
    %298 = arith.mulf %291, %297 : vector<16x32xf32>
    %299 = vector.extract_strided_slice %282 {offsets = [0, 0], sizes = [16, 96], strides = [1, 1]} : vector<16x128xf32> to vector<16x96xf32>
    %300 = arith.negf %299 : vector<16x96xf32>
    %301 = math.exp %300 : vector<16x96xf32>
    %cst_115 = arith.constant 1.000000e+00 : f32
    %302 = vector.broadcast %cst_115 : f32 to vector<16x96xf32>
    %303 = arith.addf %302, %301 : vector<16x96xf32>
    %304 = arith.divf %302, %303 : vector<16x96xf32>
    %305 = vector.extract_strided_slice %304 {offsets = [0, 0], sizes = [16, 32], strides = [1, 1]} : vector<16x96xf32> to vector<16x32xf32>
    %306 = vector.extract_strided_slice %304 {offsets = [0, 32], sizes = [16, 32], strides = [1, 1]} : vector<16x96xf32> to vector<16x32xf32>
    %307 = vector.extract_strided_slice %304 {offsets = [0, 64], sizes = [16, 32], strides = [1, 1]} : vector<16x96xf32> to vector<16x32xf32>
    %308 = vector.extract_strided_slice %282 {offsets = [0, 96], sizes = [16, 32], strides = [1, 1]} : vector<16x128xf32> to vector<16x32xf32>
    %309 = math.tanh %308 : vector<16x32xf32>
    %310 = arith.mulf %306, %272 : vector<16x32xf32>
    %311 = arith.mulf %305, %309 : vector<16x32xf32>
    %312 = arith.addf %310, %311 : vector<16x32xf32>
    %313 = math.tanh %312 : vector<16x32xf32>
    %314 = arith.mulf %307, %313 : vector<16x32xf32>
    %c32_116 = arith.constant 32 : index
    %c0_117 = arith.constant 0 : index
    %315 = vector.load %arg16[%c32_116, %c0_117] : memref<64x32xf32, #tpu.memory_space<vmem>>, vector<16x32xf32>
    tpu.vector_store %arg16[%c32_116, %c0_117], %298 {strides = array<i32>} : memref<64x32xf32, #tpu.memory_space<vmem>>, vector<16x32xf32>,
    %c16_118 = arith.constant 16 : index
    %c0_119 = arith.constant 0 : index
    %316 = vector.load %arg17[%c16_118, %c0_119] : memref<64x32xf32, #tpu.memory_space<vmem>>, vector<16x32xf32>
    tpu.vector_store %arg17[%c16_118, %c0_119], %314 {strides = array<i32>} : memref<64x32xf32, #tpu.memory_space<vmem>>, vector<16x32xf32>,
    %c48_120 = arith.constant 48 : index
    %c0_121 = arith.constant 0 : index
    %317 = vector.load %arg15[%c48_120, %c0_121] : memref<64x256xf32, #tpu.memory_space<vmem>>, vector<16x128xf32>
    %cst_122 = arith.constant dense<0.000000e+00> : vector<16x128xf32>
    %318 = tpu.matmul %298, %191, %cst_122 {dimension_numbers = #tpu.dot_dimension_numbers<[1], [0], [0], [1], [0, 0, 1, 1], [], []>} : vector<16x32xf32>, vector<32x128xf32>, vector<16x128xf32> -> vector<16x128xf32>
    %319 = arith.addf %317, %318 : vector<16x128xf32>
    %c0_123 = arith.constant 0 : index
    %c128_124 = arith.constant 128 : index
    %320 = vector.load %arg15[%c0_123, %c128_124] : memref<64x256xf32, #tpu.memory_space<vmem>>, vector<16x128xf32>
    %cst_125 = arith.constant dense<0.000000e+00> : vector<16x128xf32>
    %321 = tpu.matmul %314, %192, %cst_125 {dimension_numbers = #tpu.dot_dimension_numbers<[1], [0], [0], [1], [0, 0, 1, 1], [], []>} : vector<16x32xf32>, vector<32x128xf32>, vector<16x128xf32> -> vector<16x128xf32>
    %322 = arith.addf %320, %321 : vector<16x128xf32>
    %323 = vector.extract_strided_slice %319 {offsets = [0, 0], sizes = [16, 96], strides = [1, 1]} : vector<16x128xf32> to vector<16x96xf32>
    %324 = arith.negf %323 : vector<16x96xf32>
    %325 = math.exp %324 : vector<16x96xf32>
    %cst_126 = arith.constant 1.000000e+00 : f32
    %326 = vector.broadcast %cst_126 : f32 to vector<16x96xf32>
    %327 = arith.addf %326, %325 : vector<16x96xf32>
    %328 = arith.divf %326, %327 : vector<16x96xf32>
    %329 = vector.extract_strided_slice %328 {offsets = [0, 0], sizes = [16, 32], strides = [1, 1]} : vector<16x96xf32> to vector<16x32xf32>
    %330 = vector.extract_strided_slice %328 {offsets = [0, 32], sizes = [16, 32], strides = [1, 1]} : vector<16x96xf32> to vector<16x32xf32>
    %331 = vector.extract_strided_slice %328 {offsets = [0, 64], sizes = [16, 32], strides = [1, 1]} : vector<16x96xf32> to vector<16x32xf32>
    %332 = vector.extract_strided_slice %319 {offsets = [0, 96], sizes = [16, 32], strides = [1, 1]} : vector<16x128xf32> to vector<16x32xf32>
    %333 = math.tanh %332 : vector<16x32xf32>
    %334 = arith.mulf %330, %296 : vector<16x32xf32>
    %335 = arith.mulf %329, %333 : vector<16x32xf32>
    %336 = arith.addf %334, %335 : vector<16x32xf32>
    %337 = math.tanh %336 : vector<16x32xf32>
    %338 = arith.mulf %331, %337 : vector<16x32xf32>
    %339 = vector.extract_strided_slice %322 {offsets = [0, 0], sizes = [16, 96], strides = [1, 1]} : vector<16x128xf32> to vector<16x96xf32>
    %340 = arith.negf %339 : vector<16x96xf32>
    %341 = math.exp %340 : vector<16x96xf32>
    %cst_127 = arith.constant 1.000000e+00 : f32
    %342 = vector.broadcast %cst_127 : f32 to vector<16x96xf32>
    %343 = arith.addf %342, %341 : vector<16x96xf32>
    %344 = arith.divf %342, %343 : vector<16x96xf32>
    %345 = vector.extract_strided_slice %344 {offsets = [0, 0], sizes = [16, 32], strides = [1, 1]} : vector<16x96xf32> to vector<16x32xf32>
    %346 = vector.extract_strided_slice %344 {offsets = [0, 32], sizes = [16, 32], strides = [1, 1]} : vector<16x96xf32> to vector<16x32xf32>
    %347 = vector.extract_strided_slice %344 {offsets = [0, 64], sizes = [16, 32], strides = [1, 1]} : vector<16x96xf32> to vector<16x32xf32>
    %348 = vector.extract_strided_slice %322 {offsets = [0, 96], sizes = [16, 32], strides = [1, 1]} : vector<16x128xf32> to vector<16x32xf32>
    %349 = math.tanh %348 : vector<16x32xf32>
    %350 = arith.mulf %346, %312 : vector<16x32xf32>
    %351 = arith.mulf %345, %349 : vector<16x32xf32>
    %352 = arith.addf %350, %351 : vector<16x32xf32>
    %353 = math.tanh %352 : vector<16x32xf32>
    %354 = arith.mulf %347, %353 : vector<16x32xf32>
    %c48_128 = arith.constant 48 : index
    %c0_129 = arith.constant 0 : index
    %355 = vector.load %arg16[%c48_128, %c0_129] : memref<64x32xf32, #tpu.memory_space<vmem>>, vector<16x32xf32>
    tpu.vector_store %arg16[%c48_128, %c0_129], %338 {strides = array<i32>} : memref<64x32xf32, #tpu.memory_space<vmem>>, vector<16x32xf32>,
    %c0_130 = arith.constant 0 : index
    %c0_131 = arith.constant 0 : index
    %356 = vector.load %arg17[%c0_130, %c0_131] : memref<64x32xf32, #tpu.memory_space<vmem>>, vector<16x32xf32>
    tpu.vector_store %arg17[%c0_130, %c0_131], %354 {strides = array<i32>} : memref<64x32xf32, #tpu.memory_space<vmem>>, vector<16x32xf32>,
    %c0_132 = arith.constant 0 : index
    %c0_133 = arith.constant 0 : index
    %357 = tpu.strided_load %arg16[%c0_132, %c0_133] {strides = array<i32: 16, 1>} : memref<64x32xf32, #tpu.memory_space<vmem>>, vector<4x32xf32>
    %c0_134 = arith.constant 0 : index
    %c0_135 = arith.constant 0 : index
    %358 = tpu.strided_load %arg17[%c0_134, %c0_135] {strides = array<i32: 16, 1>} : memref<64x32xf32, #tpu.memory_space<vmem>>, vector<4x32xf32>
    %c0_136 = arith.constant 0 : index
    %c0_137 = arith.constant 0 : index
    %359 = vector.load %arg10[%c0_136, %c0_137] : memref<64x64xf32, #tpu.memory_space<vmem>>, vector<32x64xf32>
    %cst_138 = arith.constant dense<0.000000e+00> : vector<4x64xf32>
    %360 = tpu.matmul %357, %359, %cst_138 {dimension_numbers = #tpu.dot_dimension_numbers<[1], [0], [0], [1], [0, 0, 1, 1], [], []>} : vector<4x32xf32>, vector<32x64xf32>, vector<4x64xf32> -> vector<4x64xf32>
    %c32_139 = arith.constant 32 : index
    %c0_140 = arith.constant 0 : index
    %361 = vector.load %arg10[%c32_139, %c0_140] : memref<64x64xf32, #tpu.memory_space<vmem>>, vector<32x64xf32>
    %cst_141 = arith.constant dense<0.000000e+00> : vector<4x64xf32>
    %362 = tpu.matmul %358, %361, %cst_141 {dimension_numbers = #tpu.dot_dimension_numbers<[1], [0], [0], [1], [0, 0, 1, 1], [], []>} : vector<4x32xf32>, vector<32x64xf32>, vector<4x64xf32> -> vector<4x64xf32>
    %363 = arith.addf %360, %362 : vector<4x64xf32>
    %c0_142 = arith.constant 0 : index
    %c0_143 = arith.constant 0 : index
    %364 = vector.load %arg11[%c0_142, %c0_143] : memref<1x64xf32, #tpu.memory_space<vmem>>, vector<1x64xf32>
    %365 = vector.broadcast %364 : vector<1x64xf32> to vector<4x64xf32>
    %366 = arith.addf %363, %365 : vector<4x64xf32>
    %367 = math.tanh %366 : vector<4x64xf32>
    %c0_144 = arith.constant 0 : index
    %c0_145 = arith.constant 0 : index
    %368 = vector.load %arg12[%c0_144, %c0_145] : memref<64x2xf32, #tpu.memory_space<vmem>>, vector<64x2xf32>
    %cst_146 = arith.constant dense<0.000000e+00> : vector<4x2xf32>
    %369 = tpu.matmul %367, %368, %cst_146 {dimension_numbers = #tpu.dot_dimension_numbers<[1], [0], [0], [1], [0, 0, 1, 1], [], []>} : vector<4x64xf32>, vector<64x2xf32>, vector<4x2xf32> -> vector<4x2xf32>
    %c0_147 = arith.constant 0 : index
    %c0_148 = arith.constant 0 : index
    %370 = vector.load %arg13[%c0_147, %c0_148] : memref<1x2xf32, #tpu.memory_space<vmem>>, vector<1x2xf32>
    %371 = vector.broadcast %370 : vector<1x2xf32> to vector<4x2xf32>
    %372 = arith.addf %369, %371 : vector<4x2xf32>
    %c0_149 = arith.constant 0 : index
    %c0_150 = arith.constant 0 : index
    %373 = vector.load %arg14[%c0_149, %c0_150] : memref<4x2xf32, #tpu.memory_space<vmem>>, vector<4x2xf32>
    tpu.vector_store %arg14[%c0_149, %c0_150], %372 {strides = array<i32>} : memref<4x2xf32, #tpu.memory_space<vmem>>, vector<4x2xf32>,
    return
  }
}

</mosaic_0001>

<llo_original>
// kernel: tpu_custom_call.1
$region0: #{tpu_custom_call.1}
  #allocation0 [shape = 'u32[]', space=smem, size = 0x4, offset = 0x4, fixed_abs, tag = 'smem constant byte address 0x4 - core index']
  #allocation1 [shape = 'u32[72,128]{1,0:T(1,128)}', space=vmem, size = 0x9000, scoped, tag = 'internal scratch']
  #allocation2 [shape = 'f32[64,256]{1,0:T(8,128)}', space=vmem, size = 0x10000, scoped, tag = 'scratch operand']
  #allocation3 [shape = 'f32[64,32]{1,0:T(8,128)}', space=vmem, size = 0x8000, scoped, tag = 'scratch operand']
  #allocation4 [shape = 'f32[64,32]{1,0:T(8,128)}', space=vmem, size = 0x8000, scoped, tag = 'scratch operand']
  %s0 = inlined_call_operand.vmem [shape: s32[64,1], index: 0, kind: input, shape index: {}]
  %s1 = inlined_call_operand.hbm [shape: f32[21,32], index: 1, kind: input, shape index: {}]
  %s2 = inlined_call_operand.hbm [shape: f32[32,256], index: 2, kind: input, shape index: {}]
  %s3 = inlined_call_operand.hbm [shape: f32[32,128], index: 3, kind: input, shape index: {}]
  %s4 = inlined_call_operand.hbm [shape: f32[32,128], index: 4, kind: input, shape index: {}]
  %s5 = inlined_call_operand.vmem [shape: f32[1,256], index: 5, kind: input, shape index: {}]
  %s6 = inlined_call_operand.vmem [shape: f32[64,256], index: 6, kind: input, shape index: {}]
  %s7 = inlined_call_operand.hbm [shape: f32[32,128], index: 7, kind: input, shape index: {}]
  %s8 = inlined_call_operand.hbm [shape: f32[32,128], index: 8, kind: input, shape index: {}]
  %s9 = inlined_call_operand.vmem [shape: f32[1,256], index: 9, kind: input, shape index: {}]
  %s10 = inlined_call_operand.hbm [shape: f32[64,64], index: 10, kind: input, shape index: {}]
  %s11 = inlined_call_operand.vmem [shape: f32[1,64], index: 11, kind: input, shape index: {}]
  %s12 = inlined_call_operand.vmem [shape: f32[64,2], index: 12, kind: input, shape index: {}]
  %s13 = inlined_call_operand.vmem [shape: f32[1,2], index: 13, kind: input, shape index: {}]
  %s14 = inlined_call_operand.vmem [shape: f32[4,2], index: 14, kind: output, shape index: {}]
  %s15 = sld [smem:[#allocation0]]
  $region94: #{tpu_custom_call.1} parent=0
    _
  %s17 = ssub.s32 1, %s15
  %s18 = scalar_select 0, %s17, %s15
  $region1: #{tpu_custom_call.1} parent=0
    #allocation5 [shape = 'u8[12288]{0}', space=vmem, size = 0x3000, scoped, tag = 'input window, operand 1, single buffered']
    #allocation6 [shape = 's32[1]{0}', space=sflag, size = 0x4, scoped, tag = 'scoped memory for tpu_custom_call.1']
    #allocation7 [shape = 'u8[32768]{0}', space=vmem, size = 0x8000, scoped, tag = 'input window, operand 2, single buffered']
    #allocation8 [shape = 's32[1]{0}', space=sflag, size = 0x4, scoped, tag = 'scoped memory for tpu_custom_call.1']
    #allocation9 [shape = 'u8[16384]{0}', space=vmem, size = 0x4000, scoped, tag = 'input window, operand 3, single buffered']
    #allocation10 [shape = 'u8[16384]{0}', space=vmem, size = 0x4000, scoped, tag = 'input window, operand 4, single buffered']
    #allocation11 [shape = 's32[1]{0}', space=sflag, size = 0x4, scoped, tag = 'scoped memory for tpu_custom_call.1']
    #allocation12 [shape = 'u8[16384]{0}', space=vmem, size = 0x4000, scoped, tag = 'input window, operand 7, single buffered']
    #allocation13 [shape = 'u8[16384]{0}', space=vmem, size = 0x4000, scoped, tag = 'input window, operand 8, single buffered']
    #allocation14 [shape = 's32[1]{0}', space=sflag, size = 0x4, scoped, tag = 'scoped memory for tpu_custom_call.1']
    #allocation15 [shape = 'u8[32768]{0}', space=vmem, size = 0x8000, scoped, tag = 'input window, operand 10, single buffered']
    %19 = vsyncpa [#allocation6], 0
    %20 = vsyncpa [#allocation8], 0
    %21 = vsyncpa [#allocation11], 0
    %22 = vsyncpa [#allocation14], 0
    // Predicated region
    $region2: #{tpu_custom_call.1} parent=1 // pred_check
      _
    $region3: #{tpu_custom_call.1} parent=1 // pred_check_branch
      %24 = sbr.rel (0) target = $region5
    $region4: #{tpu_custom_call.1} parent=1 // pred_region
      _
    $region5: #{tpu_custom_call.1} parent=1 // pred_fallthru
      _
    // Predicated region
    $region6: #{tpu_custom_call.1} parent=1 // pred_check
      _
    $region7: #{tpu_custom_call.1} parent=1 // pred_check_branch
      %26 = sbr.rel (0) target = $region9
    $region8: #{tpu_custom_call.1} parent=1 // pred_region
      %28 = vsyncadd [#allocation6], 0
      %s29 = sshll.u32 %s1, 4
      %s30 = int_to_ptr.hbm [resolvable:$true] %s29
      %s31 = sshll.u32 [#allocation5], 4
      %s32 = int_to_ptr.vmem [resolvable:$true] %s31
      %37 = dma.hbm_to_vmem [thread:$0]  %s30, 384, %s32, [#allocation6], 128, 128, 8
    $region9: #{tpu_custom_call.1} parent=1 // pred_fallthru
      _
    // Predicated region
    $region10: #{tpu_custom_call.1} parent=1 // pred_check
      _
    $region11: #{tpu_custom_call.1} parent=1 // pred_check_branch
      %39 = sbr.rel (0) target = $region13
    $region12: #{tpu_custom_call.1} parent=1 // pred_region
      %41 = vsyncadd [#allocation8], 0
      %s42 = sshll.u32 %s2, 4
      %s43 = int_to_ptr.hbm [resolvable:$true] %s42
      %s44 = sshll.u32 [#allocation7], 4
      %s45 = int_to_ptr.vmem [resolvable:$true] %s44
      %50 = dma.hbm_to_vmem [thread:$0]  %s43, 1024, %s45, [#allocation8], 256, 256, 16
    $region13: #{tpu_custom_call.1} parent=1 // pred_fallthru
      _
    // Predicated region
    $region14: #{tpu_custom_call.1} parent=1 // pred_check
      _
    $region15: #{tpu_custom_call.1} parent=1 // pred_check_branch
      %52 = sbr.rel (0) target = $region17
    $region16: #{tpu_custom_call.1} parent=1 // pred_region
      %54 = vsyncadd [#allocation8], 0
      %s55 = sshll.u32 %s3, 4
      %s56 = int_to_ptr.hbm [resolvable:$true] %s55
      %s57 = sshll.u32 [#allocation9], 4
      %s58 = int_to_ptr.vmem [resolvable:$true] %s57
      %63 = dma.hbm_to_vmem [thread:$0]  %s56, 512, %s58, [#allocation8], 128, 128, 8
    $region17: #{tpu_custom_call.1} parent=1 // pred_fallthru
      _
    // Predicated region
    $region18: #{tpu_custom_call.1} parent=1 // pred_check
      _
    $region19: #{tpu_custom_call.1} parent=1 // pred_check_branch
      %65 = sbr.rel (0) target = $region21
    $region20: #{tpu_custom_call.1} parent=1 // pred_region
      %67 = vsyncadd [#allocation11], 0
      %s68 = sshll.u32 %s4, 4
      %s69 = int_to_ptr.hbm [resolvable:$true] %s68
      %s70 = sshll.u32 [#allocation10], 4
      %s71 = int_to_ptr.vmem [resolvable:$true] %s70
      %76 = dma.hbm_to_vmem [thread:$0]  %s69, 512, %s71, [#allocation11], 128, 128, 8
    $region21: #{tpu_custom_call.1} parent=1 // pred_fallthru
      _
    // Predicated region
    $region22: #{tpu_custom_call.1} parent=1 // pred_check
      _
    $region23: #{tpu_custom_call.1} parent=1 // pred_check_branch
      %78 = sbr.rel (0) target = $region25
    $region24: #{tpu_custom_call.1} parent=1 // pred_region
      _
    $region25: #{tpu_custom_call.1} parent=1 // pred_fallthru
      _
    // Predicated region
    $region26: #{tpu_custom_call.1} parent=1 // pred_check
      _
    $region27: #{tpu_custom_call.1} parent=1 // pred_check_branch
      %80 = sbr.rel (0) target = $region29
    $region28: #{tpu_custom_call.1} parent=1 // pred_region
      _
    $region29: #{tpu_custom_call.1} parent=1 // pred_fallthru
      _
    // Predicated region
    $region30: #{tpu_custom_call.1} parent=1 // pred_check
      _
    $region31: #{tpu_custom_call.1} parent=1 // pred_check_branch
      %82 = sbr.rel (0) target = $region33
    $region32: #{tpu_custom_call.1} parent=1 // pred_region
      %84 = vsyncadd [#allocation11], 0
      %s85 = sshll.u32 %s7, 4
      %s86 = int_to_ptr.hbm [resolvable:$true] %s85
      %s87 = sshll.u32 [#allocation12], 4
      %s88 = int_to_ptr.vmem [resolvable:$true] %s87
      %93 = dma.hbm_to_vmem [thread:$0]  %s86, 512, %s88, [#allocation11], 128, 128, 8
    $region33: #{tpu_custom_call.1} parent=1 // pred_fallthru
      _
    // Predicated region
    $region34: #{tpu_custom_call.1} parent=1 // pred_check
      _
    $region35: #{tpu_custom_call.1} parent=1 // pred_check_branch
      %95 = sbr.rel (0) target = $region37
    $region36: #{tpu_custom_call.1} parent=1 // pred_region
      %97 = vsyncadd [#allocation14], 0
      %s98 = sshll.u32 %s8, 4
      %s99 = int_to_ptr.hbm [resolvable:$true] %s98
      %s100 = sshll.u32 [#allocation13], 4
      %s101 = int_to_ptr.vmem [resolvable:$true] %s100
      %106 = dma.hbm_to_vmem [thread:$0]  %s99, 512, %s101, [#allocation14], 128, 128, 8
    $region37: #{tpu_custom_call.1} parent=1 // pred_fallthru
      _
    // Predicated region
    $region38: #{tpu_custom_call.1} parent=1 // pred_check
      _
    $region39: #{tpu_custom_call.1} parent=1 // pred_check_branch
      %108 = sbr.rel (0) target = $region41
    $region40: #{tpu_custom_call.1} parent=1 // pred_region
      _
    $region41: #{tpu_custom_call.1} parent=1 // pred_fallthru
      _
    // Predicated region
    $region42: #{tpu_custom_call.1} parent=1 // pred_check
      _
    $region43: #{tpu_custom_call.1} parent=1 // pred_check_branch
      %110 = sbr.rel (0) target = $region45
    $region44: #{tpu_custom_call.1} parent=1 // pred_region
      %112 = vsyncadd [#allocation14], 0
      %s113 = sshll.u32 %s10, 4
      %s114 = int_to_ptr.hbm [resolvable:$true] %s113
      %s115 = sshll.u32 [#allocation15], 4
      %s116 = int_to_ptr.vmem [resolvable:$true] %s115
      %121 = dma.hbm_to_vmem [thread:$0]  %s114, 1024, %s116, [#allocation14], 128, 128, 8
    $region45: #{tpu_custom_call.1} parent=1 // pred_fallthru
      _
    // Predicated region
    $region46: #{tpu_custom_call.1} parent=1 // pred_check
      _
    $region47: #{tpu_custom_call.1} parent=1 // pred_check_branch
      %123 = sbr.rel (0) target = $region49
    $region48: #{tpu_custom_call.1} parent=1 // pred_region
      _
    $region49: #{tpu_custom_call.1} parent=1 // pred_fallthru
      _
    // Predicated region
    $region50: #{tpu_custom_call.1} parent=1 // pred_check
      _
    $region51: #{tpu_custom_call.1} parent=1 // pred_check_branch
      %125 = sbr.rel (0) target = $region53
    $region52: #{tpu_custom_call.1} parent=1 // pred_region
      _
    $region53: #{tpu_custom_call.1} parent=1 // pred_fallthru
      _
    // Predicated region
    $region54: #{tpu_custom_call.1} parent=1 // pred_check
      _
    $region55: #{tpu_custom_call.1} parent=1 // pred_check_branch
      %127 = sbr.rel (0) target = $region57
    $region56: #{tpu_custom_call.1} parent=1 // pred_region
      _
    $region57: #{tpu_custom_call.1} parent=1 // pred_fallthru
      _
    // Predicated region
    $region58: #{tpu_custom_call.1} parent=1 // pred_check
      _
    $region59: #{tpu_custom_call.1} parent=1 // pred_check_branch
      %129 = sbr.rel (0) target = $region61
    $region60: #{tpu_custom_call.1} parent=1 // pred_region
      %131 = dma.done [#allocation6], 384
    $region61: #{tpu_custom_call.1} parent=1 // pred_fallthru
      _
    // Predicated region
    $region62: #{tpu_custom_call.1} parent=1 // pred_check
      _
    $region63: #{tpu_custom_call.1} parent=1 // pred_check_branch
      %133 = sbr.rel (0) target = $region65
    $region64: #{tpu_custom_call.1} parent=1 // pred_region
      %135 = dma.done [#allocation8], 1024
    $region65: #{tpu_custom_call.1} parent=1 // pred_fallthru
      _
    // Predicated region
    $region66: #{tpu_custom_call.1} parent=1 // pred_check
      _
    $region67: #{tpu_custom_call.1} parent=1 // pred_check_branch
      %137 = sbr.rel (0) target = $region69
    $region68: #{tpu_custom_call.1} parent=1 // pred_region
      %139 = dma.done [#allocation8], 512
    $region69: #{tpu_custom_call.1} parent=1 // pred_fallthru
      _
    // Predicated region
    $region70: #{tpu_custom_call.1} parent=1 // pred_check
      _
    $region71: #{tpu_custom_call.1} parent=1 // pred_check_branch
      %141 = sbr.rel (0) target = $region73
    $region72: #{tpu_custom_call.1} parent=1 // pred_region
      %143 = dma.done [#allocation11], 512
    $region73: #{tpu_custom_call.1} parent=1 // pred_fallthru
      _
    // Predicated region
    $region74: #{tpu_custom_call.1} parent=1 // pred_check
      _
    $region75: #{tpu_custom_call.1} parent=1 // pred_check_branch
      %145 = sbr.rel (0) target = $region77
    $region76: #{tpu_custom_call.1} parent=1 // pred_region
      %147 = dma.done [#allocation11], 512
    $region77: #{tpu_custom_call.1} parent=1 // pred_fallthru
      _
    // Predicated region
    $region78: #{tpu_custom_call.1} parent=1 // pred_check
      _
    $region79: #{tpu_custom_call.1} parent=1 // pred_check_branch
      %149 = sbr.rel (0) target = $region81
    $region80: #{tpu_custom_call.1} parent=1 // pred_region
      %151 = dma.done [#allocation14], 512
    $region81: #{tpu_custom_call.1} parent=1 // pred_fallthru
      _
    // Predicated region
    $region82: #{tpu_custom_call.1} parent=1 // pred_check
      _
    $region83: #{tpu_custom_call.1} parent=1 // pred_check_branch
      %153 = sbr.rel (0) target = $region85
    $region84: #{tpu_custom_call.1} parent=1 // pred_region
      %155 = dma.done [#allocation14], 1024
    $region85: #{tpu_custom_call.1} parent=1 // pred_fallthru
      _
    %v156 = vld [vmem:[%s0] sm:$0xff]
    %v157 = vld [vmem:[%s0 + $0x8] sm:$0xff]
    %v158 = vld [vmem:[%s0 + $0x10] sm:$0xff]
    %v159 = vld [vmem:[%s0 + $0x18] sm:$0xff]
    %v160 = vld [vmem:[%s0 + $0x20] sm:$0xff]
    %v161 = vld [vmem:[%s0 + $0x28] sm:$0xff]
    %v162 = vld [vmem:[%s0 + $0x30] sm:$0xff]
    %v163 = vld [vmem:[%s0 + $0x38] sm:$0xff]
    %v164 = vlaneseq
    %v165 = vand.u32 %v164, 127
    %166 = vset.pattern.permute.xlu0 0
    %167 = vperm.xlu0 %166, %v156
    %v168 = vpop.permute.xlu0 %167
    %169 = vset.pattern.permute.xlu0 0
    %170 = vperm.xlu0 %169, %v157
    %v171 = vpop.permute.xlu0 %170
    %172 = vset.pattern.permute.xlu0 0
    %173 = vperm.xlu0 %172, %v158
    %v174 = vpop.permute.xlu0 %173
    %175 = vset.pattern.permute.xlu0 0
    %176 = vperm.xlu0 %175, %v159
    %v177 = vpop.permute.xlu0 %176
    %178 = vset.pattern.permute.xlu0 0
    %179 = vperm.xlu0 %178, %v160
    %v180 = vpop.permute.xlu0 %179
    %181 = vset.pattern.permute.xlu0 0
    %182 = vperm.xlu0 %181, %v161
    %v183 = vpop.permute.xlu0 %182
    %184 = vset.pattern.permute.xlu0 0
    %185 = vperm.xlu0 %184, %v162
    %v186 = vpop.permute.xlu0 %185
    %187 = vset.pattern.permute.xlu0 0
    %188 = vperm.xlu0 %187, %v163
    %v189 = vpop.permute.xlu0 %188
    %vm190 = vcmp.eq.s32.totalorder %v168, %v165
    %vm191 = vcmp.eq.s32.totalorder %v171, %v165
    %vm192 = vcmp.eq.s32.totalorder %v174, %v165
    %vm193 = vcmp.eq.s32.totalorder %v177, %v165
    %vm194 = vcmp.eq.s32.totalorder %v180, %v165
    %vm195 = vcmp.eq.s32.totalorder %v183, %v165
    %vm196 = vcmp.eq.s32.totalorder %v186, %v165
    %vm197 = vcmp.eq.s32.totalorder %v189, %v165
    %v198 = vsel %vm190, 1, 0
    %v199 = vsel %vm191, 1, 0
    %v200 = vsel %vm192, 1, 0
    %v201 = vsel %vm193, 1, 0
    %v202 = vsel %vm194, 1, 0
    %v203 = vsel %vm195, 1, 0
    %v204 = vsel %vm196, 1, 0
    %v205 = vsel %vm197, 1, 0
    %v206 = vcvt.s32.f32 %v198
    %v207 = vcvt.s32.f32 %v199
    %v208 = vcvt.s32.f32 %v200
    %v209 = vcvt.s32.f32 %v201
    %v210 = vcvt.s32.f32 %v202
    %v211 = vcvt.s32.f32 %v203
    %v212 = vcvt.s32.f32 %v204
    %v213 = vcvt.s32.f32 %v205
    %v214 = vld [vmem:[#allocation5] sm:$0xff]
    %v215 = vld [vmem:[#allocation5 + $0x8] sm:$0xff]
    %v216 = vld [vmem:[#allocation5 + $0x10] sm:$0x1f]
    %vm217 = vcmask 171008
    %v219 = vsel %vm217, %v206, 0
    %v222 = vsel %vm217, %v207, 0
    %v225 = vsel %vm217, %v208, 0
    %v228 = vsel %vm217, %v209, 0
    %v231 = vsel %vm217, %v210, 0
    %v234 = vsel %vm217, %v211, 0
    %v237 = vsel %vm217, %v212, 0
    %v240 = vsel %vm217, %v213, 0
    %vm242 = vcmask 1044480
    %v244 = vsel %vm242, %v216, 0
    %246 = vmatpush.msra.mxu0 0.0
    %247 = vmatpush.msra.mxu0 0.0
    %248 = vmatpush.msra.mxu0 0.0
    %249 = vmatpush.msra.mxu0 0.0
    %250 = vmatpush.msra.mxu0 0.0
    %251 = vmatpush.msra.mxu0 0.0
    %252 = vmatpush.msra.mxu0 0.0
    %253 = vmatpush.msra.mxu0 0.0
    %254 = vmatpush.msra.mxu0 0.0
    %255 = vmatpush.msra.mxu0 0.0
    %256 = vmatpush.msra.mxu0 0.0
    %257 = vmatpush.msra.mxu0 0.0
    %258 = vmatpush.msra.mxu0 0.0
    %259 = vmatpush.msra.mxu0 %v244
    %260 = vmatpush.msra.mxu0 %v215
    %261 = vmatpush.msra.mxu0 %v214
    %262 = vmatmul.f32.gmra.mxu0 %v219
    %v263 = vpop.f32.mrf.mxu0
    %v264 = vadd.f32 0.0, %v263
    %265 = vmatmul.f32.gmra.mxu0 %v222
    %v266 = vpop.f32.mrf.mxu0
    %v267 = vadd.f32 0.0, %v266
    %268 = vmatmul.f32.gmra.mxu0 %v225
    %v269 = vpop.f32.mrf.mxu0
    %v270 = vadd.f32 0.0, %v269
    %271 = vmatmul.f32.gmra.mxu0 %v228
    %v272 = vpop.f32.mrf.mxu0
    %v273 = vadd.f32 0.0, %v272
    %274 = vmatmul.f32.gmra.mxu0 %v231
    %v275 = vpop.f32.mrf.mxu0
    %v276 = vadd.f32 0.0, %v275
    %277 = vmatmul.f32.gmra.mxu0 %v234
    %v278 = vpop.f32.mrf.mxu0
    %v279 = vadd.f32 0.0, %v278
    %280 = vmatmul.f32.gmra.mxu0 %v237
    %v281 = vpop.f32.mrf.mxu0
    %v282 = vadd.f32 0.0, %v281
    %283 = vmatmul.f32.gmra.mxu0 %v240
    %v284 = vpop.f32.mrf.mxu0
    %v285 = vadd.f32 0.0, %v284
    %286 = vdwg.mxu0
    %v287 = vld [vmem:[%s5] sm:$0x3]
    %v288 = vld [vmem:[#allocation7] sm:$0xff]
    %v289 = vld [vmem:[#allocation7 + $0x8] sm:$0xff]
    %v290 = vld [vmem:[#allocation7 + $0x10] sm:$0xff]
    %v291 = vld [vmem:[#allocation7 + $0x18] sm:$0xff]
    %v292 = vld [vmem:[#allocation7 + $0x20] sm:$0xff]
    %v293 = vld [vmem:[#allocation7 + $0x28] sm:$0xff]
    %v294 = vld [vmem:[#allocation7 + $0x30] sm:$0xff]
    %v295 = vld [vmem:[#allocation7 + $0x38] sm:$0xff]
    %v297 = vperm.slane %v287, 0
    %v298 = vperm.slane %v287, 1
    %vm301 = vcmask 261120
    %v303 = vsel %vm301, %v264, 0
    %v306 = vsel %vm301, %v267, 0
    %v309 = vsel %vm301, %v270, 0
    %v312 = vsel %vm301, %v273, 0
    %v315 = vsel %vm301, %v276, 0
    %v318 = vsel %vm301, %v279, 0
    %v321 = vsel %vm301, %v282, 0
    %v324 = vsel %vm301, %v285, 0
    %326 = vmatpush.msra.mxu0 0.0
    %327 = vmatpush.msra.mxu0 0.0
    %328 = vmatpush.msra.mxu0 0.0
    %329 = vmatpush.msra.mxu0 0.0
    %330 = vmatpush.msra.mxu0 0.0
    %331 = vmatpush.msra.mxu0 0.0
    %332 = vmatpush.msra.mxu0 0.0
    %333 = vmatpush.msra.mxu0 0.0
    %334 = vmatpush.msra.mxu0 0.0
    %335 = vmatpush.msra.mxu0 0.0
    %336 = vmatpush.msra.mxu0 0.0
    %337 = vmatpush.msra.mxu0 0.0
    %338 = vmatpush.msra.mxu0 %v294
    %339 = vmatpush.msra.mxu0 %v292
    %340 = vmatpush.msra.mxu0 %v290
    %341 = vmatpush.msra.mxu0 %v288
    %342 = vmatmul.f32.gmra.mxu0 %v303
    %v343 = vpop.f32.mrf.mxu0
    %v344 = vadd.f32 %v297, %v343
    %345 = vmatmul.f32.gmra.mxu0 %v306
    %v346 = vpop.f32.mrf.mxu0
    %v347 = vadd.f32 %v297, %v346
    %348 = vmatmul.f32.gmra.mxu0 %v309
    %v349 = vpop.f32.mrf.mxu0
    %v350 = vadd.f32 %v297, %v349
    %351 = vmatmul.f32.gmra.mxu0 %v312
    %v352 = vpop.f32.mrf.mxu0
    %v353 = vadd.f32 %v297, %v352
    %354 = vmatmul.f32.gmra.mxu0 %v315
    %v355 = vpop.f32.mrf.mxu0
    %v356 = vadd.f32 %v297, %v355
    %357 = vmatmul.f32.gmra.mxu0 %v318
    %v358 = vpop.f32.mrf.mxu0
    %v359 = vadd.f32 %v297, %v358
    %360 = vmatmul.f32.gmra.mxu0 %v321
    %v361 = vpop.f32.mrf.mxu0
    %v362 = vadd.f32 %v297, %v361
    %363 = vmatmul.f32.gmra.mxu0 %v324
    %v364 = vpop.f32.mrf.mxu0
    %v365 = vadd.f32 %v297, %v364
    %366 = vdwg.mxu0
    %367 = vmatpush.msra.mxu0 0.0
    %368 = vmatpush.msra.mxu0 0.0
    %369 = vmatpush.msra.mxu0 0.0
    %370 = vmatpush.msra.mxu0 0.0
    %371 = vmatpush.msra.mxu0 0.0
    %372 = vmatpush.msra.mxu0 0.0
    %373 = vmatpush.msra.mxu0 0.0
    %374 = vmatpush.msra.mxu0 0.0
    %375 = vmatpush.msra.mxu0 0.0
    %376 = vmatpush.msra.mxu0 0.0
    %377 = vmatpush.msra.mxu0 0.0
    %378 = vmatpush.msra.mxu0 0.0
    %379 = vmatpush.msra.mxu0 %v295
    %380 = vmatpush.msra.mxu0 %v293
    %381 = vmatpush.msra.mxu0 %v291
    %382 = vmatpush.msra.mxu0 %v289
    %383 = vmatmul.f32.gmra.mxu0 %v303
    %v384 = vpop.f32.mrf.mxu0
    %v385 = vadd.f32 %v298, %v384
    %386 = vmatmul.f32.gmra.mxu0 %v306
    %v387 = vpop.f32.mrf.mxu0
    %v388 = vadd.f32 %v298, %v387
    %389 = vmatmul.f32.gmra.mxu0 %v309
    %v390 = vpop.f32.mrf.mxu0
    %v391 = vadd.f32 %v298, %v390
    %392 = vmatmul.f32.gmra.mxu0 %v312
    %v393 = vpop.f32.mrf.mxu0
    %v394 = vadd.f32 %v298, %v393
    %395 = vmatmul.f32.gmra.mxu0 %v315
    %v396 = vpop.f32.mrf.mxu0
    %v397 = vadd.f32 %v298, %v396
    %398 = vmatmul.f32.gmra.mxu0 %v318
    %v399 = vpop.f32.mrf.mxu0
    %v400 = vadd.f32 %v298, %v399
    %401 = vmatmul.f32.gmra.mxu0 %v321
    %v402 = vpop.f32.mrf.mxu0
    %v403 = vadd.f32 %v298, %v402
    %404 = vmatmul.f32.gmra.mxu0 %v324
    %v405 = vpop.f32.mrf.mxu0
    %v406 = vadd.f32 %v298, %v405
    %407 = vdwg.mxu0
    %408 = vst [vmem:[#allocation2] sm:$0xff] %v344
    %409 = vst [vmem:[#allocation2 + $0x8] sm:$0xff] %v385
    %410 = vst [vmem:[#allocation2 + $0x10] sm:$0xff] %v347
    %411 = vst [vmem:[#allocation2 + $0x18] sm:$0xff] %v388
    %412 = vst [vmem:[#allocation2 + $0x20] sm:$0xff] %v350
    %413 = vst [vmem:[#allocation2 + $0x28] sm:$0xff] %v391
    %414 = vst [vmem:[#allocation2 + $0x30] sm:$0xff] %v353
    %415 = vst [vmem:[#allocation2 + $0x38] sm:$0xff] %v394
    %416 = vst [vmem:[#allocation2 + $0x40] sm:$0xff] %v356
    %417 = vst [vmem:[#allocation2 + $0x48] sm:$0xff] %v397
    %418 = vst [vmem:[#allocation2 + $0x50] sm:$0xff] %v359
    %419 = vst [vmem:[#allocation2 + $0x58] sm:$0xff] %v400
    %420 = vst [vmem:[#allocation2 + $0x60] sm:$0xff] %v362
    %421 = vst [vmem:[#allocation2 + $0x68] sm:$0xff] %v403
    %422 = vst [vmem:[#allocation2 + $0x70] sm:$0xff] %v365
    %423 = vst [vmem:[#allocation2 + $0x78] sm:$0xff] %v406
    %v424 = vld [vmem:[#allocation9] sm:$0xff]
    %v425 = vld [vmem:[#allocation9 + $0x8] sm:$0xff]
    %v426 = vld [vmem:[#allocation9 + $0x10] sm:$0xff]
    %v427 = vld [vmem:[#allocation9 + $0x18] sm:$0xff]
    %v428 = vld [vmem:[#allocation10] sm:$0xff]
    %v429 = vld [vmem:[#allocation10 + $0x8] sm:$0xff]
    %v430 = vld [vmem:[#allocation10 + $0x10] sm:$0xff]
    %v431 = vld [vmem:[#allocation10 + $0x18] sm:$0xff]
    %v432 = vld [vmem:[#allocation2] sm:$0xff]
    %v433 = vld [vmem:[#allocation2 + $0x10] sm:$0xff]
    %v435 = vsel %vm301, 0.0, 0
    %437 = vmatpush.msra.mxu0 0.0
    %438 = vmatpush.msra.mxu0 0.0
    %439 = vmatpush.msra.mxu0 0.0
    %440 = vmatpush.msra.mxu0 0.0
    %441 = vmatpush.msra.mxu0 0.0
    %442 = vmatpush.msra.mxu0 0.0
    %443 = vmatpush.msra.mxu0 0.0
    %444 = vmatpush.msra.mxu0 0.0
    %445 = vmatpush.msra.mxu0 0.0
    %446 = vmatpush.msra.mxu0 0.0
    %447 = vmatpush.msra.mxu0 0.0
    %448 = vmatpush.msra.mxu0 0.0
    %449 = vmatpush.msra.mxu0 %v427
    %450 = vmatpush.msra.mxu0 %v426
    %451 = vmatpush.msra.mxu0 %v425
    %452 = vmatpush.msra.mxu0 %v424
    %453 = vmatmul.f32.gmra.mxu0 %v435
    %v454 = vpop.f32.mrf.mxu0
    %v455 = vadd.f32 0.0, %v454
    %456 = vmatmul.f32.gmra.mxu0 %v435
    %v457 = vpop.f32.mrf.mxu0
    %v458 = vadd.f32 0.0, %v457
    %459 = vdwg.mxu0
    %v460 = vadd.f32 %v432, %v455
    %v461 = vadd.f32 %v433, %v458
    %v462 = vld [vmem:[#allocation2 + $0x68] sm:$0xff]
    %v463 = vld [vmem:[#allocation2 + $0x78] sm:$0xff]
    %464 = vmatpush.msra.mxu0 0.0
    %465 = vmatpush.msra.mxu0 0.0
    %466 = vmatpush.msra.mxu0 0.0
    %467 = vmatpush.msra.mxu0 0.0
    %468 = vmatpush.msra.mxu0 0.0
    %469 = vmatpush.msra.mxu0 0.0
    %470 = vmatpush.msra.mxu0 0.0
    %471 = vmatpush.msra.mxu0 0.0
    %472 = vmatpush.msra.mxu0 0.0
    %473 = vmatpush.msra.mxu0 0.0
    %474 = vmatpush.msra.mxu0 0.0
    %475 = vmatpush.msra.mxu0 0.0
    %476 = vmatpush.msra.mxu0 %v431
    %477 = vmatpush.msra.mxu0 %v430
    %478 = vmatpush.msra.mxu0 %v429
    %479 = vmatpush.msra.mxu0 %v428
    %480 = vmatmul.f32.gmra.mxu0 %v435
    %v481 = vpop.f32.mrf.mxu0
    %v482 = vadd.f32 0.0, %v481
    %483 = vmatmul.f32.gmra.mxu0 %v435
    %v484 = vpop.f32.mrf.mxu0
    %v485 = vadd.f32 0.0, %v484
    %486 = vdwg.mxu0
    %v487 = vadd.f32 %v462, %v482
    %v488 = vadd.f32 %v463, %v485
    %v489 = vxor.u32 %v460, 2147483648
    %v490 = vxor.u32 %v461, 2147483648
    %v491 = vmul.f32 %v489, 1.442695
    %v492 = vpow.pop %v491
    %v493 = vmul.f32 %v490, 1.442695
    %v494 = vpow.pop %v493
    %v495 = vadd.f32 %v492, 1.0
    %v496 = vadd.f32 %v494, 1.0
    %v497 = vrcp.pop %v495
    %v498 = vmul.f32 %v495, %v497
    %v499 = vsub.f32 1.0, %v498
    %v500 = vmul.f32 %v497, %v499
    %v501 = vadd.f32 %v497, %v500
    %vm502 = vweird.f32 %v495
    %vm503 = vweird.f32 %v497
    %vm504 = vmor %vm502, %vm503
    %v505 = vsel %vm504, %v497, %v501
    %v506 = vand.u32 2147483647, %v495
    %vm507 = vcmp.eq.f32.partialorder %v506, 8.507059e+37
    %v508 = vand.u32 %v495, 2147483648
    %v509 = vor.u32 1.1754944e-38, %v508
    %v510 = vsel %vm507, %v509, %v505
    %v511 = vmul.f32 1.0, %v510
    %v512 = vrcp.pop %v496
    %v513 = vmul.f32 %v496, %v512
    %v514 = vsub.f32 1.0, %v513
    %v515 = vmul.f32 %v512, %v514
    %v516 = vadd.f32 %v512, %v515
    %vm517 = vweird.f32 %v496
    %vm518 = vweird.f32 %v512
    %vm519 = vmor %vm517, %vm518
    %v520 = vsel %vm519, %v512, %v516
    %v521 = vand.u32 2147483647, %v496
    %vm522 = vcmp.eq.f32.partialorder %v521, 8.507059e+37
    %v523 = vand.u32 %v496, 2147483648
    %v524 = vor.u32 1.1754944e-38, %v523
    %v525 = vsel %vm522, %v524, %v520
    %v526 = vmul.f32 1.0, %v525
    %v527 = vtanh.pop %v460
    %v528 = vtanh.pop %v461
    %v529 = vmul.f32 %v511, 0.0
    %v530 = vmul.f32 %v526, 0.0
    %533 = vrot.lane.b32.xlu0 %v527, 32
    %v534 = vpop.permute.xlu0 %533
    %535 = vrot.lane.b32.xlu0 %v528, 32
    %v536 = vpop.permute.xlu0 %535
    %v539 = vmul.f32 %v511, %v534
    %v540 = vmul.f32 %v526, %v536
    %543 = vrot.lane.b32.xlu0 %v539, 32
    %v544 = vpop.permute.xlu0 %543
    %545 = vrot.lane.b32.xlu0 %v540, 32
    %v546 = vpop.permute.xlu0 %545
    %v549 = vadd.f32 %v529, %v544
    %v550 = vadd.f32 %v530, %v546
    %v551 = vtanh.pop %v549
    %v552 = vtanh.pop %v550
    %555 = vrot.lane.b32.xlu0 %v551, 32
    %v556 = vpop.permute.xlu0 %555
    %557 = vrot.lane.b32.xlu0 %v552, 32
    %v558 = vpop.permute.xlu0 %557
    %v561 = vmul.f32 %v511, %v556
    %v562 = vmul.f32 %v526, %v558
    %v563 = vxor.u32 %v487, 2147483648
    %v564 = vxor.u32 %v488, 2147483648
    %v565 = vmul.f32 %v563, 1.442695
    %v566 = vpow.pop %v565
    %v567 = vmul.f32 %v564, 1.442695
    %v568 = vpow.pop %v567
    %v569 = vadd.f32 %v566, 1.0
    %v570 = vadd.f32 %v568, 1.0
    %v571 = vrcp.pop %v569
    %v572 = vmul.f32 %v569, %v571
    %v573 = vsub.f32 1.0, %v572
    %v574 = vmul.f32 %v571, %v573
    %v575 = vadd.f32 %v571, %v574
    %vm576 = vweird.f32 %v569
    %vm577 = vweird.f32 %v571
    %vm578 = vmor %vm576, %vm577
    %v579 = vsel %vm578, %v571, %v575
    %v580 = vand.u32 2147483647, %v569
    %vm581 = vcmp.eq.f32.partialorder %v580, 8.507059e+37
    %v582 = vand.u32 %v569, 2147483648
    %v583 = vor.u32 1.1754944e-38, %v582
    %v584 = vsel %vm581, %v583, %v579
    %v585 = vmul.f32 1.0, %v584
    %v586 = vrcp.pop %v570
    %v587 = vmul.f32 %v570, %v586
    %v588 = vsub.f32 1.0, %v587
    %v589 = vmul.f32 %v586, %v588
    %v590 = vadd.f32 %v586, %v589
    %vm591 = vweird.f32 %v570
    %vm592 = vweird.f32 %v586
    %vm593 = vmor %vm591, %vm592
    %v594 = vsel %vm593, %v586, %v590
    %v595 = vand.u32 2147483647, %v570
    %vm596 = vcmp.eq.f32.partialorder %v595, 8.507059e+37
    %v597 = vand.u32 %v570, 2147483648
    %v598 = vor.u32 1.1754944e-38, %v597
    %v599 = vsel %vm596, %v598, %v594
    %v600 = vmul.f32 1.0, %v599
    %v601 = vtanh.pop %v487
    %v602 = vtanh.pop %v488
    %v603 = vmul.f32 %v585, 0.0
    %v604 = vmul.f32 %v600, 0.0
    %607 = vrot.lane.b32.xlu0 %v601, 32
    %v608 = vpop.permute.xlu0 %607
    %609 = vrot.lane.b32.xlu0 %v602, 32
    %v610 = vpop.permute.xlu0 %609
    %v613 = vmul.f32 %v585, %v608
    %v614 = vmul.f32 %v600, %v610
    %617 = vrot.lane.b32.xlu0 %v613, 32
    %v618 = vpop.permute.xlu0 %617
    %619 = vrot.lane.b32.xlu0 %v614, 32
    %v620 = vpop.permute.xlu0 %619
    %v623 = vadd.f32 %v603, %v618
    %v624 = vadd.f32 %v604, %v620
    %v625 = vtanh.pop %v623
    %v626 = vtanh.pop %v624
    %629 = vrot.lane.b32.xlu0 %v625, 32
    %v630 = vpop.permute.xlu0 %629
    %631 = vrot.lane.b32.xlu0 %v626, 32
    %v632 = vpop.permute.xlu0 %631
    %v635 = vmul.f32 %v585, %v630
    %v636 = vmul.f32 %v600, %v632
    %639 = vrot.lane.b32.xlu0 %v561, 64
    %v640 = vpop.permute.xlu0 %639
    %641 = vrot.lane.b32.xlu0 %v562, 64
    %v642 = vpop.permute.xlu0 %641
    %645 = vst.msk [vmem:[#allocation3] sm:$0xff] %vm301, %v640
    %646 = vst.msk [vmem:[#allocation3 + $0x8] sm:$0xff] %vm301, %v642
    %649 = vrot.lane.b32.xlu0 %v635, 64
    %v650 = vpop.permute.xlu0 %649
    %651 = vrot.lane.b32.xlu0 %v636, 64
    %v652 = vpop.permute.xlu0 %651
    %655 = vst.msk [vmem:[#allocation4 + $0x30] sm:$0xff] %vm301, %v650
    %656 = vst.msk [vmem:[#allocation4 + $0x38] sm:$0xff] %vm301, %v652
    %v657 = vld [vmem:[#allocation2 + $0x20] sm:$0xff]
    %v658 = vld [vmem:[#allocation2 + $0x30] sm:$0xff]
    %v659 = vsel %vm301, %v640, 0
    %v661 = vsel %vm301, %v642, 0
    %663 = vmatpush.msra.mxu0 0.0
    %664 = vmatpush.msra.mxu0 0.0
    %665 = vmatpush.msra.mxu0 0.0
    %666 = vmatpush.msra.mxu0 0.0
    %667 = vmatpush.msra.mxu0 0.0
    %668 = vmatpush.msra.mxu0 0.0
    %669 = vmatpush.msra.mxu0 0.0
    %670 = vmatpush.msra.mxu0 0.0
    %671 = vmatpush.msra.mxu0 0.0
    %672 = vmatpush.msra.mxu0 0.0
    %673 = vmatpush.msra.mxu0 0.0
    %674 = vmatpush.msra.mxu0 0.0
    %675 = vmatpush.msra.mxu0 %v427
    %676 = vmatpush.msra.mxu0 %v426
    %677 = vmatpush.msra.mxu0 %v425
    %678 = vmatpush.msra.mxu0 %v424
    %679 = vmatmul.f32.gmra.mxu0 %v659
    %v680 = vpop.f32.mrf.mxu0
    %v681 = vadd.f32 0.0, %v680
    %682 = vmatmul.f32.gmra.mxu0 %v661
    %v683 = vpop.f32.mrf.mxu0
    %v684 = vadd.f32 0.0, %v683
    %685 = vdwg.mxu0
    %v686 = vadd.f32 %v657, %v681
    %v687 = vadd.f32 %v658, %v684
    %v688 = vld [vmem:[#allocation2 + $0x48] sm:$0xff]
    %v689 = vld [vmem:[#allocation2 + $0x58] sm:$0xff]
    %v690 = vsel %vm301, %v650, 0
    %v692 = vsel %vm301, %v652, 0
    %694 = vmatpush.msra.mxu0 0.0
    %695 = vmatpush.msra.mxu0 0.0
    %696 = vmatpush.msra.mxu0 0.0
    %697 = vmatpush.msra.mxu0 0.0
    %698 = vmatpush.msra.mxu0 0.0
    %699 = vmatpush.msra.mxu0 0.0
    %700 = vmatpush.msra.mxu0 0.0
    %701 = vmatpush.msra.mxu0 0.0
    %702 = vmatpush.msra.mxu0 0.0
    %703 = vmatpush.msra.mxu0 0.0
    %704 = vmatpush.msra.mxu0 0.0
    %705 = vmatpush.msra.mxu0 0.0
    %706 = vmatpush.msra.mxu0 %v431
    %707 = vmatpush.msra.mxu0 %v430
    %708 = vmatpush.msra.mxu0 %v429
    %709 = vmatpush.msra.mxu0 %v428
    %710 = vmatmul.f32.gmra.mxu0 %v690
    %v711 = vpop.f32.mrf.mxu0
    %v712 = vadd.f32 0.0, %v711
    %713 = vmatmul.f32.gmra.mxu0 %v692
    %v714 = vpop.f32.mrf.mxu0
    %v715 = vadd.f32 0.0, %v714
    %716 = vdwg.mxu0
    %v717 = vadd.f32 %v688, %v712
    %v718 = vadd.f32 %v689, %v715
    %v719 = vxor.u32 %v686, 2147483648
    %v720 = vxor.u32 %v687, 2147483648
    %v721 = vmul.f32 %v719, 1.442695
    %v722 = vpow.pop %v721
    %v723 = vmul.f32 %v720, 1.442695
    %v724 = vpow.pop %v723
    %v725 = vadd.f32 %v722, 1.0
    %v726 = vadd.f32 %v724, 1.0
    %v727 = vrcp.pop %v725
    %v728 = vmul.f32 %v725, %v727
    %v729 = vsub.f32 1.0, %v728
    %v730 = vmul.f32 %v727, %v729
    %v731 = vadd.f32 %v727, %v730
    %vm732 = vweird.f32 %v725
    %vm733 = vweird.f32 %v727
    %vm734 = vmor %vm732, %vm733
    %v735 = vsel %vm734, %v727, %v731
    %v736 = vand.u32 2147483647, %v725
    %vm737 = vcmp.eq.f32.partialorder %v736, 8.507059e+37
    %v738 = vand.u32 %v725, 2147483648
    %v739 = vor.u32 1.1754944e-38, %v738
    %v740 = vsel %vm737, %v739, %v735
    %v741 = vmul.f32 1.0, %v740
    %v742 = vrcp.pop %v726
    %v743 = vmul.f32 %v726, %v742
    %v744 = vsub.f32 1.0, %v743
    %v745 = vmul.f32 %v742, %v744
    %v746 = vadd.f32 %v742, %v745
    %vm747 = vweird.f32 %v726
    %vm748 = vweird.f32 %v742
    %vm749 = vmor %vm747, %vm748
    %v750 = vsel %vm749, %v742, %v746
    %v751 = vand.u32 2147483647, %v726
    %vm752 = vcmp.eq.f32.partialorder %v751, 8.507059e+37
    %v753 = vand.u32 %v726, 2147483648
    %v754 = vor.u32 1.1754944e-38, %v753
    %v755 = vsel %vm752, %v754, %v750
    %v756 = vmul.f32 1.0, %v755
    %v757 = vtanh.pop %v686
    %v758 = vtanh.pop %v687
    %v759 = vmul.f32 %v741, %v549
    %v760 = vmul.f32 %v756, %v550
    %763 = vrot.lane.b32.xlu0 %v757, 32
    %v764 = vpop.permute.xlu0 %763
    %765 = vrot.lane.b32.xlu0 %v758, 32
    %v766 = vpop.permute.xlu0 %765
    %v769 = vmul.f32 %v741, %v764
    %v770 = vmul.f32 %v756, %v766
    %773 = vrot.lane.b32.xlu0 %v769, 32
    %v774 = vpop.permute.xlu0 %773
    %775 = vrot.lane.b32.xlu0 %v770, 32
    %v776 = vpop.permute.xlu0 %775
    %v779 = vadd.f32 %v759, %v774
    %v780 = vadd.f32 %v760, %v776
    %v781 = vtanh.pop %v779
    %v782 = vtanh.pop %v780
    %785 = vrot.lane.b32.xlu0 %v781, 32
    %v786 = vpop.permute.xlu0 %785
    %787 = vrot.lane.b32.xlu0 %v782, 32
    %v788 = vpop.permute.xlu0 %787
    %v791 = vmul.f32 %v741, %v786
    %v792 = vmul.f32 %v756, %v788
    %v793 = vxor.u32 %v717, 2147483648
    %v794 = vxor.u32 %v718, 2147483648
    %v795 = vmul.f32 %v793, 1.442695
    %v796 = vpow.pop %v795
    %v797 = vmul.f32 %v794, 1.442695
    %v798 = vpow.pop %v797
    %v799 = vadd.f32 %v796, 1.0
    %v800 = vadd.f32 %v798, 1.0
    %v801 = vrcp.pop %v799
    %v802 = vmul.f32 %v799, %v801
    %v803 = vsub.f32 1.0, %v802
    %v804 = vmul.f32 %v801, %v803
    %v805 = vadd.f32 %v801, %v804
    %vm806 = vweird.f32 %v799
    %vm807 = vweird.f32 %v801
    %vm808 = vmor %vm806, %vm807
    %v809 = vsel %vm808, %v801, %v805
    %v810 = vand.u32 2147483647, %v799
    %vm811 = vcmp.eq.f32.partialorder %v810, 8.507059e+37
    %v812 = vand.u32 %v799, 2147483648
    %v813 = vor.u32 1.1754944e-38, %v812
    %v814 = vsel %vm811, %v813, %v809
    %v815 = vmul.f32 1.0, %v814
    %v816 = vrcp.pop %v800
    %v817 = vmul.f32 %v800, %v816
    %v818 = vsub.f32 1.0, %v817
    %v819 = vmul.f32 %v816, %v818
    %v820 = vadd.f32 %v816, %v819
    %vm821 = vweird.f32 %v800
    %vm822 = vweird.f32 %v816
    %vm823 = vmor %vm821, %vm822
    %v824 = vsel %vm823, %v816, %v820
    %v825 = vand.u32 2147483647, %v800
    %vm826 = vcmp.eq.f32.partialorder %v825, 8.507059e+37
    %v827 = vand.u32 %v800, 2147483648
    %v828 = vor.u32 1.1754944e-38, %v827
    %v829 = vsel %vm826, %v828, %v824
    %v830 = vmul.f32 1.0, %v829
    %v831 = vtanh.pop %v717
    %v832 = vtanh.pop %v718
    %v833 = vmul.f32 %v815, %v623
    %v834 = vmul.f32 %v830, %v624
    %837 = vrot.lane.b32.xlu0 %v831, 32
    %v838 = vpop.permute.xlu0 %837
    %839 = vrot.lane.b32.xlu0 %v832, 32
    %v840 = vpop.permute.xlu0 %839
    %v843 = vmul.f32 %v815, %v838
    %v844 = vmul.f32 %v830, %v840
    %847 = vrot.lane.b32.xlu0 %v843, 32
    %v848 = vpop.permute.xlu0 %847
    %849 = vrot.lane.b32.xlu0 %v844, 32
    %v850 = vpop.permute.xlu0 %849
    %v853 = vadd.f32 %v833, %v848
    %v854 = vadd.f32 %v834, %v850
    %v855 = vtanh.pop %v853
    %v856 = vtanh.pop %v854
    %859 = vrot.lane.b32.xlu0 %v855, 32
    %v860 = vpop.permute.xlu0 %859
    %861 = vrot.lane.b32.xlu0 %v856, 32
    %v862 = vpop.permute.xlu0 %861
    %v865 = vmul.f32 %v815, %v860
    %v866 = vmul.f32 %v830, %v862
    %869 = vrot.lane.b32.xlu0 %v791, 64
    %v870 = vpop.permute.xlu0 %869
    %871 = vrot.lane.b32.xlu0 %v792, 64
    %v872 = vpop.permute.xlu0 %871
    %875 = vst.msk [vmem:[#allocation3 + $0x10] sm:$0xff] %vm301, %v870
    %876 = vst.msk [vmem:[#allocation3 + $0x18] sm:$0xff] %vm301, %v872
    %879 = vrot.lane.b32.xlu0 %v865, 64
    %v880 = vpop.permute.xlu0 %879
    %881 = vrot.lane.b32.xlu0 %v866, 64
    %v882 = vpop.permute.xlu0 %881
    %885 = vst.msk [vmem:[#allocation4 + $0x20] sm:$0xff] %vm301, %v880
    %886 = vst.msk [vmem:[#allocation4 + $0x28] sm:$0xff] %vm301, %v882
    %v887 = vld [vmem:[#allocation2 + $0x40] sm:$0xff]
    %v888 = vld [vmem:[#allocation2 + $0x50] sm:$0xff]
    %v889 = vsel %vm301, %v870, 0
    %v891 = vsel %vm301, %v872, 0
    %893 = vmatpush.msra.mxu0 0.0
    %894 = vmatpush.msra.mxu0 0.0
    %895 = vmatpush.msra.mxu0 0.0
    %896 = vmatpush.msra.mxu0 0.0
    %897 = vmatpush.msra.mxu0 0.0
    %898 = vmatpush.msra.mxu0 0.0
    %899 = vmatpush.msra.mxu0 0.0
    %900 = vmatpush.msra.mxu0 0.0
    %901 = vmatpush.msra.mxu0 0.0
    %902 = vmatpush.msra.mxu0 0.0
    %903 = vmatpush.msra.mxu0 0.0
    %904 = vmatpush.msra.mxu0 0.0
    %905 = vmatpush.msra.mxu0 %v427
    %906 = vmatpush.msra.mxu0 %v426
    %907 = vmatpush.msra.mxu0 %v425
    %908 = vmatpush.msra.mxu0 %v424
    %909 = vmatmul.f32.gmra.mxu0 %v889
    %v910 = vpop.f32.mrf.mxu0
    %v911 = vadd.f32 0.0, %v910
    %912 = vmatmul.f32.gmra.mxu0 %v891
    %v913 = vpop.f32.mrf.mxu0
    %v914 = vadd.f32 0.0, %v913
    %915 = vdwg.mxu0
    %v916 = vadd.f32 %v887, %v911
    %v917 = vadd.f32 %v888, %v914
    %v918 = vld [vmem:[#allocation2 + $0x28] sm:$0xff]
    %v919 = vld [vmem:[#allocation2 + $0x38] sm:$0xff]
    %v920 = vsel %vm301, %v880, 0
    %v922 = vsel %vm301, %v882, 0
    %924 = vmatpush.msra.mxu0 0.0
    %925 = vmatpush.msra.mxu0 0.0
    %926 = vmatpush.msra.mxu0 0.0
    %927 = vmatpush.msra.mxu0 0.0
    %928 = vmatpush.msra.mxu0 0.0
    %929 = vmatpush.msra.mxu0 0.0
    %930 = vmatpush.msra.mxu0 0.0
    %931 = vmatpush.msra.mxu0 0.0
    %932 = vmatpush.msra.mxu0 0.0
    %933 = vmatpush.msra.mxu0 0.0
    %934 = vmatpush.msra.mxu0 0.0
    %935 = vmatpush.msra.mxu0 0.0
    %936 = vmatpush.msra.mxu0 %v431
    %937 = vmatpush.msra.mxu0 %v430
    %938 = vmatpush.msra.mxu0 %v429
    %939 = vmatpush.msra.mxu0 %v428
    %940 = vmatmul.f32.gmra.mxu0 %v920
    %v941 = vpop.f32.mrf.mxu0
    %v942 = vadd.f32 0.0, %v941
    %943 = vmatmul.f32.gmra.mxu0 %v922
    %v944 = vpop.f32.mrf.mxu0
    %v945 = vadd.f32 0.0, %v944
    %946 = vdwg.mxu0
    %v947 = vadd.f32 %v918, %v942
    %v948 = vadd.f32 %v919, %v945
    %v949 = vxor.u32 %v916, 2147483648
    %v950 = vxor.u32 %v917, 2147483648
    %v951 = vmul.f32 %v949, 1.442695
    %v952 = vpow.pop %v951
    %v953 = vmul.f32 %v950, 1.442695
    %v954 = vpow.pop %v953
    %v955 = vadd.f32 %v952, 1.0
    %v956 = vadd.f32 %v954, 1.0
    %v957 = vrcp.pop %v955
    %v958 = vmul.f32 %v955, %v957
    %v959 = vsub.f32 1.0, %v958
    %v960 = vmul.f32 %v957, %v959
    %v961 = vadd.f32 %v957, %v960
    %vm962 = vweird.f32 %v955
    %vm963 = vweird.f32 %v957
    %vm964 = vmor %vm962, %vm963
    %v965 = vsel %vm964, %v957, %v961
    %v966 = vand.u32 2147483647, %v955
    %vm967 = vcmp.eq.f32.partialorder %v966, 8.507059e+37
    %v968 = vand.u32 %v955, 2147483648
    %v969 = vor.u32 1.1754944e-38, %v968
    %v970 = vsel %vm967, %v969, %v965
    %v971 = vmul.f32 1.0, %v970
    %v972 = vrcp.pop %v956
    %v973 = vmul.f32 %v956, %v972
    %v974 = vsub.f32 1.0, %v973
    %v975 = vmul.f32 %v972, %v974
    %v976 = vadd.f32 %v972, %v975
    %vm977 = vweird.f32 %v956
    %vm978 = vweird.f32 %v972
    %vm979 = vmor %vm977, %vm978
    %v980 = vsel %vm979, %v972, %v976
    %v981 = vand.u32 2147483647, %v956
    %vm982 = vcmp.eq.f32.partialorder %v981, 8.507059e+37
    %v983 = vand.u32 %v956, 2147483648
    %v984 = vor.u32 1.1754944e-38, %v983
    %v985 = vsel %vm982, %v984, %v980
    %v986 = vmul.f32 1.0, %v985
    %v987 = vtanh.pop %v916
    %v988 = vtanh.pop %v917
    %v989 = vmul.f32 %v971, %v779
    %v990 = vmul.f32 %v986, %v780
    %993 = vrot.lane.b32.xlu0 %v987, 32
    %v994 = vpop.permute.xlu0 %993
    %995 = vrot.lane.b32.xlu0 %v988, 32
    %v996 = vpop.permute.xlu0 %995
    %v999 = vmul.f32 %v971, %v994
    %v1000 = vmul.f32 %v986, %v996
    %1003 = vrot.lane.b32.xlu0 %v999, 32
    %v1004 = vpop.permute.xlu0 %1003
    %1005 = vrot.lane.b32.xlu0 %v1000, 32
    %v1006 = vpop.permute.xlu0 %1005
    %v1009 = vadd.f32 %v989, %v1004
    %v1010 = vadd.f32 %v990, %v1006
    %v1011 = vtanh.pop %v1009
    %v1012 = vtanh.pop %v1010
    %1015 = vrot.lane.b32.xlu0 %v1011, 32
    %v1016 = vpop.permute.xlu0 %1015
    %1017 = vrot.lane.b32.xlu0 %v1012, 32
    %v1018 = vpop.permute.xlu0 %1017
    %v1021 = vmul.f32 %v971, %v1016
    %v1022 = vmul.f32 %v986, %v1018
    %v1023 = vxor.u32 %v947, 2147483648
    %v1024 = vxor.u32 %v948, 2147483648
    %v1025 = vmul.f32 %v1023, 1.442695
    %v1026 = vpow.pop %v1025
    %v1027 = vmul.f32 %v1024, 1.442695
    %v1028 = vpow.pop %v1027
    %v1029 = vadd.f32 %v1026, 1.0
    %v1030 = vadd.f32 %v1028, 1.0
    %v1031 = vrcp.pop %v1029
    %v1032 = vmul.f32 %v1029, %v1031
    %v1033 = vsub.f32 1.0, %v1032
    %v1034 = vmul.f32 %v1031, %v1033
    %v1035 = vadd.f32 %v1031, %v1034
    %vm1036 = vweird.f32 %v1029
    %vm1037 = vweird.f32 %v1031
    %vm1038 = vmor %vm1036, %vm1037
    %v1039 = vsel %vm1038, %v1031, %v1035
    %v1040 = vand.u32 2147483647, %v1029
    %vm1041 = vcmp.eq.f32.partialorder %v1040, 8.507059e+37
    %v1042 = vand.u32 %v1029, 2147483648
    %v1043 = vor.u32 1.1754944e-38, %v1042
    %v1044 = vsel %vm1041, %v1043, %v1039
    %v1045 = vmul.f32 1.0, %v1044
    %v1046 = vrcp.pop %v1030
    %v1047 = vmul.f32 %v1030, %v1046
    %v1048 = vsub.f32 1.0, %v1047
    %v1049 = vmul.f32 %v1046, %v1048
    %v1050 = vadd.f32 %v1046, %v1049
    %vm1051 = vweird.f32 %v1030
    %vm1052 = vweird.f32 %v1046
    %vm1053 = vmor %vm1051, %vm1052
    %v1054 = vsel %vm1053, %v1046, %v1050
    %v1055 = vand.u32 2147483647, %v1030
    %vm1056 = vcmp.eq.f32.partialorder %v1055, 8.507059e+37
    %v1057 = vand.u32 %v1030, 2147483648
    %v1058 = vor.u32 1.1754944e-38, %v1057
    %v1059 = vsel %vm1056, %v1058, %v1054
    %v1060 = vmul.f32 1.0, %v1059
    %v1061 = vtanh.pop %v947
    %v1062 = vtanh.pop %v948
    %v1063 = vmul.f32 %v1045, %v853
    %v1064 = vmul.f32 %v1060, %v854
    %1067 = vrot.lane.b32.xlu0 %v1061, 32
    %v1068 = vpop.permute.xlu0 %1067
    %1069 = vrot.lane.b32.xlu0 %v1062, 32
    %v1070 = vpop.permute.xlu0 %1069
    %v1073 = vmul.f32 %v1045, %v1068
    %v1074 = vmul.f32 %v1060, %v1070
    %1077 = vrot.lane.b32.xlu0 %v1073, 32
    %v1078 = vpop.permute.xlu0 %1077
    %1079 = vrot.lane.b32.xlu0 %v1074, 32
    %v1080 = vpop.permute.xlu0 %1079
    %v1083 = vadd.f32 %v1063, %v1078
    %v1084 = vadd.f32 %v1064, %v1080
    %v1085 = vtanh.pop %v1083
    %v1086 = vtanh.pop %v1084
    %1089 = vrot.lane.b32.xlu0 %v1085, 32
    %v1090 = vpop.permute.xlu0 %1089
    %1091 = vrot.lane.b32.xlu0 %v1086, 32
    %v1092 = vpop.permute.xlu0 %1091
    %v1095 = vmul.f32 %v1045, %v1090
    %v1096 = vmul.f32 %v1060, %v1092
    %1099 = vrot.lane.b32.xlu0 %v1021, 64
    %v1100 = vpop.permute.xlu0 %1099
    %1101 = vrot.lane.b32.xlu0 %v1022, 64
    %v1102 = vpop.permute.xlu0 %1101
    %1105 = vst.msk [vmem:[#allocation3 + $0x20] sm:$0xff] %vm301, %v1100
    %1106 = vst.msk [vmem:[#allocation3 + $0x28] sm:$0xff] %vm301, %v1102
    %1109 = vrot.lane.b32.xlu0 %v1095, 64
    %v1110 = vpop.permute.xlu0 %1109
    %1111 = vrot.lane.b32.xlu0 %v1096, 64
    %v1112 = vpop.permute.xlu0 %1111
    %1115 = vst.msk [vmem:[#allocation4 + $0x10] sm:$0xff] %vm301, %v1110
    %1116 = vst.msk [vmem:[#allocation4 + $0x18] sm:$0xff] %vm301, %v1112
    %v1117 = vld [vmem:[#allocation2 + $0x60] sm:$0xff]
    %v1118 = vld [vmem:[#allocation2 + $0x70] sm:$0xff]
    %v1119 = vsel %vm301, %v1100, 0
    %v1121 = vsel %vm301, %v1102, 0
    %1123 = vmatpush.msra.mxu0 0.0
    %1124 = vmatpush.msra.mxu0 0.0
    %1125 = vmatpush.msra.mxu0 0.0
    %1126 = vmatpush.msra.mxu0 0.0
    %1127 = vmatpush.msra.mxu0 0.0
    %1128 = vmatpush.msra.mxu0 0.0
    %1129 = vmatpush.msra.mxu0 0.0
    %1130 = vmatpush.msra.mxu0 0.0
    %1131 = vmatpush.msra.mxu0 0.0
    %1132 = vmatpush.msra.mxu0 0.0
    %1133 = vmatpush.msra.mxu0 0.0
    %1134 = vmatpush.msra.mxu0 0.0
    %1135 = vmatpush.msra.mxu0 %v427
    %1136 = vmatpush.msra.mxu0 %v426
    %1137 = vmatpush.msra.mxu0 %v425
    %1138 = vmatpush.msra.mxu0 %v424
    %1139 = vmatmul.f32.gmra.mxu0 %v1119
    %v1140 = vpop.f32.mrf.mxu0
    %v1141 = vadd.f32 0.0, %v1140
    %1142 = vmatmul.f32.gmra.mxu0 %v1121
    %v1143 = vpop.f32.mrf.mxu0
    %v1144 = vadd.f32 0.0, %v1143
    %1145 = vdwg.mxu0
    %v1146 = vadd.f32 %v1117, %v1141
    %v1147 = vadd.f32 %v1118, %v1144
    %v1148 = vld [vmem:[#allocation2 + $0x8] sm:$0xff]
    %v1149 = vld [vmem:[#allocation2 + $0x18] sm:$0xff]
    %v1150 = vsel %vm301, %v1110, 0
    %v1152 = vsel %vm301, %v1112, 0
    %1154 = vmatpush.msra.mxu0 0.0
    %1155 = vmatpush.msra.mxu0 0.0
    %1156 = vmatpush.msra.mxu0 0.0
    %1157 = vmatpush.msra.mxu0 0.0
    %1158 = vmatpush.msra.mxu0 0.0
    %1159 = vmatpush.msra.mxu0 0.0
    %1160 = vmatpush.msra.mxu0 0.0
    %1161 = vmatpush.msra.mxu0 0.0
    %1162 = vmatpush.msra.mxu0 0.0
    %1163 = vmatpush.msra.mxu0 0.0
    %1164 = vmatpush.msra.mxu0 0.0
    %1165 = vmatpush.msra.mxu0 0.0
    %1166 = vmatpush.msra.mxu0 %v431
    %1167 = vmatpush.msra.mxu0 %v430
    %1168 = vmatpush.msra.mxu0 %v429
    %1169 = vmatpush.msra.mxu0 %v428
    %1170 = vmatmul.f32.gmra.mxu0 %v1150
    %v1171 = vpop.f32.mrf.mxu0
    %v1172 = vadd.f32 0.0, %v1171
    %1173 = vmatmul.f32.gmra.mxu0 %v1152
    %v1174 = vpop.f32.mrf.mxu0
    %v1175 = vadd.f32 0.0, %v1174
    %1176 = vdwg.mxu0
    %v1177 = vadd.f32 %v1148, %v1172
    %v1178 = vadd.f32 %v1149, %v1175
    %v1179 = vxor.u32 %v1146, 2147483648
    %v1180 = vxor.u32 %v1147, 2147483648
    %v1181 = vmul.f32 %v1179, 1.442695
    %v1182 = vpow.pop %v1181
    %v1183 = vmul.f32 %v1180, 1.442695
    %v1184 = vpow.pop %v1183
    %v1185 = vadd.f32 %v1182, 1.0
    %v1186 = vadd.f32 %v1184, 1.0
    %v1187 = vrcp.pop %v1185
    %v1188 = vmul.f32 %v1185, %v1187
    %v1189 = vsub.f32 1.0, %v1188
    %v1190 = vmul.f32 %v1187, %v1189
    %v1191 = vadd.f32 %v1187, %v1190
    %vm1192 = vweird.f32 %v1185
    %vm1193 = vweird.f32 %v1187
    %vm1194 = vmor %vm1192, %vm1193
    %v1195 = vsel %vm1194, %v1187, %v1191
    %v1196 = vand.u32 2147483647, %v1185
    %vm1197 = vcmp.eq.f32.partialorder %v1196, 8.507059e+37
    %v1198 = vand.u32 %v1185, 2147483648
    %v1199 = vor.u32 1.1754944e-38, %v1198
    %v1200 = vsel %vm1197, %v1199, %v1195
    %v1201 = vmul.f32 1.0, %v1200
    %v1202 = vrcp.pop %v1186
    %v1203 = vmul.f32 %v1186, %v1202
    %v1204 = vsub.f32 1.0, %v1203
    %v1205 = vmul.f32 %v1202, %v1204
    %v1206 = vadd.f32 %v1202, %v1205
    %vm1207 = vweird.f32 %v1186
    %vm1208 = vweird.f32 %v1202
    %vm1209 = vmor %vm1207, %vm1208
    %v1210 = vsel %vm1209, %v1202, %v1206
    %v1211 = vand.u32 2147483647, %v1186
    %vm1212 = vcmp.eq.f32.partialorder %v1211, 8.507059e+37
    %v1213 = vand.u32 %v1186, 2147483648
    %v1214 = vor.u32 1.1754944e-38, %v1213
    %v1215 = vsel %vm1212, %v1214, %v1210
    %v1216 = vmul.f32 1.0, %v1215
    %v1217 = vtanh.pop %v1146
    %v1218 = vtanh.pop %v1147
    %v1219 = vmul.f32 %v1201, %v1009
    %v1220 = vmul.f32 %v1216, %v1010
    %1223 = vrot.lane.b32.xlu0 %v1217, 32
    %v1224 = vpop.permute.xlu0 %1223
    %1225 = vrot.lane.b32.xlu0 %v1218, 32
    %v1226 = vpop.permute.xlu0 %1225
    %v1229 = vmul.f32 %v1201, %v1224
    %v1230 = vmul.f32 %v1216, %v1226
    %1233 = vrot.lane.b32.xlu0 %v1229, 32
    %v1234 = vpop.permute.xlu0 %1233
    %1235 = vrot.lane.b32.xlu0 %v1230, 32
    %v1236 = vpop.permute.xlu0 %1235
    %v1239 = vadd.f32 %v1219, %v1234
    %v1240 = vadd.f32 %v1220, %v1236
    %v1241 = vtanh.pop %v1239
    %v1242 = vtanh.pop %v1240
    %1245 = vrot.lane.b32.xlu0 %v1241, 32
    %v1246 = vpop.permute.xlu0 %1245
    %1247 = vrot.lane.b32.xlu0 %v1242, 32
    %v1248 = vpop.permute.xlu0 %1247
    %v1251 = vmul.f32 %v1201, %v1246
    %v1252 = vmul.f32 %v1216, %v1248
    %v1253 = vxor.u32 %v1177, 2147483648
    %v1254 = vxor.u32 %v1178, 2147483648
    %v1255 = vmul.f32 %v1253, 1.442695
    %v1256 = vpow.pop %v1255
    %v1257 = vmul.f32 %v1254, 1.442695
    %v1258 = vpow.pop %v1257
    %v1259 = vadd.f32 %v1256, 1.0
    %v1260 = vadd.f32 %v1258, 1.0
    %v1261 = vrcp.pop %v1259
    %v1262 = vmul.f32 %v1259, %v1261
    %v1263 = vsub.f32 1.0, %v1262
    %v1264 = vmul.f32 %v1261, %v1263
    %v1265 = vadd.f32 %v1261, %v1264
    %vm1266 = vweird.f32 %v1259
    %vm1267 = vweird.f32 %v1261
    %vm1268 = vmor %vm1266, %vm1267
    %v1269 = vsel %vm1268, %v1261, %v1265
    %v1270 = vand.u32 2147483647, %v1259
    %vm1271 = vcmp.eq.f32.partialorder %v1270, 8.507059e+37
    %v1272 = vand.u32 %v1259, 2147483648
    %v1273 = vor.u32 1.1754944e-38, %v1272
    %v1274 = vsel %vm1271, %v1273, %v1269
    %v1275 = vmul.f32 1.0, %v1274
    %v1276 = vrcp.pop %v1260
    %v1277 = vmul.f32 %v1260, %v1276
    %v1278 = vsub.f32 1.0, %v1277
    %v1279 = vmul.f32 %v1276, %v1278
    %v1280 = vadd.f32 %v1276, %v1279
    %vm1281 = vweird.f32 %v1260
    %vm1282 = vweird.f32 %v1276
    %vm1283 = vmor %vm1281, %vm1282
    %v1284 = vsel %vm1283, %v1276, %v1280
    %v1285 = vand.u32 2147483647, %v1260
    %vm1286 = vcmp.eq.f32.partialorder %v1285, 8.507059e+37
    %v1287 = vand.u32 %v1260, 2147483648
    %v1288 = vor.u32 1.1754944e-38, %v1287
    %v1289 = vsel %vm1286, %v1288, %v1284
    %v1290 = vmul.f32 1.0, %v1289
    %v1291 = vtanh.pop %v1177
    %v1292 = vtanh.pop %v1178
    %v1293 = vmul.f32 %v1275, %v1083
    %v1294 = vmul.f32 %v1290, %v1084
    %1297 = vrot.lane.b32.xlu0 %v1291, 32
    %v1298 = vpop.permute.xlu0 %1297
    %1299 = vrot.lane.b32.xlu0 %v1292, 32
    %v1300 = vpop.permute.xlu0 %1299
    %v1303 = vmul.f32 %v1275, %v1298
    %v1304 = vmul.f32 %v1290, %v1300
    %1307 = vrot.lane.b32.xlu0 %v1303, 32
    %v1308 = vpop.permute.xlu0 %1307
    %1309 = vrot.lane.b32.xlu0 %v1304, 32
    %v1310 = vpop.permute.xlu0 %1309
    %v1313 = vadd.f32 %v1293, %v1308
    %v1314 = vadd.f32 %v1294, %v1310
    %v1315 = vtanh.pop %v1313
    %v1316 = vtanh.pop %v1314
    %1319 = vrot.lane.b32.xlu0 %v1315, 32
    %v1320 = vpop.permute.xlu0 %1319
    %1321 = vrot.lane.b32.xlu0 %v1316, 32
    %v1322 = vpop.permute.xlu0 %1321
    %v1325 = vmul.f32 %v1275, %v1320
    %v1326 = vmul.f32 %v1290, %v1322
    %1329 = vrot.lane.b32.xlu0 %v1251, 64
    %v1330 = vpop.permute.xlu0 %1329
    %1331 = vrot.lane.b32.xlu0 %v1252, 64
    %v1332 = vpop.permute.xlu0 %1331
    %1335 = vst.msk [vmem:[#allocation3 + $0x30] sm:$0xff] %vm301, %v1330
    %1336 = vst.msk [vmem:[#allocation3 + $0x38] sm:$0xff] %vm301, %v1332
    %1339 = vrot.lane.b32.xlu0 %v1325, 64
    %v1340 = vpop.permute.xlu0 %1339
    %1341 = vrot.lane.b32.xlu0 %v1326, 64
    %v1342 = vpop.permute.xlu0 %1341
    %1345 = vst.msk [vmem:[#allocation4] sm:$0xff] %vm301, %v1340
    %1346 = vst.msk [vmem:[#allocation4 + $0x8] sm:$0xff] %vm301, %v1342
    %v1347 = vld [vmem:[%s9] sm:$0x3]
    %v1348 = vld [vmem:[#allocation3] sm:$0xff]
    %v1349 = vld [vmem:[#allocation3 + $0x8] sm:$0xff]
    %v1350 = vld [vmem:[#allocation3 + $0x10] sm:$0xff]
    %v1351 = vld [vmem:[#allocation3 + $0x18] sm:$0xff]
    %v1352 = vld [vmem:[#allocation3 + $0x20] sm:$0xff]
    %v1353 = vld [vmem:[#allocation3 + $0x28] sm:$0xff]
    %v1354 = vld [vmem:[#allocation3 + $0x30] sm:$0xff]
    %v1355 = vld [vmem:[#allocation3 + $0x38] sm:$0xff]
    %v1356 = vld [vmem:[%s6] sm:$0xff]
    %v1357 = vld [vmem:[%s6 + $0x8] sm:$0xff]
    %v1358 = vld [vmem:[%s6 + $0x10] sm:$0xff]
    %v1359 = vld [vmem:[%s6 + $0x18] sm:$0xff]
    %v1360 = vld [vmem:[%s6 + $0x20] sm:$0xff]
    %v1361 = vld [vmem:[%s6 + $0x28] sm:$0xff]
    %v1362 = vld [vmem:[%s6 + $0x30] sm:$0xff]
    %v1363 = vld [vmem:[%s6 + $0x38] sm:$0xff]
    %v1364 = vld [vmem:[#allocation4] sm:$0xff]
    %v1365 = vld [vmem:[#allocation4 + $0x8] sm:$0xff]
    %v1366 = vld [vmem:[#allocation4 + $0x10] sm:$0xff]
    %v1367 = vld [vmem:[#allocation4 + $0x18] sm:$0xff]
    %v1368 = vld [vmem:[#allocation4 + $0x20] sm:$0xff]
    %v1369 = vld [vmem:[#allocation4 + $0x28] sm:$0xff]
    %v1370 = vld [vmem:[#allocation4 + $0x30] sm:$0xff]
    %v1371 = vld [vmem:[#allocation4 + $0x38] sm:$0xff]
    %v1372 = vld [vmem:[%s6 + $0x40] sm:$0xff]
    %v1373 = vld [vmem:[%s6 + $0x48] sm:$0xff]
    %v1374 = vld [vmem:[%s6 + $0x50] sm:$0xff]
    %v1375 = vld [vmem:[%s6 + $0x58] sm:$0xff]
    %v1376 = vld [vmem:[%s6 + $0x60] sm:$0xff]
    %v1377 = vld [vmem:[%s6 + $0x68] sm:$0xff]
    %v1378 = vld [vmem:[%s6 + $0x70] sm:$0xff]
    %v1379 = vld [vmem:[%s6 + $0x78] sm:$0xff]
    %v1381 = vsel %vm301, %v1364, 0
    %v1384 = vsel %vm301, %v1365, 0
    %v1387 = vsel %vm301, %v1366, 0
    %v1390 = vsel %vm301, %v1367, 0
    %v1393 = vsel %vm301, %v1368, 0
    %v1396 = vsel %vm301, %v1369, 0
    %v1399 = vsel %vm301, %v1370, 0
    %v1402 = vsel %vm301, %v1371, 0
    %1404 = vmatpush.msra.mxu0 0.0
    %1405 = vmatpush.msra.mxu0 0.0
    %1406 = vmatpush.msra.mxu0 0.0
    %1407 = vmatpush.msra.mxu0 0.0
    %1408 = vmatpush.msra.mxu0 0.0
    %1409 = vmatpush.msra.mxu0 0.0
    %1410 = vmatpush.msra.mxu0 0.0
    %1411 = vmatpush.msra.mxu0 0.0
    %1412 = vmatpush.msra.mxu0 0.0
    %1413 = vmatpush.msra.mxu0 0.0
    %1414 = vmatpush.msra.mxu0 0.0
    %1415 = vmatpush.msra.mxu0 0.0
    %1416 = vmatpush.msra.mxu0 %v1378
    %1417 = vmatpush.msra.mxu0 %v1376
    %1418 = vmatpush.msra.mxu0 %v1374
    %1419 = vmatpush.msra.mxu0 %v1372
    %1420 = vmatmul.f32.gmra.mxu0 %v1381
    %v1421 = vpop.f32.mrf.mxu0
    %v1422 = vadd.f32 0.0, %v1421
    %1423 = vmatmul.f32.gmra.mxu0 %v1384
    %v1424 = vpop.f32.mrf.mxu0
    %v1425 = vadd.f32 0.0, %v1424
    %1426 = vmatmul.f32.gmra.mxu0 %v1387
    %v1427 = vpop.f32.mrf.mxu0
    %v1428 = vadd.f32 0.0, %v1427
    %1429 = vmatmul.f32.gmra.mxu0 %v1390
    %v1430 = vpop.f32.mrf.mxu0
    %v1431 = vadd.f32 0.0, %v1430
    %1432 = vmatmul.f32.gmra.mxu0 %v1393
    %v1433 = vpop.f32.mrf.mxu0
    %v1434 = vadd.f32 0.0, %v1433
    %1435 = vmatmul.f32.gmra.mxu0 %v1396
    %v1436 = vpop.f32.mrf.mxu0
    %v1437 = vadd.f32 0.0, %v1436
    %1438 = vmatmul.f32.gmra.mxu0 %v1399
    %v1439 = vpop.f32.mrf.mxu0
    %v1440 = vadd.f32 0.0, %v1439
    %1441 = vmatmul.f32.gmra.mxu0 %v1402
    %v1442 = vpop.f32.mrf.mxu0
    %v1443 = vadd.f32 0.0, %v1442
    %1444 = vdwg.mxu0
    %1445 = vmatpush.msra.mxu0 0.0
    %1446 = vmatpush.msra.mxu0 0.0
    %1447 = vmatpush.msra.mxu0 0.0
    %1448 = vmatpush.msra.mxu0 0.0
    %1449 = vmatpush.msra.mxu0 0.0
    %1450 = vmatpush.msra.mxu0 0.0
    %1451 = vmatpush.msra.mxu0 0.0
    %1452 = vmatpush.msra.mxu0 0.0
    %1453 = vmatpush.msra.mxu0 0.0
    %1454 = vmatpush.msra.mxu0 0.0
    %1455 = vmatpush.msra.mxu0 0.0
    %1456 = vmatpush.msra.mxu0 0.0
    %1457 = vmatpush.msra.mxu0 %v1379
    %1458 = vmatpush.msra.mxu0 %v1377
    %1459 = vmatpush.msra.mxu0 %v1375
    %1460 = vmatpush.msra.mxu0 %v1373
    %1461 = vmatmul.f32.gmra.mxu0 %v1381
    %v1462 = vpop.f32.mrf.mxu0
    %v1463 = vadd.f32 0.0, %v1462
    %1464 = vmatmul.f32.gmra.mxu0 %v1384
    %v1465 = vpop.f32.mrf.mxu0
    %v1466 = vadd.f32 0.0, %v1465
    %1467 = vmatmul.f32.gmra.mxu0 %v1387
    %v1468 = vpop.f32.mrf.mxu0
    %v1469 = vadd.f32 0.0, %v1468
    %1470 = vmatmul.f32.gmra.mxu0 %v1390
    %v1471 = vpop.f32.mrf.mxu0
    %v1472 = vadd.f32 0.0, %v1471
    %1473 = vmatmul.f32.gmra.mxu0 %v1393
    %v1474 = vpop.f32.mrf.mxu0
    %v1475 = vadd.f32 0.0, %v1474
    %1476 = vmatmul.f32.gmra.mxu0 %v1396
    %v1477 = vpop.f32.mrf.mxu0
    %v1478 = vadd.f32 0.0, %v1477
    %1479 = vmatmul.f32.gmra.mxu0 %v1399
    %v1480 = vpop.f32.mrf.mxu0
    %v1481 = vadd.f32 0.0, %v1480
    %1482 = vmatmul.f32.gmra.mxu0 %v1402
    %v1483 = vpop.f32.mrf.mxu0
    %v1484 = vadd.f32 0.0, %v1483
    %1485 = vdwg.mxu0
    %v1487 = vsel %vm301, %v1348, 0
    %v1490 = vsel %vm301, %v1349, 0
    %v1493 = vsel %vm301, %v1350, 0
    %v1496 = vsel %vm301, %v1351, 0
    %v1499 = vsel %vm301, %v1352, 0
    %v1502 = vsel %vm301, %v1353, 0
    %v1505 = vsel %vm301, %v1354, 0
    %v1508 = vsel %vm301, %v1355, 0
    %1510 = vmatpush.msra.mxu0 0.0
    %1511 = vmatpush.msra.mxu0 0.0
    %1512 = vmatpush.msra.mxu0 0.0
    %1513 = vmatpush.msra.mxu0 0.0
    %1514 = vmatpush.msra.mxu0 0.0
    %1515 = vmatpush.msra.mxu0 0.0
    %1516 = vmatpush.msra.mxu0 0.0
    %1517 = vmatpush.msra.mxu0 0.0
    %1518 = vmatpush.msra.mxu0 0.0
    %1519 = vmatpush.msra.mxu0 0.0
    %1520 = vmatpush.msra.mxu0 0.0
    %1521 = vmatpush.msra.mxu0 0.0
    %1522 = vmatpush.msra.mxu0 %v1362
    %1523 = vmatpush.msra.mxu0 %v1360
    %1524 = vmatpush.msra.mxu0 %v1358
    %1525 = vmatpush.msra.mxu0 %v1356
    %1526 = vmatmul.f32.gmra.mxu0 %v1487
    %v1527 = vpop.f32.mrf.mxu0
    %v1528 = vadd.f32 %v1422, %v1527
    %1529 = vmatmul.f32.gmra.mxu0 %v1490
    %v1530 = vpop.f32.mrf.mxu0
    %v1531 = vadd.f32 %v1425, %v1530
    %1532 = vmatmul.f32.gmra.mxu0 %v1493
    %v1533 = vpop.f32.mrf.mxu0
    %v1534 = vadd.f32 %v1428, %v1533
    %1535 = vmatmul.f32.gmra.mxu0 %v1496
    %v1536 = vpop.f32.mrf.mxu0
    %v1537 = vadd.f32 %v1431, %v1536
    %1538 = vmatmul.f32.gmra.mxu0 %v1499
    %v1539 = vpop.f32.mrf.mxu0
    %v1540 = vadd.f32 %v1434, %v1539
    %1541 = vmatmul.f32.gmra.mxu0 %v1502
    %v1542 = vpop.f32.mrf.mxu0
    %v1543 = vadd.f32 %v1437, %v1542
    %1544 = vmatmul.f32.gmra.mxu0 %v1505
    %v1545 = vpop.f32.mrf.mxu0
    %v1546 = vadd.f32 %v1440, %v1545
    %1547 = vmatmul.f32.gmra.mxu0 %v1508
    %v1548 = vpop.f32.mrf.mxu0
    %v1549 = vadd.f32 %v1443, %v1548
    %1550 = vdwg.mxu0
    %1551 = vmatpush.msra.mxu0 0.0
    %1552 = vmatpush.msra.mxu0 0.0
    %1553 = vmatpush.msra.mxu0 0.0
    %1554 = vmatpush.msra.mxu0 0.0
    %1555 = vmatpush.msra.mxu0 0.0
    %1556 = vmatpush.msra.mxu0 0.0
    %1557 = vmatpush.msra.mxu0 0.0
    %1558 = vmatpush.msra.mxu0 0.0
    %1559 = vmatpush.msra.mxu0 0.0
    %1560 = vmatpush.msra.mxu0 0.0
    %1561 = vmatpush.msra.mxu0 0.0
    %1562 = vmatpush.msra.mxu0 0.0
    %1563 = vmatpush.msra.mxu0 %v1363
    %1564 = vmatpush.msra.mxu0 %v1361
    %1565 = vmatpush.msra.mxu0 %v1359
    %1566 = vmatpush.msra.mxu0 %v1357
    %1567 = vmatmul.f32.gmra.mxu0 %v1487
    %v1568 = vpop.f32.mrf.mxu0
    %v1569 = vadd.f32 %v1463, %v1568
    %1570 = vmatmul.f32.gmra.mxu0 %v1490
    %v1571 = vpop.f32.mrf.mxu0
    %v1572 = vadd.f32 %v1466, %v1571
    %1573 = vmatmul.f32.gmra.mxu0 %v1493
    %v1574 = vpop.f32.mrf.mxu0
    %v1575 = vadd.f32 %v1469, %v1574
    %1576 = vmatmul.f32.gmra.mxu0 %v1496
    %v1577 = vpop.f32.mrf.mxu0
    %v1578 = vadd.f32 %v1472, %v1577
    %1579 = vmatmul.f32.gmra.mxu0 %v1499
    %v1580 = vpop.f32.mrf.mxu0
    %v1581 = vadd.f32 %v1475, %v1580
    %1582 = vmatmul.f32.gmra.mxu0 %v1502
    %v1583 = vpop.f32.mrf.mxu0
    %v1584 = vadd.f32 %v1478, %v1583
    %1585 = vmatmul.f32.gmra.mxu0 %v1505
    %v1586 = vpop.f32.mrf.mxu0
    %v1587 = vadd.f32 %v1481, %v1586
    %1588 = vmatmul.f32.gmra.mxu0 %v1508
    %v1589 = vpop.f32.mrf.mxu0
    %v1590 = vadd.f32 %v1484, %v1589
    %1591 = vdwg.mxu0
    %v1593 = vperm.slane %v1347, 0
    %v1594 = vperm.slane %v1347, 1
    %v1597 = vadd.f32 %v1528, %v1593
    %v1598 = vadd.f32 %v1569, %v1594
    %v1599 = vadd.f32 %v1531, %v1593
    %v1600 = vadd.f32 %v1572, %v1594
    %v1601 = vadd.f32 %v1534, %v1593
    %v1602 = vadd.f32 %v1575, %v1594
    %v1603 = vadd.f32 %v1537, %v1593
    %v1604 = vadd.f32 %v1578, %v1594
    %v1605 = vadd.f32 %v1540, %v1593
    %v1606 = vadd.f32 %v1581, %v1594
    %v1607 = vadd.f32 %v1543, %v1593
    %v1608 = vadd.f32 %v1584, %v1594
    %v1609 = vadd.f32 %v1546, %v1593
    %v1610 = vadd.f32 %v1587, %v1594
    %v1611 = vadd.f32 %v1549, %v1593
    %v1612 = vadd.f32 %v1590, %v1594
    %1613 = vst [vmem:[#allocation2] sm:$0xff] %v1597
    %1614 = vst [vmem:[#allocation2 + $0x8] sm:$0xff] %v1598
    %1615 = vst [vmem:[#allocation2 + $0x10] sm:$0xff] %v1599
    %1616 = vst [vmem:[#allocation2 + $0x18] sm:$0xff] %v1600
    %1617 = vst [vmem:[#allocation2 + $0x20] sm:$0xff] %v1601
    %1618 = vst [vmem:[#allocation2 + $0x28] sm:$0xff] %v1602
    %1619 = vst [vmem:[#allocation2 + $0x30] sm:$0xff] %v1603
    %1620 = vst [vmem:[#allocation2 + $0x38] sm:$0xff] %v1604
    %1621 = vst [vmem:[#allocation2 + $0x40] sm:$0xff] %v1605
    %1622 = vst [vmem:[#allocation2 + $0x48] sm:$0xff] %v1606
    %1623 = vst [vmem:[#allocation2 + $0x50] sm:$0xff] %v1607
    %1624 = vst [vmem:[#allocation2 + $0x58] sm:$0xff] %v1608
    %1625 = vst [vmem:[#allocation2 + $0x60] sm:$0xff] %v1609
    %1626 = vst [vmem:[#allocation2 + $0x68] sm:$0xff] %v1610
    %1627 = vst [vmem:[#allocation2 + $0x70] sm:$0xff] %v1611
    %1628 = vst [vmem:[#allocation2 + $0x78] sm:$0xff] %v1612
    %v1629 = vld [vmem:[#allocation12] sm:$0xff]
    %v1630 = vld [vmem:[#allocation12 + $0x8] sm:$0xff]
    %v1631 = vld [vmem:[#allocation12 + $0x10] sm:$0xff]
    %v1632 = vld [vmem:[#allocation12 + $0x18] sm:$0xff]
    %v1633 = vld [vmem:[#allocation13] sm:$0xff]
    %v1634 = vld [vmem:[#allocation13 + $0x8] sm:$0xff]
    %v1635 = vld [vmem:[#allocation13 + $0x10] sm:$0xff]
    %v1636 = vld [vmem:[#allocation13 + $0x18] sm:$0xff]
    %v1637 = vld [vmem:[#allocation2] sm:$0xff]
    %v1638 = vld [vmem:[#allocation2 + $0x10] sm:$0xff]
    %1639 = vmatpush.msra.mxu0 0.0
    %1640 = vmatpush.msra.mxu0 0.0
    %1641 = vmatpush.msra.mxu0 0.0
    %1642 = vmatpush.msra.mxu0 0.0
    %1643 = vmatpush.msra.mxu0 0.0
    %1644 = vmatpush.msra.mxu0 0.0
    %1645 = vmatpush.msra.mxu0 0.0
    %1646 = vmatpush.msra.mxu0 0.0
    %1647 = vmatpush.msra.mxu0 0.0
    %1648 = vmatpush.msra.mxu0 0.0
    %1649 = vmatpush.msra.mxu0 0.0
    %1650 = vmatpush.msra.mxu0 0.0
    %1651 = vmatpush.msra.mxu0 %v1632
    %1652 = vmatpush.msra.mxu0 %v1631
    %1653 = vmatpush.msra.mxu0 %v1630
    %1654 = vmatpush.msra.mxu0 %v1629
    %1655 = vmatmul.f32.gmra.mxu0 %v435
    %v1656 = vpop.f32.mrf.mxu0
    %v1657 = vadd.f32 0.0, %v1656
    %1658 = vmatmul.f32.gmra.mxu0 %v435
    %v1659 = vpop.f32.mrf.mxu0
    %v1660 = vadd.f32 0.0, %v1659
    %1661 = vdwg.mxu0
    %v1662 = vadd.f32 %v1637, %v1657
    %v1663 = vadd.f32 %v1638, %v1660
    %v1664 = vld [vmem:[#allocation2 + $0x68] sm:$0xff]
    %v1665 = vld [vmem:[#allocation2 + $0x78] sm:$0xff]
    %1666 = vmatpush.msra.mxu0 0.0
    %1667 = vmatpush.msra.mxu0 0.0
    %1668 = vmatpush.msra.mxu0 0.0
    %1669 = vmatpush.msra.mxu0 0.0
    %1670 = vmatpush.msra.mxu0 0.0
    %1671 = vmatpush.msra.mxu0 0.0
    %1672 = vmatpush.msra.mxu0 0.0
    %1673 = vmatpush.msra.mxu0 0.0
    %1674 = vmatpush.msra.mxu0 0.0
    %1675 = vmatpush.msra.mxu0 0.0
    %1676 = vmatpush.msra.mxu0 0.0
    %1677 = vmatpush.msra.mxu0 0.0
    %1678 = vmatpush.msra.mxu0 %v1636
    %1679 = vmatpush.msra.mxu0 %v1635
    %1680 = vmatpush.msra.mxu0 %v1634
    %1681 = vmatpush.msra.mxu0 %v1633
    %1682 = vmatmul.f32.gmra.mxu0 %v435
    %v1683 = vpop.f32.mrf.mxu0
    %v1684 = vadd.f32 0.0, %v1683
    %1685 = vmatmul.f32.gmra.mxu0 %v435
    %v1686 = vpop.f32.mrf.mxu0
    %v1687 = vadd.f32 0.0, %v1686
    %1688 = vdwg.mxu0
    %v1689 = vadd.f32 %v1664, %v1684
    %v1690 = vadd.f32 %v1665, %v1687
    %v1691 = vxor.u32 %v1662, 2147483648
    %v1692 = vxor.u32 %v1663, 2147483648
    %v1693 = vmul.f32 %v1691, 1.442695
    %v1694 = vpow.pop %v1693
    %v1695 = vmul.f32 %v1692, 1.442695
    %v1696 = vpow.pop %v1695
    %v1697 = vadd.f32 %v1694, 1.0
    %v1698 = vadd.f32 %v1696, 1.0
    %v1699 = vrcp.pop %v1697
    %v1700 = vmul.f32 %v1697, %v1699
    %v1701 = vsub.f32 1.0, %v1700
    %v1702 = vmul.f32 %v1699, %v1701
    %v1703 = vadd.f32 %v1699, %v1702
    %vm1704 = vweird.f32 %v1697
    %vm1705 = vweird.f32 %v1699
    %vm1706 = vmor %vm1704, %vm1705
    %v1707 = vsel %vm1706, %v1699, %v1703
    %v1708 = vand.u32 2147483647, %v1697
    %vm1709 = vcmp.eq.f32.partialorder %v1708, 8.507059e+37
    %v1710 = vand.u32 %v1697, 2147483648
    %v1711 = vor.u32 1.1754944e-38, %v1710
    %v1712 = vsel %vm1709, %v1711, %v1707
    %v1713 = vmul.f32 1.0, %v1712
    %v1714 = vrcp.pop %v1698
    %v1715 = vmul.f32 %v1698, %v1714
    %v1716 = vsub.f32 1.0, %v1715
    %v1717 = vmul.f32 %v1714, %v1716
    %v1718 = vadd.f32 %v1714, %v1717
    %vm1719 = vweird.f32 %v1698
    %vm1720 = vweird.f32 %v1714
    %vm1721 = vmor %vm1719, %vm1720
    %v1722 = vsel %vm1721, %v1714, %v1718
    %v1723 = vand.u32 2147483647, %v1698
    %vm1724 = vcmp.eq.f32.partialorder %v1723, 8.507059e+37
    %v1725 = vand.u32 %v1698, 2147483648
    %v1726 = vor.u32 1.1754944e-38, %v1725
    %v1727 = vsel %vm1724, %v1726, %v1722
    %v1728 = vmul.f32 1.0, %v1727
    %v1729 = vtanh.pop %v1662
    %v1730 = vtanh.pop %v1663
    %v1731 = vmul.f32 %v1713, 0.0
    %v1732 = vmul.f32 %v1728, 0.0
    %1735 = vrot.lane.b32.xlu0 %v1729, 32
    %v1736 = vpop.permute.xlu0 %1735
    %1737 = vrot.lane.b32.xlu0 %v1730, 32
    %v1738 = vpop.permute.xlu0 %1737
    %v1741 = vmul.f32 %v1713, %v1736
    %v1742 = vmul.f32 %v1728, %v1738
    %1745 = vrot.lane.b32.xlu0 %v1741, 32
    %v1746 = vpop.permute.xlu0 %1745
    %1747 = vrot.lane.b32.xlu0 %v1742, 32
    %v1748 = vpop.permute.xlu0 %1747
    %v1751 = vadd.f32 %v1731, %v1746
    %v1752 = vadd.f32 %v1732, %v1748
    %v1753 = vtanh.pop %v1751
    %v1754 = vtanh.pop %v1752
    %1757 = vrot.lane.b32.xlu0 %v1753, 32
    %v1758 = vpop.permute.xlu0 %1757
    %1759 = vrot.lane.b32.xlu0 %v1754, 32
    %v1760 = vpop.permute.xlu0 %1759
    %v1763 = vmul.f32 %v1713, %v1758
    %v1764 = vmul.f32 %v1728, %v1760
    %v1765 = vxor.u32 %v1689, 2147483648
    %v1766 = vxor.u32 %v1690, 2147483648
    %v1767 = vmul.f32 %v1765, 1.442695
    %v1768 = vpow.pop %v1767
    %v1769 = vmul.f32 %v1766, 1.442695
    %v1770 = vpow.pop %v1769
    %v1771 = vadd.f32 %v1768, 1.0
    %v1772 = vadd.f32 %v1770, 1.0
    %v1773 = vrcp.pop %v1771
    %v1774 = vmul.f32 %v1771, %v1773
    %v1775 = vsub.f32 1.0, %v1774
    %v1776 = vmul.f32 %v1773, %v1775
    %v1777 = vadd.f32 %v1773, %v1776
    %vm1778 = vweird.f32 %v1771
    %vm1779 = vweird.f32 %v1773
    %vm1780 = vmor %vm1778, %vm1779
    %v1781 = vsel %vm1780, %v1773, %v1777
    %v1782 = vand.u32 2147483647, %v1771
    %vm1783 = vcmp.eq.f32.partialorder %v1782, 8.507059e+37
    %v1784 = vand.u32 %v1771, 2147483648
    %v1785 = vor.u32 1.1754944e-38, %v1784
    %v1786 = vsel %vm1783, %v1785, %v1781
    %v1787 = vmul.f32 1.0, %v1786
    %v1788 = vrcp.pop %v1772
    %v1789 = vmul.f32 %v1772, %v1788
    %v1790 = vsub.f32 1.0, %v1789
    %v1791 = vmul.f32 %v1788, %v1790
    %v1792 = vadd.f32 %v1788, %v1791
    %vm1793 = vweird.f32 %v1772
    %vm1794 = vweird.f32 %v1788
    %vm1795 = vmor %vm1793, %vm1794
    %v1796 = vsel %vm1795, %v1788, %v1792
    %v1797 = vand.u32 2147483647, %v1772
    %vm1798 = vcmp.eq.f32.partialorder %v1797, 8.507059e+37
    %v1799 = vand.u32 %v1772, 2147483648
    %v1800 = vor.u32 1.1754944e-38, %v1799
    %v1801 = vsel %vm1798, %v1800, %v1796
    %v1802 = vmul.f32 1.0, %v1801
    %v1803 = vtanh.pop %v1689
    %v1804 = vtanh.pop %v1690
    %v1805 = vmul.f32 %v1787, 0.0
    %v1806 = vmul.f32 %v1802, 0.0
    %1809 = vrot.lane.b32.xlu0 %v1803, 32
    %v1810 = vpop.permute.xlu0 %1809
    %1811 = vrot.lane.b32.xlu0 %v1804, 32
    %v1812 = vpop.permute.xlu0 %1811
    %v1815 = vmul.f32 %v1787, %v1810
    %v1816 = vmul.f32 %v1802, %v1812
    %1819 = vrot.lane.b32.xlu0 %v1815, 32
    %v1820 = vpop.permute.xlu0 %1819
    %1821 = vrot.lane.b32.xlu0 %v1816, 32
    %v1822 = vpop.permute.xlu0 %1821
    %v1825 = vadd.f32 %v1805, %v1820
    %v1826 = vadd.f32 %v1806, %v1822
    %v1827 = vtanh.pop %v1825
    %v1828 = vtanh.pop %v1826
    %1831 = vrot.lane.b32.xlu0 %v1827, 32
    %v1832 = vpop.permute.xlu0 %1831
    %1833 = vrot.lane.b32.xlu0 %v1828, 32
    %v1834 = vpop.permute.xlu0 %1833
    %v1837 = vmul.f32 %v1787, %v1832
    %v1838 = vmul.f32 %v1802, %v1834
    %1841 = vrot.lane.b32.xlu0 %v1763, 64
    %v1842 = vpop.permute.xlu0 %1841
    %1843 = vrot.lane.b32.xlu0 %v1764, 64
    %v1844 = vpop.permute.xlu0 %1843
    %1847 = vst.msk [vmem:[#allocation3] sm:$0xff] %vm301, %v1842
    %1848 = vst.msk [vmem:[#allocation3 + $0x8] sm:$0xff] %vm301, %v1844
    %1851 = vrot.lane.b32.xlu0 %v1837, 64
    %v1852 = vpop.permute.xlu0 %1851
    %1853 = vrot.lane.b32.xlu0 %v1838, 64
    %v1854 = vpop.permute.xlu0 %1853
    %1857 = vst.msk [vmem:[#allocation4 + $0x30] sm:$0xff] %vm301, %v1852
    %1858 = vst.msk [vmem:[#allocation4 + $0x38] sm:$0xff] %vm301, %v1854
    %v1859 = vld [vmem:[#allocation2 + $0x20] sm:$0xff]
    %v1860 = vld [vmem:[#allocation2 + $0x30] sm:$0xff]
    %v1861 = vsel %vm301, %v1842, 0
    %v1863 = vsel %vm301, %v1844, 0
    %1865 = vmatpush.msra.mxu0 0.0
    %1866 = vmatpush.msra.mxu0 0.0
    %1867 = vmatpush.msra.mxu0 0.0
    %1868 = vmatpush.msra.mxu0 0.0
    %1869 = vmatpush.msra.mxu0 0.0
    %1870 = vmatpush.msra.mxu0 0.0
    %1871 = vmatpush.msra.mxu0 0.0
    %1872 = vmatpush.msra.mxu0 0.0
    %1873 = vmatpush.msra.mxu0 0.0
    %1874 = vmatpush.msra.mxu0 0.0
    %1875 = vmatpush.msra.mxu0 0.0
    %1876 = vmatpush.msra.mxu0 0.0
    %1877 = vmatpush.msra.mxu0 %v1632
    %1878 = vmatpush.msra.mxu0 %v1631
    %1879 = vmatpush.msra.mxu0 %v1630
    %1880 = vmatpush.msra.mxu0 %v1629
    %1881 = vmatmul.f32.gmra.mxu0 %v1861
    %v1882 = vpop.f32.mrf.mxu0
    %v1883 = vadd.f32 0.0, %v1882
    %1884 = vmatmul.f32.gmra.mxu0 %v1863
    %v1885 = vpop.f32.mrf.mxu0
    %v1886 = vadd.f32 0.0, %v1885
    %1887 = vdwg.mxu0
    %v1888 = vadd.f32 %v1859, %v1883
    %v1889 = vadd.f32 %v1860, %v1886
    %v1890 = vld [vmem:[#allocation2 + $0x48] sm:$0xff]
    %v1891 = vld [vmem:[#allocation2 + $0x58] sm:$0xff]
    %v1892 = vsel %vm301, %v1852, 0
    %v1894 = vsel %vm301, %v1854, 0
    %1896 = vmatpush.msra.mxu0 0.0
    %1897 = vmatpush.msra.mxu0 0.0
    %1898 = vmatpush.msra.mxu0 0.0
    %1899 = vmatpush.msra.mxu0 0.0
    %1900 = vmatpush.msra.mxu0 0.0
    %1901 = vmatpush.msra.mxu0 0.0
    %1902 = vmatpush.msra.mxu0 0.0
    %1903 = vmatpush.msra.mxu0 0.0
    %1904 = vmatpush.msra.mxu0 0.0
    %1905 = vmatpush.msra.mxu0 0.0
    %1906 = vmatpush.msra.mxu0 0.0
    %1907 = vmatpush.msra.mxu0 0.0
    %1908 = vmatpush.msra.mxu0 %v1636
    %1909 = vmatpush.msra.mxu0 %v1635
    %1910 = vmatpush.msra.mxu0 %v1634
    %1911 = vmatpush.msra.mxu0 %v1633
    %1912 = vmatmul.f32.gmra.mxu0 %v1892
    %v1913 = vpop.f32.mrf.mxu0
    %v1914 = vadd.f32 0.0, %v1913
    %1915 = vmatmul.f32.gmra.mxu0 %v1894
    %v1916 = vpop.f32.mrf.mxu0
    %v1917 = vadd.f32 0.0, %v1916
    %1918 = vdwg.mxu0
    %v1919 = vadd.f32 %v1890, %v1914
    %v1920 = vadd.f32 %v1891, %v1917
    %v1921 = vxor.u32 %v1888, 2147483648
    %v1922 = vxor.u32 %v1889, 2147483648
    %v1923 = vmul.f32 %v1921, 1.442695
    %v1924 = vpow.pop %v1923
    %v1925 = vmul.f32 %v1922, 1.442695
    %v1926 = vpow.pop %v1925
    %v1927 = vadd.f32 %v1924, 1.0
    %v1928 = vadd.f32 %v1926, 1.0
    %v1929 = vrcp.pop %v1927
    %v1930 = vmul.f32 %v1927, %v1929
    %v1931 = vsub.f32 1.0, %v1930
    %v1932 = vmul.f32 %v1929, %v1931
    %v1933 = vadd.f32 %v1929, %v1932
    %vm1934 = vweird.f32 %v1927
    %vm1935 = vweird.f32 %v1929
    %vm1936 = vmor %vm1934, %vm1935
    %v1937 = vsel %vm1936, %v1929, %v1933
    %v1938 = vand.u32 2147483647, %v1927
    %vm1939 = vcmp.eq.f32.partialorder %v1938, 8.507059e+37
    %v1940 = vand.u32 %v1927, 2147483648
    %v1941 = vor.u32 1.1754944e-38, %v1940
    %v1942 = vsel %vm1939, %v1941, %v1937
    %v1943 = vmul.f32 1.0, %v1942
    %v1944 = vrcp.pop %v1928
    %v1945 = vmul.f32 %v1928, %v1944
    %v1946 = vsub.f32 1.0, %v1945
    %v1947 = vmul.f32 %v1944, %v1946
    %v1948 = vadd.f32 %v1944, %v1947
    %vm1949 = vweird.f32 %v1928
    %vm1950 = vweird.f32 %v1944
    %vm1951 = vmor %vm1949, %vm1950
    %v1952 = vsel %vm1951, %v1944, %v1948
    %v1953 = vand.u32 2147483647, %v1928
    %vm1954 = vcmp.eq.f32.partialorder %v1953, 8.507059e+37
    %v1955 = vand.u32 %v1928, 2147483648
    %v1956 = vor.u32 1.1754944e-38, %v1955
    %v1957 = vsel %vm1954, %v1956, %v1952
    %v1958 = vmul.f32 1.0, %v1957
    %v1959 = vtanh.pop %v1888
    %v1960 = vtanh.pop %v1889
    %v1961 = vmul.f32 %v1943, %v1751
    %v1962 = vmul.f32 %v1958, %v1752
    %1965 = vrot.lane.b32.xlu0 %v1959, 32
    %v1966 = vpop.permute.xlu0 %1965
    %1967 = vrot.lane.b32.xlu0 %v1960, 32
    %v1968 = vpop.permute.xlu0 %1967
    %v1971 = vmul.f32 %v1943, %v1966
    %v1972 = vmul.f32 %v1958, %v1968
    %1975 = vrot.lane.b32.xlu0 %v1971, 32
    %v1976 = vpop.permute.xlu0 %1975
    %1977 = vrot.lane.b32.xlu0 %v1972, 32
    %v1978 = vpop.permute.xlu0 %1977
    %v1981 = vadd.f32 %v1961, %v1976
    %v1982 = vadd.f32 %v1962, %v1978
    %v1983 = vtanh.pop %v1981
    %v1984 = vtanh.pop %v1982
    %1987 = vrot.lane.b32.xlu0 %v1983, 32
    %v1988 = vpop.permute.xlu0 %1987
    %1989 = vrot.lane.b32.xlu0 %v1984, 32
    %v1990 = vpop.permute.xlu0 %1989
    %v1993 = vmul.f32 %v1943, %v1988
    %v1994 = vmul.f32 %v1958, %v1990
    %v1995 = vxor.u32 %v1919, 2147483648
    %v1996 = vxor.u32 %v1920, 2147483648
    %v1997 = vmul.f32 %v1995, 1.442695
    %v1998 = vpow.pop %v1997
    %v1999 = vmul.f32 %v1996, 1.442695
    %v2000 = vpow.pop %v1999
    %v2001 = vadd.f32 %v1998, 1.0
    %v2002 = vadd.f32 %v2000, 1.0
    %v2003 = vrcp.pop %v2001
    %v2004 = vmul.f32 %v2001, %v2003
    %v2005 = vsub.f32 1.0, %v2004
    %v2006 = vmul.f32 %v2003, %v2005
    %v2007 = vadd.f32 %v2003, %v2006
    %vm2008 = vweird.f32 %v2001
    %vm2009 = vweird.f32 %v2003
    %vm2010 = vmor %vm2008, %vm2009
    %v2011 = vsel %vm2010, %v2003, %v2007
    %v2012 = vand.u32 2147483647, %v2001
    %vm2013 = vcmp.eq.f32.partialorder %v2012, 8.507059e+37
    %v2014 = vand.u32 %v2001, 2147483648
    %v2015 = vor.u32 1.1754944e-38, %v2014
    %v2016 = vsel %vm2013, %v2015, %v2011
    %v2017 = vmul.f32 1.0, %v2016
    %v2018 = vrcp.pop %v2002
    %v2019 = vmul.f32 %v2002, %v2018
    %v2020 = vsub.f32 1.0, %v2019
    %v2021 = vmul.f32 %v2018, %v2020
    %v2022 = vadd.f32 %v2018, %v2021
    %vm2023 = vweird.f32 %v2002
    %vm2024 = vweird.f32 %v2018
    %vm2025 = vmor %vm2023, %vm2024
    %v2026 = vsel %vm2025, %v2018, %v2022
    %v2027 = vand.u32 2147483647, %v2002
    %vm2028 = vcmp.eq.f32.partialorder %v2027, 8.507059e+37
    %v2029 = vand.u32 %v2002, 2147483648
    %v2030 = vor.u32 1.1754944e-38, %v2029
    %v2031 = vsel %vm2028, %v2030, %v2026
    %v2032 = vmul.f32 1.0, %v2031
    %v2033 = vtanh.pop %v1919
    %v2034 = vtanh.pop %v1920
    %v2035 = vmul.f32 %v2017, %v1825
    %v2036 = vmul.f32 %v2032, %v1826
    %2039 = vrot.lane.b32.xlu0 %v2033, 32
    %v2040 = vpop.permute.xlu0 %2039
    %2041 = vrot.lane.b32.xlu0 %v2034, 32
    %v2042 = vpop.permute.xlu0 %2041
    %v2045 = vmul.f32 %v2017, %v2040
    %v2046 = vmul.f32 %v2032, %v2042
    %2049 = vrot.lane.b32.xlu0 %v2045, 32
    %v2050 = vpop.permute.xlu0 %2049
    %2051 = vrot.lane.b32.xlu0 %v2046, 32
    %v2052 = vpop.permute.xlu0 %2051
    %v2055 = vadd.f32 %v2035, %v2050
    %v2056 = vadd.f32 %v2036, %v2052
    %v2057 = vtanh.pop %v2055
    %v2058 = vtanh.pop %v2056
    %2061 = vrot.lane.b32.xlu0 %v2057, 32
    %v2062 = vpop.permute.xlu0 %2061
    %2063 = vrot.lane.b32.xlu0 %v2058, 32
    %v2064 = vpop.permute.xlu0 %2063
    %v2067 = vmul.f32 %v2017, %v2062
    %v2068 = vmul.f32 %v2032, %v2064
    %2071 = vrot.lane.b32.xlu0 %v1993, 64
    %v2072 = vpop.permute.xlu0 %2071
    %2073 = vrot.lane.b32.xlu0 %v1994, 64
    %v2074 = vpop.permute.xlu0 %2073
    %2077 = vst.msk [vmem:[#allocation3 + $0x10] sm:$0xff] %vm301, %v2072
    %2078 = vst.msk [vmem:[#allocation3 + $0x18] sm:$0xff] %vm301, %v2074
    %2081 = vrot.lane.b32.xlu0 %v2067, 64
    %v2082 = vpop.permute.xlu0 %2081
    %2083 = vrot.lane.b32.xlu0 %v2068, 64
    %v2084 = vpop.permute.xlu0 %2083
    %2087 = vst.msk [vmem:[#allocation4 + $0x20] sm:$0xff] %vm301, %v2082
    %2088 = vst.msk [vmem:[#allocation4 + $0x28] sm:$0xff] %vm301, %v2084
    %v2089 = vld [vmem:[#allocation2 + $0x40] sm:$0xff]
    %v2090 = vld [vmem:[#allocation2 + $0x50] sm:$0xff]
    %v2091 = vsel %vm301, %v2072, 0
    %v2093 = vsel %vm301, %v2074, 0
    %2095 = vmatpush.msra.mxu0 0.0
    %2096 = vmatpush.msra.mxu0 0.0
    %2097 = vmatpush.msra.mxu0 0.0
    %2098 = vmatpush.msra.mxu0 0.0
    %2099 = vmatpush.msra.mxu0 0.0
    %2100 = vmatpush.msra.mxu0 0.0
    %2101 = vmatpush.msra.mxu0 0.0
    %2102 = vmatpush.msra.mxu0 0.0
    %2103 = vmatpush.msra.mxu0 0.0
    %2104 = vmatpush.msra.mxu0 0.0
    %2105 = vmatpush.msra.mxu0 0.0
    %2106 = vmatpush.msra.mxu0 0.0
    %2107 = vmatpush.msra.mxu0 %v1632
    %2108 = vmatpush.msra.mxu0 %v1631
    %2109 = vmatpush.msra.mxu0 %v1630
    %2110 = vmatpush.msra.mxu0 %v1629
    %2111 = vmatmul.f32.gmra.mxu0 %v2091
    %v2112 = vpop.f32.mrf.mxu0
    %v2113 = vadd.f32 0.0, %v2112
    %2114 = vmatmul.f32.gmra.mxu0 %v2093
    %v2115 = vpop.f32.mrf.mxu0
    %v2116 = vadd.f32 0.0, %v2115
    %2117 = vdwg.mxu0
    %v2118 = vadd.f32 %v2089, %v2113
    %v2119 = vadd.f32 %v2090, %v2116
    %v2120 = vld [vmem:[#allocation2 + $0x28] sm:$0xff]
    %v2121 = vld [vmem:[#allocation2 + $0x38] sm:$0xff]
    %v2122 = vsel %vm301, %v2082, 0
    %v2124 = vsel %vm301, %v2084, 0
    %2126 = vmatpush.msra.mxu0 0.0
    %2127 = vmatpush.msra.mxu0 0.0
    %2128 = vmatpush.msra.mxu0 0.0
    %2129 = vmatpush.msra.mxu0 0.0
    %2130 = vmatpush.msra.mxu0 0.0
    %2131 = vmatpush.msra.mxu0 0.0
    %2132 = vmatpush.msra.mxu0 0.0
    %2133 = vmatpush.msra.mxu0 0.0
    %2134 = vmatpush.msra.mxu0 0.0
    %2135 = vmatpush.msra.mxu0 0.0
    %2136 = vmatpush.msra.mxu0 0.0
    %2137 = vmatpush.msra.mxu0 0.0
    %2138 = vmatpush.msra.mxu0 %v1636
    %2139 = vmatpush.msra.mxu0 %v1635
    %2140 = vmatpush.msra.mxu0 %v1634
    %2141 = vmatpush.msra.mxu0 %v1633
    %2142 = vmatmul.f32.gmra.mxu0 %v2122
    %v2143 = vpop.f32.mrf.mxu0
    %v2144 = vadd.f32 0.0, %v2143
    %2145 = vmatmul.f32.gmra.mxu0 %v2124
    %v2146 = vpop.f32.mrf.mxu0
    %v2147 = vadd.f32 0.0, %v2146
    %2148 = vdwg.mxu0
    %v2149 = vadd.f32 %v2120, %v2144
    %v2150 = vadd.f32 %v2121, %v2147
    %v2151 = vxor.u32 %v2118, 2147483648
    %v2152 = vxor.u32 %v2119, 2147483648
    %v2153 = vmul.f32 %v2151, 1.442695
    %v2154 = vpow.pop %v2153
    %v2155 = vmul.f32 %v2152, 1.442695
    %v2156 = vpow.pop %v2155
    %v2157 = vadd.f32 %v2154, 1.0
    %v2158 = vadd.f32 %v2156, 1.0
    %v2159 = vrcp.pop %v2157
    %v2160 = vmul.f32 %v2157, %v2159
    %v2161 = vsub.f32 1.0, %v2160
    %v2162 = vmul.f32 %v2159, %v2161
    %v2163 = vadd.f32 %v2159, %v2162
    %vm2164 = vweird.f32 %v2157
    %vm2165 = vweird.f32 %v2159
    %vm2166 = vmor %vm2164, %vm2165
    %v2167 = vsel %vm2166, %v2159, %v2163
    %v2168 = vand.u32 2147483647, %v2157
    %vm2169 = vcmp.eq.f32.partialorder %v2168, 8.507059e+37
    %v2170 = vand.u32 %v2157, 2147483648
    %v2171 = vor.u32 1.1754944e-38, %v2170
    %v2172 = vsel %vm2169, %v2171, %v2167
    %v2173 = vmul.f32 1.0, %v2172
    %v2174 = vrcp.pop %v2158
    %v2175 = vmul.f32 %v2158, %v2174
    %v2176 = vsub.f32 1.0, %v2175
    %v2177 = vmul.f32 %v2174, %v2176
    %v2178 = vadd.f32 %v2174, %v2177
    %vm2179 = vweird.f32 %v2158
    %vm2180 = vweird.f32 %v2174
    %vm2181 = vmor %vm2179, %vm2180
    %v2182 = vsel %vm2181, %v2174, %v2178
    %v2183 = vand.u32 2147483647, %v2158
    %vm2184 = vcmp.eq.f32.partialorder %v2183, 8.507059e+37
    %v2185 = vand.u32 %v2158, 2147483648
    %v2186 = vor.u32 1.1754944e-38, %v2185
    %v2187 = vsel %vm2184, %v2186, %v2182
    %v2188 = vmul.f32 1.0, %v2187
    %v2189 = vtanh.pop %v2118
    %v2190 = vtanh.pop %v2119
    %v2191 = vmul.f32 %v2173, %v1981
    %v2192 = vmul.f32 %v2188, %v1982
    %2195 = vrot.lane.b32.xlu0 %v2189, 32
    %v2196 = vpop.permute.xlu0 %2195
    %2197 = vrot.lane.b32.xlu0 %v2190, 32
    %v2198 = vpop.permute.xlu0 %2197
    %v2201 = vmul.f32 %v2173, %v2196
    %v2202 = vmul.f32 %v2188, %v2198
    %2205 = vrot.lane.b32.xlu0 %v2201, 32
    %v2206 = vpop.permute.xlu0 %2205
    %2207 = vrot.lane.b32.xlu0 %v2202, 32
    %v2208 = vpop.permute.xlu0 %2207
    %v2211 = vadd.f32 %v2191, %v2206
    %v2212 = vadd.f32 %v2192, %v2208
    %v2213 = vtanh.pop %v2211
    %v2214 = vtanh.pop %v2212
    %2217 = vrot.lane.b32.xlu0 %v2213, 32
    %v2218 = vpop.permute.xlu0 %2217
    %2219 = vrot.lane.b32.xlu0 %v2214, 32
    %v2220 = vpop.permute.xlu0 %2219
    %v2223 = vmul.f32 %v2173, %v2218
    %v2224 = vmul.f32 %v2188, %v2220
    %v2225 = vxor.u32 %v2149, 2147483648
    %v2226 = vxor.u32 %v2150, 2147483648
    %v2227 = vmul.f32 %v2225, 1.442695
    %v2228 = vpow.pop %v2227
    %v2229 = vmul.f32 %v2226, 1.442695
    %v2230 = vpow.pop %v2229
    %v2231 = vadd.f32 %v2228, 1.0
    %v2232 = vadd.f32 %v2230, 1.0
    %v2233 = vrcp.pop %v2231
    %v2234 = vmul.f32 %v2231, %v2233
    %v2235 = vsub.f32 1.0, %v2234
    %v2236 = vmul.f32 %v2233, %v2235
    %v2237 = vadd.f32 %v2233, %v2236
    %vm2238 = vweird.f32 %v2231
    %vm2239 = vweird.f32 %v2233
    %vm2240 = vmor %vm2238, %vm2239
    %v2241 = vsel %vm2240, %v2233, %v2237
    %v2242 = vand.u32 2147483647, %v2231
    %vm2243 = vcmp.eq.f32.partialorder %v2242, 8.507059e+37
    %v2244 = vand.u32 %v2231, 2147483648
    %v2245 = vor.u32 1.1754944e-38, %v2244
    %v2246 = vsel %vm2243, %v2245, %v2241
    %v2247 = vmul.f32 1.0, %v2246
    %v2248 = vrcp.pop %v2232
    %v2249 = vmul.f32 %v2232, %v2248
    %v2250 = vsub.f32 1.0, %v2249
    %v2251 = vmul.f32 %v2248, %v2250
    %v2252 = vadd.f32 %v2248, %v2251
    %vm2253 = vweird.f32 %v2232
    %vm2254 = vweird.f32 %v2248
    %vm2255 = vmor %vm2253, %vm2254
    %v2256 = vsel %vm2255, %v2248, %v2252
    %v2257 = vand.u32 2147483647, %v2232
    %vm2258 = vcmp.eq.f32.partialorder %v2257, 8.507059e+37
    %v2259 = vand.u32 %v2232, 2147483648
    %v2260 = vor.u32 1.1754944e-38, %v2259
    %v2261 = vsel %vm2258, %v2260, %v2256
    %v2262 = vmul.f32 1.0, %v2261
    %v2263 = vtanh.pop %v2149
    %v2264 = vtanh.pop %v2150
    %v2265 = vmul.f32 %v2247, %v2055
    %v2266 = vmul.f32 %v2262, %v2056
    %2269 = vrot.lane.b32.xlu0 %v2263, 32
    %v2270 = vpop.permute.xlu0 %2269
    %2271 = vrot.lane.b32.xlu0 %v2264, 32
    %v2272 = vpop.permute.xlu0 %2271
    %v2275 = vmul.f32 %v2247, %v2270
    %v2276 = vmul.f32 %v2262, %v2272
    %2279 = vrot.lane.b32.xlu0 %v2275, 32
    %v2280 = vpop.permute.xlu0 %2279
    %2281 = vrot.lane.b32.xlu0 %v2276, 32
    %v2282 = vpop.permute.xlu0 %2281
    %v2285 = vadd.f32 %v2265, %v2280
    %v2286 = vadd.f32 %v2266, %v2282
    %v2287 = vtanh.pop %v2285
    %v2288 = vtanh.pop %v2286
    %2291 = vrot.lane.b32.xlu0 %v2287, 32
    %v2292 = vpop.permute.xlu0 %2291
    %2293 = vrot.lane.b32.xlu0 %v2288, 32
    %v2294 = vpop.permute.xlu0 %2293
    %v2297 = vmul.f32 %v2247, %v2292
    %v2298 = vmul.f32 %v2262, %v2294
    %2301 = vrot.lane.b32.xlu0 %v2223, 64
    %v2302 = vpop.permute.xlu0 %2301
    %2303 = vrot.lane.b32.xlu0 %v2224, 64
    %v2304 = vpop.permute.xlu0 %2303
    %2307 = vst.msk [vmem:[#allocation3 + $0x20] sm:$0xff] %vm301, %v2302
    %2308 = vst.msk [vmem:[#allocation3 + $0x28] sm:$0xff] %vm301, %v2304
    %2311 = vrot.lane.b32.xlu0 %v2297, 64
    %v2312 = vpop.permute.xlu0 %2311
    %2313 = vrot.lane.b32.xlu0 %v2298, 64
    %v2314 = vpop.permute.xlu0 %2313
    %2317 = vst.msk [vmem:[#allocation4 + $0x10] sm:$0xff] %vm301, %v2312
    %2318 = vst.msk [vmem:[#allocation4 + $0x18] sm:$0xff] %vm301, %v2314
    %v2319 = vld [vmem:[#allocation2 + $0x60] sm:$0xff]
    %v2320 = vld [vmem:[#allocation2 + $0x70] sm:$0xff]
    %v2321 = vsel %vm301, %v2302, 0
    %v2323 = vsel %vm301, %v2304, 0
    %2325 = vmatpush.msra.mxu0 0.0
    %2326 = vmatpush.msra.mxu0 0.0
    %2327 = vmatpush.msra.mxu0 0.0
    %2328 = vmatpush.msra.mxu0 0.0
    %2329 = vmatpush.msra.mxu0 0.0
    %2330 = vmatpush.msra.mxu0 0.0
    %2331 = vmatpush.msra.mxu0 0.0
    %2332 = vmatpush.msra.mxu0 0.0
    %2333 = vmatpush.msra.mxu0 0.0
    %2334 = vmatpush.msra.mxu0 0.0
    %2335 = vmatpush.msra.mxu0 0.0
    %2336 = vmatpush.msra.mxu0 0.0
    %2337 = vmatpush.msra.mxu0 %v1632
    %2338 = vmatpush.msra.mxu0 %v1631
    %2339 = vmatpush.msra.mxu0 %v1630
    %2340 = vmatpush.msra.mxu0 %v1629
    %2341 = vmatmul.f32.gmra.mxu0 %v2321
    %v2342 = vpop.f32.mrf.mxu0
    %v2343 = vadd.f32 0.0, %v2342
    %2344 = vmatmul.f32.gmra.mxu0 %v2323
    %v2345 = vpop.f32.mrf.mxu0
    %v2346 = vadd.f32 0.0, %v2345
    %2347 = vdwg.mxu0
    %v2348 = vadd.f32 %v2319, %v2343
    %v2349 = vadd.f32 %v2320, %v2346
    %v2350 = vld [vmem:[#allocation2 + $0x8] sm:$0xff]
    %v2351 = vld [vmem:[#allocation2 + $0x18] sm:$0xff]
    %v2352 = vsel %vm301, %v2312, 0
    %v2354 = vsel %vm301, %v2314, 0
    %2356 = vmatpush.msra.mxu0 0.0
    %2357 = vmatpush.msra.mxu0 0.0
    %2358 = vmatpush.msra.mxu0 0.0
    %2359 = vmatpush.msra.mxu0 0.0
    %2360 = vmatpush.msra.mxu0 0.0
    %2361 = vmatpush.msra.mxu0 0.0
    %2362 = vmatpush.msra.mxu0 0.0
    %2363 = vmatpush.msra.mxu0 0.0
    %2364 = vmatpush.msra.mxu0 0.0
    %2365 = vmatpush.msra.mxu0 0.0
    %2366 = vmatpush.msra.mxu0 0.0
    %2367 = vmatpush.msra.mxu0 0.0
    %2368 = vmatpush.msra.mxu0 %v1636
    %2369 = vmatpush.msra.mxu0 %v1635
    %2370 = vmatpush.msra.mxu0 %v1634
    %2371 = vmatpush.msra.mxu0 %v1633
    %2372 = vmatmul.f32.gmra.mxu0 %v2352
    %v2373 = vpop.f32.mrf.mxu0
    %v2374 = vadd.f32 0.0, %v2373
    %2375 = vmatmul.f32.gmra.mxu0 %v2354
    %v2376 = vpop.f32.mrf.mxu0
    %v2377 = vadd.f32 0.0, %v2376
    %2378 = vdwg.mxu0
    %v2379 = vadd.f32 %v2350, %v2374
    %v2380 = vadd.f32 %v2351, %v2377
    %v2381 = vxor.u32 %v2348, 2147483648
    %v2382 = vxor.u32 %v2349, 2147483648
    %v2383 = vmul.f32 %v2381, 1.442695
    %v2384 = vpow.pop %v2383
    %v2385 = vmul.f32 %v2382, 1.442695
    %v2386 = vpow.pop %v2385
    %v2387 = vadd.f32 %v2384, 1.0
    %v2388 = vadd.f32 %v2386, 1.0
    %v2389 = vrcp.pop %v2387
    %v2390 = vmul.f32 %v2387, %v2389
    %v2391 = vsub.f32 1.0, %v2390
    %v2392 = vmul.f32 %v2389, %v2391
    %v2393 = vadd.f32 %v2389, %v2392
    %vm2394 = vweird.f32 %v2387
    %vm2395 = vweird.f32 %v2389
    %vm2396 = vmor %vm2394, %vm2395
    %v2397 = vsel %vm2396, %v2389, %v2393
    %v2398 = vand.u32 2147483647, %v2387
    %vm2399 = vcmp.eq.f32.partialorder %v2398, 8.507059e+37
    %v2400 = vand.u32 %v2387, 2147483648
    %v2401 = vor.u32 1.1754944e-38, %v2400
    %v2402 = vsel %vm2399, %v2401, %v2397
    %v2403 = vmul.f32 1.0, %v2402
    %v2404 = vrcp.pop %v2388
    %v2405 = vmul.f32 %v2388, %v2404
    %v2406 = vsub.f32 1.0, %v2405
    %v2407 = vmul.f32 %v2404, %v2406
    %v2408 = vadd.f32 %v2404, %v2407
    %vm2409 = vweird.f32 %v2388
    %vm2410 = vweird.f32 %v2404
    %vm2411 = vmor %vm2409, %vm2410
    %v2412 = vsel %vm2411, %v2404, %v2408
    %v2413 = vand.u32 2147483647, %v2388
    %vm2414 = vcmp.eq.f32.partialorder %v2413, 8.507059e+37
    %v2415 = vand.u32 %v2388, 2147483648
    %v2416 = vor.u32 1.1754944e-38, %v2415
    %v2417 = vsel %vm2414, %v2416, %v2412
    %v2418 = vmul.f32 1.0, %v2417
    %v2419 = vtanh.pop %v2348
    %v2420 = vtanh.pop %v2349
    %v2421 = vmul.f32 %v2403, %v2211
    %v2422 = vmul.f32 %v2418, %v2212
    %2425 = vrot.lane.b32.xlu0 %v2419, 32
    %v2426 = vpop.permute.xlu0 %2425
    %2427 = vrot.lane.b32.xlu0 %v2420, 32
    %v2428 = vpop.permute.xlu0 %2427
    %v2431 = vmul.f32 %v2403, %v2426
    %v2432 = vmul.f32 %v2418, %v2428
    %2435 = vrot.lane.b32.xlu0 %v2431, 32
    %v2436 = vpop.permute.xlu0 %2435
    %2437 = vrot.lane.b32.xlu0 %v2432, 32
    %v2438 = vpop.permute.xlu0 %2437
    %v2441 = vadd.f32 %v2421, %v2436
    %v2442 = vadd.f32 %v2422, %v2438
    %v2443 = vtanh.pop %v2441
    %v2444 = vtanh.pop %v2442
    %2447 = vrot.lane.b32.xlu0 %v2443, 32
    %v2448 = vpop.permute.xlu0 %2447
    %2449 = vrot.lane.b32.xlu0 %v2444, 32
    %v2450 = vpop.permute.xlu0 %2449
    %v2453 = vmul.f32 %v2403, %v2448
    %v2454 = vmul.f32 %v2418, %v2450
    %v2455 = vxor.u32 %v2379, 2147483648
    %v2456 = vxor.u32 %v2380, 2147483648
    %v2457 = vmul.f32 %v2455, 1.442695
    %v2458 = vpow.pop %v2457
    %v2459 = vmul.f32 %v2456, 1.442695
    %v2460 = vpow.pop %v2459
    %v2461 = vadd.f32 %v2458, 1.0
    %v2462 = vadd.f32 %v2460, 1.0
    %v2463 = vrcp.pop %v2461
    %v2464 = vmul.f32 %v2461, %v2463
    %v2465 = vsub.f32 1.0, %v2464
    %v2466 = vmul.f32 %v2463, %v2465
    %v2467 = vadd.f32 %v2463, %v2466
    %vm2468 = vweird.f32 %v2461
    %vm2469 = vweird.f32 %v2463
    %vm2470 = vmor %vm2468, %vm2469
    %v2471 = vsel %vm2470, %v2463, %v2467
    %v2472 = vand.u32 2147483647, %v2461
    %vm2473 = vcmp.eq.f32.partialorder %v2472, 8.507059e+37
    %v2474 = vand.u32 %v2461, 2147483648
    %v2475 = vor.u32 1.1754944e-38, %v2474
    %v2476 = vsel %vm2473, %v2475, %v2471
    %v2477 = vmul.f32 1.0, %v2476
    %v2478 = vrcp.pop %v2462
    %v2479 = vmul.f32 %v2462, %v2478
    %v2480 = vsub.f32 1.0, %v2479
    %v2481 = vmul.f32 %v2478, %v2480
    %v2482 = vadd.f32 %v2478, %v2481
    %vm2483 = vweird.f32 %v2462
    %vm2484 = vweird.f32 %v2478
    %vm2485 = vmor %vm2483, %vm2484
    %v2486 = vsel %vm2485, %v2478, %v2482
    %v2487 = vand.u32 2147483647, %v2462
    %vm2488 = vcmp.eq.f32.partialorder %v2487, 8.507059e+37
    %v2489 = vand.u32 %v2462, 2147483648
    %v2490 = vor.u32 1.1754944e-38, %v2489
    %v2491 = vsel %vm2488, %v2490, %v2486
    %v2492 = vmul.f32 1.0, %v2491
    %v2493 = vtanh.pop %v2379
    %v2494 = vtanh.pop %v2380
    %v2495 = vmul.f32 %v2477, %v2285
    %v2496 = vmul.f32 %v2492, %v2286
    %2499 = vrot.lane.b32.xlu0 %v2493, 32
    %v2500 = vpop.permute.xlu0 %2499
    %2501 = vrot.lane.b32.xlu0 %v2494, 32
    %v2502 = vpop.permute.xlu0 %2501
    %v2505 = vmul.f32 %v2477, %v2500
    %v2506 = vmul.f32 %v2492, %v2502
    %2509 = vrot.lane.b32.xlu0 %v2505, 32
    %v2510 = vpop.permute.xlu0 %2509
    %2511 = vrot.lane.b32.xlu0 %v2506, 32
    %v2512 = vpop.permute.xlu0 %2511
    %v2515 = vadd.f32 %v2495, %v2510
    %v2516 = vadd.f32 %v2496, %v2512
    %v2517 = vtanh.pop %v2515
    %v2518 = vtanh.pop %v2516
    %2521 = vrot.lane.b32.xlu0 %v2517, 32
    %v2522 = vpop.permute.xlu0 %2521
    %2523 = vrot.lane.b32.xlu0 %v2518, 32
    %v2524 = vpop.permute.xlu0 %2523
    %v2527 = vmul.f32 %v2477, %v2522
    %v2528 = vmul.f32 %v2492, %v2524
    %2531 = vrot.lane.b32.xlu0 %v2453, 64
    %v2532 = vpop.permute.xlu0 %2531
    %2533 = vrot.lane.b32.xlu0 %v2454, 64
    %v2534 = vpop.permute.xlu0 %2533
    %2537 = vst.msk [vmem:[#allocation3 + $0x30] sm:$0xff] %vm301, %v2532
    %2538 = vst.msk [vmem:[#allocation3 + $0x38] sm:$0xff] %vm301, %v2534
    %2541 = vrot.lane.b32.xlu0 %v2527, 64
    %v2542 = vpop.permute.xlu0 %2541
    %2543 = vrot.lane.b32.xlu0 %v2528, 64
    %v2544 = vpop.permute.xlu0 %2543
    %2547 = vst.msk [vmem:[#allocation4] sm:$0xff] %vm301, %v2542
    %2548 = vst.msk [vmem:[#allocation4 + $0x8] sm:$0xff] %vm301, %v2544
    %v2549 = vld [vmem:[#allocation3] ss:$16 sm:$0x3]
    %v2550 = vld [vmem:[#allocation3] ss:$16 sm:$0xc]
    %v2551 = vor.u32 %v2549, %v2550
    %v2552 = vld [vmem:[#allocation4] ss:$16 sm:$0x3]
    %v2553 = vld [vmem:[#allocation4] ss:$16 sm:$0xc]
    %v2554 = vor.u32 %v2552, %v2553
    %v2555 = vld [vmem:[#allocation15] sm:$0xff]
    %v2556 = vld [vmem:[#allocation15 + $0x8] sm:$0xff]
    %v2557 = vld [vmem:[#allocation15 + $0x10] sm:$0xff]
    %v2558 = vld [vmem:[#allocation15 + $0x18] sm:$0xff]
    %v2559 = vld [vmem:[#allocation15 + $0x20] sm:$0xff]
    %v2560 = vld [vmem:[#allocation15 + $0x28] sm:$0xff]
    %v2561 = vld [vmem:[#allocation15 + $0x30] sm:$0xff]
    %v2562 = vld [vmem:[#allocation15 + $0x38] sm:$0xff]
    %v2564 = vsel %vm301, %v2554, 0
    %2566 = vmatpush.msra.mxu0 0.0
    %2567 = vmatpush.msra.mxu0 0.0
    %2568 = vmatpush.msra.mxu0 0.0
    %2569 = vmatpush.msra.mxu0 0.0
    %2570 = vmatpush.msra.mxu0 0.0
    %2571 = vmatpush.msra.mxu0 0.0
    %2572 = vmatpush.msra.mxu0 0.0
    %2573 = vmatpush.msra.mxu0 0.0
    %2574 = vmatpush.msra.mxu0 0.0
    %2575 = vmatpush.msra.mxu0 0.0
    %2576 = vmatpush.msra.mxu0 0.0
    %2577 = vmatpush.msra.mxu0 0.0
    %2578 = vmatpush.msra.mxu0 %v2562
    %2579 = vmatpush.msra.mxu0 %v2561
    %2580 = vmatpush.msra.mxu0 %v2560
    %2581 = vmatpush.msra.mxu0 %v2559
    %2582 = vmatmul.f32.gmra.mxu0 %v2564
    %v2583 = vpop.f32.mrf.mxu0
    %v2584 = vadd.f32 0.0, %v2583
    %2585 = vdwg.mxu0
    %v2587 = vsel %vm301, %v2551, 0
    %2589 = vmatpush.msra.mxu0 0.0
    %2590 = vmatpush.msra.mxu0 0.0
    %2591 = vmatpush.msra.mxu0 0.0
    %2592 = vmatpush.msra.mxu0 0.0
    %2593 = vmatpush.msra.mxu0 0.0
    %2594 = vmatpush.msra.mxu0 0.0
    %2595 = vmatpush.msra.mxu0 0.0
    %2596 = vmatpush.msra.mxu0 0.0
    %2597 = vmatpush.msra.mxu0 0.0
    %2598 = vmatpush.msra.mxu0 0.0
    %2599 = vmatpush.msra.mxu0 0.0
    %2600 = vmatpush.msra.mxu0 0.0
    %2601 = vmatpush.msra.mxu0 %v2558
    %2602 = vmatpush.msra.mxu0 %v2557
    %2603 = vmatpush.msra.mxu0 %v2556
    %2604 = vmatpush.msra.mxu0 %v2555
    %2605 = vmatmul.f32.gmra.mxu0 %v2587
    %v2606 = vpop.f32.mrf.mxu0
    %v2607 = vadd.f32 %v2584, %v2606
    %2608 = vdwg.mxu0
    %v2609 = vld [vmem:[%s11] sm:$0x1]
    %v2611 = vperm.slane %v2609, 0
    %v2613 = vadd.f32 %v2607, %v2611
    %v2614 = vtanh.pop %v2613
    %v2615 = vld [vmem:[%s12] sm:$0xff]
    %v2616 = vld [vmem:[%s12 + $0x8] sm:$0xff]
    %v2617 = vld [vmem:[%s12 + $0x10] sm:$0xff]
    %v2618 = vld [vmem:[%s12 + $0x18] sm:$0xff]
    %v2619 = vld [vmem:[%s12 + $0x20] sm:$0xff]
    %v2620 = vld [vmem:[%s12 + $0x28] sm:$0xff]
    %v2621 = vld [vmem:[%s12 + $0x30] sm:$0xff]
    %v2622 = vld [vmem:[%s12 + $0x38] sm:$0xff]
    %v2623 = vld [vmem:[%s13] sm:$0x1]
    %v2625 = vperm.slane %v2623, 0
    %vm2627 = vcmask 523264
    %v2629 = vsel %vm2627, %v2614, 0
    %2631 = vmatpush.msra.mxu0 0.0
    %2632 = vmatpush.msra.mxu0 0.0
    %2633 = vmatpush.msra.mxu0 0.0
    %2634 = vmatpush.msra.mxu0 0.0
    %2635 = vmatpush.msra.mxu0 0.0
    %2636 = vmatpush.msra.mxu0 0.0
    %2637 = vmatpush.msra.mxu0 0.0
    %2638 = vmatpush.msra.mxu0 0.0
    %2639 = vmatpush.msra.mxu0 %v2622
    %2640 = vmatpush.msra.mxu0 %v2621
    %2641 = vmatpush.msra.mxu0 %v2620
    %2642 = vmatpush.msra.mxu0 %v2619
    %2643 = vmatpush.msra.mxu0 %v2618
    %2644 = vmatpush.msra.mxu0 %v2617
    %2645 = vmatpush.msra.mxu0 %v2616
    %2646 = vmatpush.msra.mxu0 %v2615
    %2647 = vmatmul.f32.gmra.mxu0 %v2629
    %v2648 = vpop.f32.mrf.mxu0
    %v2649 = vadd.f32 %v2625, %v2648
    %2650 = vdwg.mxu0
    %vm2651 = vcmask 11264
    %2652 = vst.msk [vmem:[%s14] sm:$0xf] %vm2651, %v2649
    // Predicated region
    $region86: #{tpu_custom_call.1} parent=1 // pred_check
      _
    $region87: #{tpu_custom_call.1} parent=1 // pred_check_branch
      %2654 = sbr.rel (0) target = $region89
    $region88: #{tpu_custom_call.1} parent=1 // pred_region
      _
    $region89: #{tpu_custom_call.1} parent=1 // pred_fallthru
      _
    // Predicated region
    $region90: #{tpu_custom_call.1} parent=1 // pred_check
      _
    $region91: #{tpu_custom_call.1} parent=1 // pred_check_branch
      %2656 = sbr.rel (0) target = $region93
    $region92: #{tpu_custom_call.1} parent=1 // pred_region
      _
    $region93: #{tpu_custom_call.1} parent=1 // pred_fallthru
      _
    %2657 = vsyncpa [#allocation6], 1
    %2658 = vsyncpa [#allocation8], 1
    %2659 = vsyncpa [#allocation11], 1
    %2660 = vsyncpa [#allocation14], 1

</llo_original>
